<compile_context>
chip_gen: v5e
topology: v5e:2x2
jax: 0.10.0
libtpu: 0.0.40
codegen_flags: <defaults>
</compile_context>

<pallas_src>
import jax
import jax.numpy as jnp
from jax import lax
from jax.experimental import pallas as pl
from jax.experimental.pallas import tpu as pltpu


def darnn_att2_kernel(scal_ref,   # SMEM (1,)   [b_final]
                      x_ref,      # (T, Bt, F)  time-major padded sequences
                      bpart_ref,  # (Bt, F, F)  sum_t X*W1x + b1 (time-invariant attn part)
                      ybase_ref,  # (T, Bt, G)  (b_fc + y_t*wfc_y)*Wih_d + b_d
                      w_ref,      # (3H+F, G+Fp) weight slab
                      vec_ref,    # (6, G)      vector slab
                      out_ref):   # (Bt, 128)   lane-dense output (result broadcast over lanes)
    T, Bt, F = x_ref.shape
    G = vec_ref.shape[1]
    H = G // 4
    Fp = w_ref.shape[1] - G
    f32 = jnp.float32

    b_fin = scal_ref[0]

    # Loop-invariant weight loads (hoisted out of both recurrences).
    W_h = w_ref[0:H, :]                     # (H, G+Fp): [Whh_e.T | W1h.T padded]
    W1s = w_ref[H:2 * H, 0:Fp]              # (H, Fp)    encoder cell-state attn weights
    whh_d = w_ref[2 * H:3 * H, 0:G]         # (H, G)     decoder Whh_d.T
    wih_e = w_ref[3 * H:3 * H + F, 0:G]     # (F, G)     encoder Wih_e.T

    b_e = vec_ref[0:1, 0:G]
    wih_d = vec_ref[1:2, 0:G]
    w2 = vec_ref[2:3, 0:F].reshape(1, 1, F)
    wfc_ctx = vec_ref[3:4, 0:H]
    wfin_d = vec_ref[4:5, 0:H]
    wfin_c = vec_ref[5:6, 0:H]

    bpart = bpart_ref[...]                  # (Bt, F, F) already includes +b1
    unroll = True if T <= 16 else 2         # partial unroll keeps code size bounded
    zeros = jnp.zeros((Bt, H), f32)

    def lstm_update(gates, c_prev):
        # Gate columns were reordered in the wrapper to [i, f, o, g] so the three
        # sigmoid gates are one contiguous EUP push: 3 EUP pushes per cell total.
        sg = jax.nn.sigmoid(gates[:, 0:3 * H])
        g = jnp.tanh(gates[:, 3 * H:4 * H])
        c_new = sg[:, H:2 * H] * c_prev + sg[:, 0:H] * g
        return sg[:, 2 * H:3 * H] * jnp.tanh(c_new), c_new

    # ---------------- Encoder (use_att=True, input attention) ----------------
    def enc_body(t, carry):
        h, c, h_sum = carry
        # Split-state contraction: no h/c lane-concat on the recurrent chain.
        d1 = jnp.dot(h, W_h, preferred_element_type=f32)      # (Bt, G+Fp)
        a_c = jnp.dot(c, W1s, preferred_element_type=f32)     # (Bt, Fp)
        gates_h = d1[:, 0:G]
        a = d1[:, G:G + F] + a_c[:, 0:F]                      # (Bt, F)
        hidden = jnp.tanh(a[:, None, :] + bpart)              # (Bt, F, F)
        e = jnp.sum(hidden * w2, axis=-1)                     # (Bt, F); b2 dropped (softmax shift-inv.)
        p = jnp.exp(e - jnp.max(e, axis=1, keepdims=True))
        alpha = p * pl.reciprocal(jnp.sum(p, axis=1, keepdims=True), approx=False)
        x_tilde = alpha * x_ref[t]                            # (Bt, F) contiguous time-major load
        # Tiny K=F contraction on the otherwise-idle MXU (no serial lane broadcasts).
        gates = gates_h + b_e + jnp.dot(x_tilde, wih_e, preferred_element_type=f32)
        h_new, c_new = lstm_update(gates, c)
        return h_new, c_new, h_sum + h_new

    _, _, h_sum = lax.fori_loop(0, T, enc_body, (zeros, zeros, zeros), unroll=unroll)

    # ------------- Decoder (use_att=False: uniform attention == mean) -------------
    context = h_sum * (1.0 / T)                                        # (Bt, H)
    ctx_fc = jnp.sum(context * wfc_ctx, axis=-1, keepdims=True)        # (Bt, 1); b_fc folded into ybase
    ctx_gate = ctx_fc * wih_d                                          # (Bt, G) time-invariant gate part

    def dec_body(t, carry):
        d, c = carry
        gates = (ybase_ref[t] + ctx_gate
                 + jnp.dot(d, whh_d, preferred_element_type=f32))
        return lstm_update(gates, c)

    d_fin, _ = lax.fori_loop(0, T, dec_body, (zeros, zeros), unroll=unroll)

    y = (jnp.sum(d_fin * wfin_d, axis=-1, keepdims=True)
         + jnp.sum(context * wfin_c, axis=-1, keepdims=True) + b_fin)  # (Bt, 1)
    out_ref[...] = jnp.broadcast_to(y, (Bt, out_ref.shape[1]))         # lane-dense store


# ----------------------------------------------------------------------------
# Wrapper: parameter packing (transposes / bias merges / gate reorder / slabs),
# time-major staging, batch tiling + pallas_call.
# ----------------------------------------------------------------------------
def rnn_da_att2_forward(seq, params, batch_tile=None):
    # TODO(synk): nn.utils.rnn.pad_packed_sequence has no Pallas equivalent; the
    # wrapper takes the already-padded (B, T, F) tensor directly.
    B, T, F = seq.shape
    H = params["Whh_e"].shape[1]
    G = 4 * H
    Fp = ((F + 127) // 128) * 128          # lane-pad attention columns
    f32 = jnp.float32

    def reorder(a, axis):
        # torch LSTM gate order [i, f, g, o] -> kernel order [i, f, o, g]
        i_, f_, g_, o_ = jnp.split(a, 4, axis=axis)
        return jnp.concatenate([i_, f_, o_, g_], axis=axis)

    W1 = params["W1"]                          # (F, 2H + T)
    w1h = W1[:, :H].T                          # (H, F)
    w1s = W1[:, H:2 * H].T                     # (H, F)
    w1x = W1[:, 2 * H:].T                      # (T, F)
    # NOTE: b2 (2nd attn-layer bias) dropped: softmax is shift-invariant -> exact.

    whh_e = reorder(params["Whh_e"].T, 1)      # (H, G)
    wih_e = reorder(params["Wih_e"].T, 1)      # (F, G)
    b_e = reorder(params["bih_e"] + params["bhh_e"], 0)    # (G,)
    whh_d = reorder(params["Whh_d"].T, 1)      # (H, G)
    wih_d = reorder(params["Wih_d"].T, 1)[0]   # (G,)
    b_d = reorder(params["bih_d"] + params["bhh_d"], 0)    # (G,)

    def lane_pad(a, width):
        return jnp.pad(a, ((0, 0), (0, width - a.shape[1])))

    # Weight slab (rows at H-multiples so in-kernel slices stay sublane-aligned):
    #   rows 0:H     -> [Whh_e.T | W1h.T pad]   (fused encoder h contraction)
    #   rows H:2H    -> [W1s.T pad | 0]         (encoder cell-state attn contraction)
    #   rows 2H:3H   -> [Whh_d.T | 0]
    #   rows 3H:3H+F -> [Wih_e.T | 0]
    w_slab = jnp.concatenate([
        jnp.concatenate([whh_e, lane_pad(w1h, Fp)], axis=1),
        jnp.concatenate([lane_pad(w1s, Fp), jnp.zeros((H, G), f32)], axis=1),
        jnp.concatenate([whh_d, jnp.zeros((H, Fp), f32)], axis=1),
        jnp.concatenate([wih_e, jnp.zeros((F, Fp), f32)], axis=1),
    ], axis=0).astype(f32)

    def row(v):
        v = jnp.asarray(v, f32).reshape(1, -1)
        return jnp.pad(v, ((0, 0), (0, G - v.shape[1])))

    vec_slab = jnp.concatenate([
        row(b_e), row(wih_d),
        row(params["W2"][0]),            # attn 2nd-layer weight
        row(params["fc_W"][0, :H]),      # fc weight on context
        row(params["fcf_W"][0, :H]),     # fc_final weight on d
        row(params["fcf_W"][0, H:]),     # fc_final weight on context
    ], axis=0)

    # Time-invariant part of encoder attention (+ first-layer bias b1):
    #   bpart[b, f, j] = sum_t X[b, t, f] * W1x[t, j] + b1[j]
    bpart = (jnp.einsum("btf,tj->bfj", seq, w1x)
             + params["b1"][None, None, :]).astype(f32)

    # Context-independent part of the decoder gate input (hoisted to the wrapper so
    # the pipeline DMA overlaps the encoder recurrence); b_fc folded in here.
    wfc_y = params["fc_W"][0, H]
    b_fc = params["fc_b"][0]
    ybase = ((b_fc + seq[:, :, 1] * wfc_y)[:, :, None] * wih_d[None, None, :]
             + b_d[None, None, :]).astype(f32)               # (B, T, G)

    # Time-major staging: per-step loads become ref[t] (sublane/lane-dense tiles).
    seq_tm = jnp.transpose(seq, (1, 0, 2)).astype(f32)       # (T, B, F)
    ybase_tm = jnp.transpose(ybase, (1, 0, 2))               # (T, B, G)

    scal = jnp.array([params["fcf_b"][0]], dtype=f32)

    # ---- batch tiling: fat tiles for large B, legality-clamped, VMEM-budgeted ----
    if batch_tile is None:
        if B <= 8:
            batch_tile = B
        else:
            try:
                kind = jax.devices()[0].device_kind.lower()
            except Exception:
                kind = ""
            cap = 128 if "v5" in kind else 256                   # v5e 128-wide MXU / smaller scoped VMEM
            per_row = 4 * (T * F + F * F + T * G + 128)          # bytes / batch row / buffer copy
            budget_rows = (24 * 1024 * 1024) // (2 * per_row)    # double-buffered blocks <= ~24 MiB
            batch_tile = max(8, min(cap, (budget_rows // 8) * 8))
    if batch_tile >= B:
        batch_tile = B                                           # single block == full dims (legal)
    else:
        batch_tile = max(8, (batch_tile // 8) * 8)               # (8,128) block legality
    Bp = ((B + batch_tile - 1) // batch_tile) * batch_tile

    if Bp != B:  # padded rows are batch-elementwise no-ops and are sliced off below
        pb = Bp - B
        seq_tm = jnp.pad(seq_tm, ((0, 0), (0, pb), (0, 0)))
        bpart = jnp.pad(bpart, ((0, pb), (0, 0), (0, 0)))
        ybase_tm = jnp.pad(ybase_tm, ((0, 0), (0, pb), (0, 0)))

    flops = int(2 * Bp * T * (H * (G + Fp) + H * Fp + F * G + H * G) + 24 * Bp * T * G)
    trans = int(2 * Bp * T * (F * F + F + 6 * H))
    bytes_acc = int(4 * (Bp * T * F + Bp * F * F + Bp * T * G
                         + (3 * H + F) * (G + Fp) + 6 * G + Bp * 128))

    out = pl.pallas_call(
        darnn_att2_kernel,
        out_shape=jax.ShapeDtypeStruct((Bp, 128), f32),
        grid=(Bp // batch_tile,),
        in_specs=[
            pl.BlockSpec(memory_space=pltpu.MemorySpace.SMEM),        # scalars
            pl.BlockSpec((T, batch_tile, F), lambda i: (0, i, 0)),    # seq (time-major)
            pl.BlockSpec((batch_tile, F, F), lambda i: (i, 0, 0)),    # bpart
            pl.BlockSpec((T, batch_tile, G), lambda i: (0, i, 0)),    # ybase (time-major)
            pl.BlockSpec((3 * H + F, G + Fp), lambda i: (0, 0)),      # weight slab
            pl.BlockSpec((6, G), lambda i: (0, 0)),                   # vector slab
        ],
        out_specs=pl.BlockSpec((batch_tile, 128), lambda i: (i, 0)),  # lane-dense output
        compiler_params=pltpu.CompilerParams(
            dimension_semantics=("parallel",),
            vmem_limit_bytes=32 * 1024 * 1024),                       # safe on v7x's 64 MiB VMEM
        cost_estimate=pl.CostEstimate(flops=flops, transcendentals=trans,
                                      bytes_accessed=bytes_acc),
    )(scal, seq_tm, bpart, ybase_tm, w_slab, vec_slab)
    return out[:B, :1]


# ----------------------------------------------------------------------------
# Deterministic parameter init (same shapes as the torch module __init__).
# ----------------------------------------------------------------------------
def init_params(key, F, H, T):
    ks = jax.random.split(key, 16)

    def init(k, shape, scale=0.2):
        return (scale * jax.random.normal(k, shape)).astype(jnp.float32)

    return dict(
        # Encoder attn: Linear(2H + T -> F), Tanh, Linear(F -> 1)
        W1=init(ks[0], (F, 2 * H + T)), b1=init(ks[1], (F,)),
        W2=init(ks[2], (1, F)), b2=init(ks[3], (1,)),
        # Encoder LSTM(input=F, hidden=H)
        Wih_e=init(ks[4], (4 * H, F)), Whh_e=init(ks[5], (4 * H, H)),
        bih_e=init(ks[6], (4 * H,)), bhh_e=init(ks[7], (4 * H,)),
        # Decoder LSTM(input=1, hidden=H)
        Wih_d=init(ks[8], (4 * H, 1)), Whh_d=init(ks[9], (4 * H, H)),
        bih_d=init(ks[10], (4 * H,)), bhh_d=init(ks[11], (4 * H,)),
        # Decoder fc(H+1 -> 1), fc_final(2H -> 1)
        fc_W=init(ks[12], (1, H + 1)), fc_b=init(ks[13], (1,)),
        fcf_W=init(ks[14], (1, 2 * H)), fcf_b=init(ks[15], (1,)),
    )


# ----------------------------------------------------------------------------
# Pure-JAX reference (mirrors the torch forward exactly) for validation.
# ----------------------------------------------------------------------------
def reference_forward(seq, params):
    B, T, F = seq.shape
    H = params["Whh_e"].shape[1]

    def lstm_cell(x, h, c, Wih, Whh, bih, bhh):
        gates = x @ Wih.T + bih + h @ Whh.T + bhh
        i, f, g, o = jnp.split(gates, 4, axis=1)
        i = jax.nn.sigmoid(i); f = jax.nn.sigmoid(f)
        g = jnp.tanh(g); o = jax.nn.sigmoid(o)
        c_new = f * c + i * g
        return o * jnp.tanh(c_new), c_new

    # Encoder (use_att=True)
    h = jnp.zeros((B, H), jnp.float32)
    s = jnp.zeros((B, H), jnp.float32)
    Xp = jnp.transpose(seq, (0, 2, 1))                        # (B, F, T)
    enc = []
    for t in range(T):
        xcat = jnp.concatenate(
            [jnp.broadcast_to(h[:, None, :], (B, F, H)),
             jnp.broadcast_to(s[:, None, :], (B, F, H)),
             Xp], axis=2)                                     # (B, F, 2H + T)
        e = jnp.tanh(xcat @ params["W1"].T + params["b1"]) @ params["W2"].T + params["b2"]
        alpha = jax.nn.softmax(e[..., 0], axis=1)             # (B, F)
        x_tilde = alpha * seq[:, t, :]
        h, s = lstm_cell(x_tilde, h, s, params["Wih_e"], params["Whh_e"],
                         params["bih_e"], params["bhh_e"])
        enc.append(h)
    Henc = jnp.stack(enc, axis=1)                             # (B, T, H)

    # Decoder (use_att=False)
    Y = seq[:, :, 1]
    d = jnp.zeros((B, H), jnp.float32)
    c = jnp.zeros((B, H), jnp.float32)
    context = jnp.mean(Henc, axis=1)
    for t in range(T):
        y_tilde = jnp.concatenate([context, Y[:, t:t + 1]], axis=1) @ params["fc_W"].T + params["fc_b"]
        d, c = lstm_cell(y_tilde, d, c, params["Wih_d"], params["Whh_d"],
                         params["bih_d"], params["bhh_d"])
    return jnp.concatenate([d, context], axis=1) @ params["fcf_W"].T + params["fcf_b"]


if __name__ == "__main__":
    # batch, window_size (= seq len), input_dim (feat_dim), hidden_dim
    B, T, F, H = 2, 8, 4, 32

    key = jax.random.PRNGKey(0)
    kseq, kpar = jax.random.split(key)
    seq = jax.random.normal(kseq, (B, T, F), dtype=jnp.float32)
    params = init_params(kpar, F, H, T)

    fwd = jax.jit(rnn_da_att2_forward)
    out = jax.block_until_ready(fwd(seq, params))

    ref = reference_forward(seq, params)
    assert out.shape == (B, 1), out.shape
    assert jnp.allclose(out, ref, atol=2e-3, rtol=2e-3), (out, ref)
    print("KERNEL_OK")
</pallas_src>

<mosaic_0001>
module attributes {stable_mosaic.version = 11 : i64} {
  func.func @darnn_att2_kernel(%arg0: i32, %arg1: memref<1xf32, #tpu.memory_space<smem>>, %arg2: memref<8x2x4xf32, #tpu.memory_space<vmem>>, %arg3: memref<2x4x4xf32, #tpu.memory_space<vmem>>, %arg4: memref<8x2x128xf32, #tpu.memory_space<vmem>>, %arg5: memref<100x256xf32, #tpu.memory_space<vmem>>, %arg6: memref<6x128xf32, #tpu.memory_space<vmem>>, %arg7: memref<2x128xf32, #tpu.memory_space<vmem>>) attributes {dimension_semantics = [#tpu.dimension_semantics<parallel>], iteration_bounds = array<i64: 1>, scalar_prefetch = 0 : i64, scratch_operands = 0 : i64, tpu.core_type = #tpu.core_type<tc>, window_params = [{transform_indices = @transform_0, window_bounds = array<i64: 1>}, {transform_indices = @transform_1, window_bounds = array<i64: 8, 2, 4>}, {transform_indices = @transform_2, window_bounds = array<i64: 2, 4, 4>}, {transform_indices = @transform_3, window_bounds = array<i64: 8, 2, 128>}, {pipeline_mode = #tpu.pipeline_mode<synchronous>, transform_indices = @transform_4, window_bounds = array<i64: 100, 256>}, {pipeline_mode = #tpu.pipeline_mode<synchronous>, transform_indices = @transform_5, window_bounds = array<i64: 6, 128>}, {transform_indices = @transform_6, window_bounds = array<i64: 2, 128>}]} {
    %c0 = arith.constant 0 : index
    %0 = memref.load %arg1[%c0] : memref<1xf32, #tpu.memory_space<smem>>
    %c0_0 = arith.constant 0 : index
    %c0_1 = arith.constant 0 : index
    %1 = vector.load %arg5[%c0_0, %c0_1] : memref<100x256xf32, #tpu.memory_space<vmem>>, vector<32x256xf32>
    %c32 = arith.constant 32 : index
    %c0_2 = arith.constant 0 : index
    %2 = vector.load %arg5[%c32, %c0_2] : memref<100x256xf32, #tpu.memory_space<vmem>>, vector<32x128xf32>
    %c64 = arith.constant 64 : index
    %c0_3 = arith.constant 0 : index
    %3 = vector.load %arg5[%c64, %c0_3] : memref<100x256xf32, #tpu.memory_space<vmem>>, vector<32x128xf32>
    %c96 = arith.constant 96 : index
    %c0_4 = arith.constant 0 : index
    %4 = vector.load %arg5[%c96, %c0_4] : memref<100x256xf32, #tpu.memory_space<vmem>>, vector<4x128xf32>
    %c0_5 = arith.constant 0 : index
    %c0_6 = arith.constant 0 : index
    %5 = vector.load %arg6[%c0_5, %c0_6] : memref<6x128xf32, #tpu.memory_space<vmem>>, vector<1x128xf32>
    %c1 = arith.constant 1 : index
    %c0_7 = arith.constant 0 : index
    %6 = vector.load %arg6[%c1, %c0_7] : memref<6x128xf32, #tpu.memory_space<vmem>>, vector<1x128xf32>
    %c2 = arith.constant 2 : index
    %c0_8 = arith.constant 0 : index
    %7 = vector.load %arg6[%c2, %c0_8] : memref<6x128xf32, #tpu.memory_space<vmem>>, vector<1x4xf32>
    %8 = vector.shape_cast %7 : vector<1x4xf32> to vector<1x1x4xf32>
    %c3 = arith.constant 3 : index
    %c0_9 = arith.constant 0 : index
    %9 = vector.load %arg6[%c3, %c0_9] : memref<6x128xf32, #tpu.memory_space<vmem>>, vector<1x32xf32>
    %c4 = arith.constant 4 : index
    %c0_10 = arith.constant 0 : index
    %10 = vector.load %arg6[%c4, %c0_10] : memref<6x128xf32, #tpu.memory_space<vmem>>, vector<1x32xf32>
    %c5 = arith.constant 5 : index
    %c0_11 = arith.constant 0 : index
    %11 = vector.load %arg6[%c5, %c0_11] : memref<6x128xf32, #tpu.memory_space<vmem>>, vector<1x32xf32>
    %c0_12 = arith.constant 0 : index
    %c0_13 = arith.constant 0 : index
    %c0_14 = arith.constant 0 : index
    %12 = vector.load %arg3[%c0_12, %c0_13, %c0_14] : memref<2x4x4xf32, #tpu.memory_space<vmem>>, vector<2x4x4xf32>
    %cst = arith.constant 0.000000e+00 : f32
    %13 = vector.broadcast %cst : f32 to vector<2x32xf32>
    %c0_i32 = arith.constant 0 : i32
    %cst_15 = arith.constant dense<0.000000e+00> : vector<2x256xf32>
    %14 = tpu.matmul %13, %1, %cst_15 {dimension_numbers = #tpu.dot_dimension_numbers<[1], [0], [0], [1], [0, 0, 1, 1], [], []>} : vector<2x32xf32>, vector<32x256xf32>, vector<2x256xf32> -> vector<2x256xf32>
    %cst_16 = arith.constant dense<0.000000e+00> : vector<2x128xf32>
    %15 = tpu.matmul %13, %2, %cst_16 {dimension_numbers = #tpu.dot_dimension_numbers<[1], [0], [0], [1], [0, 0, 1, 1], [], []>} : vector<2x32xf32>, vector<32x128xf32>, vector<2x128xf32> -> vector<2x128xf32>
    %16 = vector.extract_strided_slice %14 {offsets = [0, 0], sizes = [2, 128], strides = [1, 1]} : vector<2x256xf32> to vector<2x128xf32>
    %17 = vector.extract_strided_slice %14 {offsets = [0, 128], sizes = [2, 4], strides = [1, 1]} : vector<2x256xf32> to vector<2x4xf32>
    %18 = vector.extract_strided_slice %15 {offsets = [0, 0], sizes = [2, 4], strides = [1, 1]} : vector<2x128xf32> to vector<2x4xf32>
    %19 = arith.addf %17, %18 : vector<2x4xf32>
    %20 = vector.shape_cast %19 : vector<2x4xf32> to vector<2x1x4xf32>
    %21 = vector.broadcast %20 : vector<2x1x4xf32> to vector<2x4x4xf32>
    %22 = arith.addf %21, %12 : vector<2x4x4xf32>
    %23 = math.tanh %22 : vector<2x4x4xf32>
    %24 = vector.broadcast %8 : vector<1x1x4xf32> to vector<2x4x4xf32>
    %25 = arith.mulf %23, %24 : vector<2x4x4xf32>
    %cst_17 = arith.constant dense<0.000000e+00> : vector<2x4xf32>
    %26 = vector.multi_reduction <add>, %25, %cst_17 [2] : vector<2x4x4xf32> to vector<2x4xf32>
    %cst_18 = arith.constant dense<0xFF800000> : vector<2xf32>
    %27 = vector.multi_reduction <maximumf>, %26, %cst_18 [1] : vector<2x4xf32> to vector<2xf32>
    %28 = vector.shape_cast %27 : vector<2xf32> to vector<2x1xf32>
    %29 = vector.broadcast %28 : vector<2x1xf32> to vector<2x4xf32>
    %30 = arith.subf %26, %29 : vector<2x4xf32>
    %31 = math.exp %30 : vector<2x4xf32>
    %cst_19 = arith.constant dense<0.000000e+00> : vector<2xf32>
    %32 = vector.multi_reduction <add>, %31, %cst_19 [1] : vector<2x4xf32> to vector<2xf32>
    %33 = vector.shape_cast %32 : vector<2xf32> to vector<2x1xf32>
    %34 = tpu.reciprocal %33 : vector<2x1xf32> -> vector<2x1xf32>
    %35 = vector.broadcast %34 : vector<2x1xf32> to vector<2x4xf32>
    %36 = arith.mulf %31, %35 : vector<2x4xf32>
    %37 = arith.index_cast %c0_i32 : i32 to index
    %c0_20 = arith.constant 0 : index
    %c0_21 = arith.constant 0 : index
    %38 = vector.load %arg2[%37, %c0_20, %c0_21] : memref<8x2x4xf32, #tpu.memory_space<vmem>>, vector<1x2x4xf32>
    %39 = vector.shape_cast %38 : vector<1x2x4xf32> to vector<2x4xf32>
    %40 = arith.mulf %36, %39 : vector<2x4xf32>
    %41 = vector.broadcast %5 : vector<1x128xf32> to vector<2x128xf32>
    %42 = arith.addf %16, %41 : vector<2x128xf32>
    %cst_22 = arith.constant dense<0.000000e+00> : vector<2x128xf32>
    %43 = tpu.matmul %40, %4, %cst_22 {dimension_numbers = #tpu.dot_dimension_numbers<[1], [0], [0], [1], [0, 0, 1, 1], [], []>} : vector<2x4xf32>, vector<4x128xf32>, vector<2x128xf32> -> vector<2x128xf32>
    %44 = arith.addf %42, %43 : vector<2x128xf32>
    %45 = vector.extract_strided_slice %44 {offsets = [0, 0], sizes = [2, 96], strides = [1, 1]} : vector<2x128xf32> to vector<2x96xf32>
    %46 = arith.negf %45 : vector<2x96xf32>
    %47 = math.exp %46 : vector<2x96xf32>
    %cst_23 = arith.constant 1.000000e+00 : f32
    %48 = vector.broadcast %cst_23 : f32 to vector<2x96xf32>
    %49 = arith.addf %48, %47 : vector<2x96xf32>
    %50 = arith.divf %48, %49 : vector<2x96xf32>
    %51 = vector.extract_strided_slice %44 {offsets = [0, 96], sizes = [2, 32], strides = [1, 1]} : vector<2x128xf32> to vector<2x32xf32>
    %52 = math.tanh %51 : vector<2x32xf32>
    %53 = vector.extract_strided_slice %50 {offsets = [0, 32], sizes = [2, 32], strides = [1, 1]} : vector<2x96xf32> to vector<2x32xf32>
    %54 = arith.mulf %53, %13 : vector<2x32xf32>
    %55 = vector.extract_strided_slice %50 {offsets = [0, 0], sizes = [2, 32], strides = [1, 1]} : vector<2x96xf32> to vector<2x32xf32>
    %56 = arith.mulf %55, %52 : vector<2x32xf32>
    %57 = arith.addf %54, %56 : vector<2x32xf32>
    %58 = vector.extract_strided_slice %50 {offsets = [0, 64], sizes = [2, 32], strides = [1, 1]} : vector<2x96xf32> to vector<2x32xf32>
    %59 = math.tanh %57 : vector<2x32xf32>
    %60 = arith.mulf %58, %59 : vector<2x32xf32>
    %61 = arith.addf %13, %60 : vector<2x32xf32>
    %c1_i32 = arith.constant 1 : i32
    %cst_24 = arith.constant dense<0.000000e+00> : vector<2x256xf32>
    %62 = tpu.matmul %60, %1, %cst_24 {dimension_numbers = #tpu.dot_dimension_numbers<[1], [0], [0], [1], [0, 0, 1, 1], [], []>} : vector<2x32xf32>, vector<32x256xf32>, vector<2x256xf32> -> vector<2x256xf32>
    %cst_25 = arith.constant dense<0.000000e+00> : vector<2x128xf32>
    %63 = tpu.matmul %57, %2, %cst_25 {dimension_numbers = #tpu.dot_dimension_numbers<[1], [0], [0], [1], [0, 0, 1, 1], [], []>} : vector<2x32xf32>, vector<32x128xf32>, vector<2x128xf32> -> vector<2x128xf32>
    %64 = vector.extract_strided_slice %62 {offsets = [0, 0], sizes = [2, 128], strides = [1, 1]} : vector<2x256xf32> to vector<2x128xf32>
    %65 = vector.extract_strided_slice %62 {offsets = [0, 128], sizes = [2, 4], strides = [1, 1]} : vector<2x256xf32> to vector<2x4xf32>
    %66 = vector.extract_strided_slice %63 {offsets = [0, 0], sizes = [2, 4], strides = [1, 1]} : vector<2x128xf32> to vector<2x4xf32>
    %67 = arith.addf %65, %66 : vector<2x4xf32>
    %68 = vector.shape_cast %67 : vector<2x4xf32> to vector<2x1x4xf32>
    %69 = vector.broadcast %68 : vector<2x1x4xf32> to vector<2x4x4xf32>
    %70 = arith.addf %69, %12 : vector<2x4x4xf32>
    %71 = math.tanh %70 : vector<2x4x4xf32>
    %72 = vector.broadcast %8 : vector<1x1x4xf32> to vector<2x4x4xf32>
    %73 = arith.mulf %71, %72 : vector<2x4x4xf32>
    %cst_26 = arith.constant dense<0.000000e+00> : vector<2x4xf32>
    %74 = vector.multi_reduction <add>, %73, %cst_26 [2] : vector<2x4x4xf32> to vector<2x4xf32>
    %cst_27 = arith.constant dense<0xFF800000> : vector<2xf32>
    %75 = vector.multi_reduction <maximumf>, %74, %cst_27 [1] : vector<2x4xf32> to vector<2xf32>
    %76 = vector.shape_cast %75 : vector<2xf32> to vector<2x1xf32>
    %77 = vector.broadcast %76 : vector<2x1xf32> to vector<2x4xf32>
    %78 = arith.subf %74, %77 : vector<2x4xf32>
    %79 = math.exp %78 : vector<2x4xf32>
    %cst_28 = arith.constant dense<0.000000e+00> : vector<2xf32>
    %80 = vector.multi_reduction <add>, %79, %cst_28 [1] : vector<2x4xf32> to vector<2xf32>
    %81 = vector.shape_cast %80 : vector<2xf32> to vector<2x1xf32>
    %82 = tpu.reciprocal %81 : vector<2x1xf32> -> vector<2x1xf32>
    %83 = vector.broadcast %82 : vector<2x1xf32> to vector<2x4xf32>
    %84 = arith.mulf %79, %83 : vector<2x4xf32>
    %85 = arith.index_cast %c1_i32 : i32 to index
    %c0_29 = arith.constant 0 : index
    %c0_30 = arith.constant 0 : index
    %86 = vector.load %arg2[%85, %c0_29, %c0_30] : memref<8x2x4xf32, #tpu.memory_space<vmem>>, vector<1x2x4xf32>
    %87 = vector.shape_cast %86 : vector<1x2x4xf32> to vector<2x4xf32>
    %88 = arith.mulf %84, %87 : vector<2x4xf32>
    %89 = vector.broadcast %5 : vector<1x128xf32> to vector<2x128xf32>
    %90 = arith.addf %64, %89 : vector<2x128xf32>
    %cst_31 = arith.constant dense<0.000000e+00> : vector<2x128xf32>
    %91 = tpu.matmul %88, %4, %cst_31 {dimension_numbers = #tpu.dot_dimension_numbers<[1], [0], [0], [1], [0, 0, 1, 1], [], []>} : vector<2x4xf32>, vector<4x128xf32>, vector<2x128xf32> -> vector<2x128xf32>
    %92 = arith.addf %90, %91 : vector<2x128xf32>
    %93 = vector.extract_strided_slice %92 {offsets = [0, 0], sizes = [2, 96], strides = [1, 1]} : vector<2x128xf32> to vector<2x96xf32>
    %94 = arith.negf %93 : vector<2x96xf32>
    %95 = math.exp %94 : vector<2x96xf32>
    %cst_32 = arith.constant 1.000000e+00 : f32
    %96 = vector.broadcast %cst_32 : f32 to vector<2x96xf32>
    %97 = arith.addf %96, %95 : vector<2x96xf32>
    %98 = arith.divf %96, %97 : vector<2x96xf32>
    %99 = vector.extract_strided_slice %92 {offsets = [0, 96], sizes = [2, 32], strides = [1, 1]} : vector<2x128xf32> to vector<2x32xf32>
    %100 = math.tanh %99 : vector<2x32xf32>
    %101 = vector.extract_strided_slice %98 {offsets = [0, 32], sizes = [2, 32], strides = [1, 1]} : vector<2x96xf32> to vector<2x32xf32>
    %102 = arith.mulf %101, %57 : vector<2x32xf32>
    %103 = vector.extract_strided_slice %98 {offsets = [0, 0], sizes = [2, 32], strides = [1, 1]} : vector<2x96xf32> to vector<2x32xf32>
    %104 = arith.mulf %103, %100 : vector<2x32xf32>
    %105 = arith.addf %102, %104 : vector<2x32xf32>
    %106 = vector.extract_strided_slice %98 {offsets = [0, 64], sizes = [2, 32], strides = [1, 1]} : vector<2x96xf32> to vector<2x32xf32>
    %107 = math.tanh %105 : vector<2x32xf32>
    %108 = arith.mulf %106, %107 : vector<2x32xf32>
    %109 = arith.addf %61, %108 : vector<2x32xf32>
    %c2_i32 = arith.constant 2 : i32
    %cst_33 = arith.constant dense<0.000000e+00> : vector<2x256xf32>
    %110 = tpu.matmul %108, %1, %cst_33 {dimension_numbers = #tpu.dot_dimension_numbers<[1], [0], [0], [1], [0, 0, 1, 1], [], []>} : vector<2x32xf32>, vector<32x256xf32>, vector<2x256xf32> -> vector<2x256xf32>
    %cst_34 = arith.constant dense<0.000000e+00> : vector<2x128xf32>
    %111 = tpu.matmul %105, %2, %cst_34 {dimension_numbers = #tpu.dot_dimension_numbers<[1], [0], [0], [1], [0, 0, 1, 1], [], []>} : vector<2x32xf32>, vector<32x128xf32>, vector<2x128xf32> -> vector<2x128xf32>
    %112 = vector.extract_strided_slice %110 {offsets = [0, 0], sizes = [2, 128], strides = [1, 1]} : vector<2x256xf32> to vector<2x128xf32>
    %113 = vector.extract_strided_slice %110 {offsets = [0, 128], sizes = [2, 4], strides = [1, 1]} : vector<2x256xf32> to vector<2x4xf32>
    %114 = vector.extract_strided_slice %111 {offsets = [0, 0], sizes = [2, 4], strides = [1, 1]} : vector<2x128xf32> to vector<2x4xf32>
    %115 = arith.addf %113, %114 : vector<2x4xf32>
    %116 = vector.shape_cast %115 : vector<2x4xf32> to vector<2x1x4xf32>
    %117 = vector.broadcast %116 : vector<2x1x4xf32> to vector<2x4x4xf32>
    %118 = arith.addf %117, %12 : vector<2x4x4xf32>
    %119 = math.tanh %118 : vector<2x4x4xf32>
    %120 = vector.broadcast %8 : vector<1x1x4xf32> to vector<2x4x4xf32>
    %121 = arith.mulf %119, %120 : vector<2x4x4xf32>
    %cst_35 = arith.constant dense<0.000000e+00> : vector<2x4xf32>
    %122 = vector.multi_reduction <add>, %121, %cst_35 [2] : vector<2x4x4xf32> to vector<2x4xf32>
    %cst_36 = arith.constant dense<0xFF800000> : vector<2xf32>
    %123 = vector.multi_reduction <maximumf>, %122, %cst_36 [1] : vector<2x4xf32> to vector<2xf32>
    %124 = vector.shape_cast %123 : vector<2xf32> to vector<2x1xf32>
    %125 = vector.broadcast %124 : vector<2x1xf32> to vector<2x4xf32>
    %126 = arith.subf %122, %125 : vector<2x4xf32>
    %127 = math.exp %126 : vector<2x4xf32>
    %cst_37 = arith.constant dense<0.000000e+00> : vector<2xf32>
    %128 = vector.multi_reduction <add>, %127, %cst_37 [1] : vector<2x4xf32> to vector<2xf32>
    %129 = vector.shape_cast %128 : vector<2xf32> to vector<2x1xf32>
    %130 = tpu.reciprocal %129 : vector<2x1xf32> -> vector<2x1xf32>
    %131 = vector.broadcast %130 : vector<2x1xf32> to vector<2x4xf32>
    %132 = arith.mulf %127, %131 : vector<2x4xf32>
    %133 = arith.index_cast %c2_i32 : i32 to index
    %c0_38 = arith.constant 0 : index
    %c0_39 = arith.constant 0 : index
    %134 = vector.load %arg2[%133, %c0_38, %c0_39] : memref<8x2x4xf32, #tpu.memory_space<vmem>>, vector<1x2x4xf32>
    %135 = vector.shape_cast %134 : vector<1x2x4xf32> to vector<2x4xf32>
    %136 = arith.mulf %132, %135 : vector<2x4xf32>
    %137 = vector.broadcast %5 : vector<1x128xf32> to vector<2x128xf32>
    %138 = arith.addf %112, %137 : vector<2x128xf32>
    %cst_40 = arith.constant dense<0.000000e+00> : vector<2x128xf32>
    %139 = tpu.matmul %136, %4, %cst_40 {dimension_numbers = #tpu.dot_dimension_numbers<[1], [0], [0], [1], [0, 0, 1, 1], [], []>} : vector<2x4xf32>, vector<4x128xf32>, vector<2x128xf32> -> vector<2x128xf32>
    %140 = arith.addf %138, %139 : vector<2x128xf32>
    %141 = vector.extract_strided_slice %140 {offsets = [0, 0], sizes = [2, 96], strides = [1, 1]} : vector<2x128xf32> to vector<2x96xf32>
    %142 = arith.negf %141 : vector<2x96xf32>
    %143 = math.exp %142 : vector<2x96xf32>
    %cst_41 = arith.constant 1.000000e+00 : f32
    %144 = vector.broadcast %cst_41 : f32 to vector<2x96xf32>
    %145 = arith.addf %144, %143 : vector<2x96xf32>
    %146 = arith.divf %144, %145 : vector<2x96xf32>
    %147 = vector.extract_strided_slice %140 {offsets = [0, 96], sizes = [2, 32], strides = [1, 1]} : vector<2x128xf32> to vector<2x32xf32>
    %148 = math.tanh %147 : vector<2x32xf32>
    %149 = vector.extract_strided_slice %146 {offsets = [0, 32], sizes = [2, 32], strides = [1, 1]} : vector<2x96xf32> to vector<2x32xf32>
    %150 = arith.mulf %149, %105 : vector<2x32xf32>
    %151 = vector.extract_strided_slice %146 {offsets = [0, 0], sizes = [2, 32], strides = [1, 1]} : vector<2x96xf32> to vector<2x32xf32>
    %152 = arith.mulf %151, %148 : vector<2x32xf32>
    %153 = arith.addf %150, %152 : vector<2x32xf32>
    %154 = vector.extract_strided_slice %146 {offsets = [0, 64], sizes = [2, 32], strides = [1, 1]} : vector<2x96xf32> to vector<2x32xf32>
    %155 = math.tanh %153 : vector<2x32xf32>
    %156 = arith.mulf %154, %155 : vector<2x32xf32>
    %157 = arith.addf %109, %156 : vector<2x32xf32>
    %c3_i32 = arith.constant 3 : i32
    %cst_42 = arith.constant dense<0.000000e+00> : vector<2x256xf32>
    %158 = tpu.matmul %156, %1, %cst_42 {dimension_numbers = #tpu.dot_dimension_numbers<[1], [0], [0], [1], [0, 0, 1, 1], [], []>} : vector<2x32xf32>, vector<32x256xf32>, vector<2x256xf32> -> vector<2x256xf32>
    %cst_43 = arith.constant dense<0.000000e+00> : vector<2x128xf32>
    %159 = tpu.matmul %153, %2, %cst_43 {dimension_numbers = #tpu.dot_dimension_numbers<[1], [0], [0], [1], [0, 0, 1, 1], [], []>} : vector<2x32xf32>, vector<32x128xf32>, vector<2x128xf32> -> vector<2x128xf32>
    %160 = vector.extract_strided_slice %158 {offsets = [0, 0], sizes = [2, 128], strides = [1, 1]} : vector<2x256xf32> to vector<2x128xf32>
    %161 = vector.extract_strided_slice %158 {offsets = [0, 128], sizes = [2, 4], strides = [1, 1]} : vector<2x256xf32> to vector<2x4xf32>
    %162 = vector.extract_strided_slice %159 {offsets = [0, 0], sizes = [2, 4], strides = [1, 1]} : vector<2x128xf32> to vector<2x4xf32>
    %163 = arith.addf %161, %162 : vector<2x4xf32>
    %164 = vector.shape_cast %163 : vector<2x4xf32> to vector<2x1x4xf32>
    %165 = vector.broadcast %164 : vector<2x1x4xf32> to vector<2x4x4xf32>
    %166 = arith.addf %165, %12 : vector<2x4x4xf32>
    %167 = math.tanh %166 : vector<2x4x4xf32>
    %168 = vector.broadcast %8 : vector<1x1x4xf32> to vector<2x4x4xf32>
    %169 = arith.mulf %167, %168 : vector<2x4x4xf32>
    %cst_44 = arith.constant dense<0.000000e+00> : vector<2x4xf32>
    %170 = vector.multi_reduction <add>, %169, %cst_44 [2] : vector<2x4x4xf32> to vector<2x4xf32>
    %cst_45 = arith.constant dense<0xFF800000> : vector<2xf32>
    %171 = vector.multi_reduction <maximumf>, %170, %cst_45 [1] : vector<2x4xf32> to vector<2xf32>
    %172 = vector.shape_cast %171 : vector<2xf32> to vector<2x1xf32>
    %173 = vector.broadcast %172 : vector<2x1xf32> to vector<2x4xf32>
    %174 = arith.subf %170, %173 : vector<2x4xf32>
    %175 = math.exp %174 : vector<2x4xf32>
    %cst_46 = arith.constant dense<0.000000e+00> : vector<2xf32>
    %176 = vector.multi_reduction <add>, %175, %cst_46 [1] : vector<2x4xf32> to vector<2xf32>
    %177 = vector.shape_cast %176 : vector<2xf32> to vector<2x1xf32>
    %178 = tpu.reciprocal %177 : vector<2x1xf32> -> vector<2x1xf32>
    %179 = vector.broadcast %178 : vector<2x1xf32> to vector<2x4xf32>
    %180 = arith.mulf %175, %179 : vector<2x4xf32>
    %181 = arith.index_cast %c3_i32 : i32 to index
    %c0_47 = arith.constant 0 : index
    %c0_48 = arith.constant 0 : index
    %182 = vector.load %arg2[%181, %c0_47, %c0_48] : memref<8x2x4xf32, #tpu.memory_space<vmem>>, vector<1x2x4xf32>
    %183 = vector.shape_cast %182 : vector<1x2x4xf32> to vector<2x4xf32>
    %184 = arith.mulf %180, %183 : vector<2x4xf32>
    %185 = vector.broadcast %5 : vector<1x128xf32> to vector<2x128xf32>
    %186 = arith.addf %160, %185 : vector<2x128xf32>
    %cst_49 = arith.constant dense<0.000000e+00> : vector<2x128xf32>
    %187 = tpu.matmul %184, %4, %cst_49 {dimension_numbers = #tpu.dot_dimension_numbers<[1], [0], [0], [1], [0, 0, 1, 1], [], []>} : vector<2x4xf32>, vector<4x128xf32>, vector<2x128xf32> -> vector<2x128xf32>
    %188 = arith.addf %186, %187 : vector<2x128xf32>
    %189 = vector.extract_strided_slice %188 {offsets = [0, 0], sizes = [2, 96], strides = [1, 1]} : vector<2x128xf32> to vector<2x96xf32>
    %190 = arith.negf %189 : vector<2x96xf32>
    %191 = math.exp %190 : vector<2x96xf32>
    %cst_50 = arith.constant 1.000000e+00 : f32
    %192 = vector.broadcast %cst_50 : f32 to vector<2x96xf32>
    %193 = arith.addf %192, %191 : vector<2x96xf32>
    %194 = arith.divf %192, %193 : vector<2x96xf32>
    %195 = vector.extract_strided_slice %188 {offsets = [0, 96], sizes = [2, 32], strides = [1, 1]} : vector<2x128xf32> to vector<2x32xf32>
    %196 = math.tanh %195 : vector<2x32xf32>
    %197 = vector.extract_strided_slice %194 {offsets = [0, 32], sizes = [2, 32], strides = [1, 1]} : vector<2x96xf32> to vector<2x32xf32>
    %198 = arith.mulf %197, %153 : vector<2x32xf32>
    %199 = vector.extract_strided_slice %194 {offsets = [0, 0], sizes = [2, 32], strides = [1, 1]} : vector<2x96xf32> to vector<2x32xf32>
    %200 = arith.mulf %199, %196 : vector<2x32xf32>
    %201 = arith.addf %198, %200 : vector<2x32xf32>
    %202 = vector.extract_strided_slice %194 {offsets = [0, 64], sizes = [2, 32], strides = [1, 1]} : vector<2x96xf32> to vector<2x32xf32>
    %203 = math.tanh %201 : vector<2x32xf32>
    %204 = arith.mulf %202, %203 : vector<2x32xf32>
    %205 = arith.addf %157, %204 : vector<2x32xf32>
    %c4_i32 = arith.constant 4 : i32
    %cst_51 = arith.constant dense<0.000000e+00> : vector<2x256xf32>
    %206 = tpu.matmul %204, %1, %cst_51 {dimension_numbers = #tpu.dot_dimension_numbers<[1], [0], [0], [1], [0, 0, 1, 1], [], []>} : vector<2x32xf32>, vector<32x256xf32>, vector<2x256xf32> -> vector<2x256xf32>
    %cst_52 = arith.constant dense<0.000000e+00> : vector<2x128xf32>
    %207 = tpu.matmul %201, %2, %cst_52 {dimension_numbers = #tpu.dot_dimension_numbers<[1], [0], [0], [1], [0, 0, 1, 1], [], []>} : vector<2x32xf32>, vector<32x128xf32>, vector<2x128xf32> -> vector<2x128xf32>
    %208 = vector.extract_strided_slice %206 {offsets = [0, 0], sizes = [2, 128], strides = [1, 1]} : vector<2x256xf32> to vector<2x128xf32>
    %209 = vector.extract_strided_slice %206 {offsets = [0, 128], sizes = [2, 4], strides = [1, 1]} : vector<2x256xf32> to vector<2x4xf32>
    %210 = vector.extract_strided_slice %207 {offsets = [0, 0], sizes = [2, 4], strides = [1, 1]} : vector<2x128xf32> to vector<2x4xf32>
    %211 = arith.addf %209, %210 : vector<2x4xf32>
    %212 = vector.shape_cast %211 : vector<2x4xf32> to vector<2x1x4xf32>
    %213 = vector.broadcast %212 : vector<2x1x4xf32> to vector<2x4x4xf32>
    %214 = arith.addf %213, %12 : vector<2x4x4xf32>
    %215 = math.tanh %214 : vector<2x4x4xf32>
    %216 = vector.broadcast %8 : vector<1x1x4xf32> to vector<2x4x4xf32>
    %217 = arith.mulf %215, %216 : vector<2x4x4xf32>
    %cst_53 = arith.constant dense<0.000000e+00> : vector<2x4xf32>
    %218 = vector.multi_reduction <add>, %217, %cst_53 [2] : vector<2x4x4xf32> to vector<2x4xf32>
    %cst_54 = arith.constant dense<0xFF800000> : vector<2xf32>
    %219 = vector.multi_reduction <maximumf>, %218, %cst_54 [1] : vector<2x4xf32> to vector<2xf32>
    %220 = vector.shape_cast %219 : vector<2xf32> to vector<2x1xf32>
    %221 = vector.broadcast %220 : vector<2x1xf32> to vector<2x4xf32>
    %222 = arith.subf %218, %221 : vector<2x4xf32>
    %223 = math.exp %222 : vector<2x4xf32>
    %cst_55 = arith.constant dense<0.000000e+00> : vector<2xf32>
    %224 = vector.multi_reduction <add>, %223, %cst_55 [1] : vector<2x4xf32> to vector<2xf32>
    %225 = vector.shape_cast %224 : vector<2xf32> to vector<2x1xf32>
    %226 = tpu.reciprocal %225 : vector<2x1xf32> -> vector<2x1xf32>
    %227 = vector.broadcast %226 : vector<2x1xf32> to vector<2x4xf32>
    %228 = arith.mulf %223, %227 : vector<2x4xf32>
    %229 = arith.index_cast %c4_i32 : i32 to index
    %c0_56 = arith.constant 0 : index
    %c0_57 = arith.constant 0 : index
    %230 = vector.load %arg2[%229, %c0_56, %c0_57] : memref<8x2x4xf32, #tpu.memory_space<vmem>>, vector<1x2x4xf32>
    %231 = vector.shape_cast %230 : vector<1x2x4xf32> to vector<2x4xf32>
    %232 = arith.mulf %228, %231 : vector<2x4xf32>
    %233 = vector.broadcast %5 : vector<1x128xf32> to vector<2x128xf32>
    %234 = arith.addf %208, %233 : vector<2x128xf32>
    %cst_58 = arith.constant dense<0.000000e+00> : vector<2x128xf32>
    %235 = tpu.matmul %232, %4, %cst_58 {dimension_numbers = #tpu.dot_dimension_numbers<[1], [0], [0], [1], [0, 0, 1, 1], [], []>} : vector<2x4xf32>, vector<4x128xf32>, vector<2x128xf32> -> vector<2x128xf32>
    %236 = arith.addf %234, %235 : vector<2x128xf32>
    %237 = vector.extract_strided_slice %236 {offsets = [0, 0], sizes = [2, 96], strides = [1, 1]} : vector<2x128xf32> to vector<2x96xf32>
    %238 = arith.negf %237 : vector<2x96xf32>
    %239 = math.exp %238 : vector<2x96xf32>
    %cst_59 = arith.constant 1.000000e+00 : f32
    %240 = vector.broadcast %cst_59 : f32 to vector<2x96xf32>
    %241 = arith.addf %240, %239 : vector<2x96xf32>
    %242 = arith.divf %240, %241 : vector<2x96xf32>
    %243 = vector.extract_strided_slice %236 {offsets = [0, 96], sizes = [2, 32], strides = [1, 1]} : vector<2x128xf32> to vector<2x32xf32>
    %244 = math.tanh %243 : vector<2x32xf32>
    %245 = vector.extract_strided_slice %242 {offsets = [0, 32], sizes = [2, 32], strides = [1, 1]} : vector<2x96xf32> to vector<2x32xf32>
    %246 = arith.mulf %245, %201 : vector<2x32xf32>
    %247 = vector.extract_strided_slice %242 {offsets = [0, 0], sizes = [2, 32], strides = [1, 1]} : vector<2x96xf32> to vector<2x32xf32>
    %248 = arith.mulf %247, %244 : vector<2x32xf32>
    %249 = arith.addf %246, %248 : vector<2x32xf32>
    %250 = vector.extract_strided_slice %242 {offsets = [0, 64], sizes = [2, 32], strides = [1, 1]} : vector<2x96xf32> to vector<2x32xf32>
    %251 = math.tanh %249 : vector<2x32xf32>
    %252 = arith.mulf %250, %251 : vector<2x32xf32>
    %253 = arith.addf %205, %252 : vector<2x32xf32>
    %c5_i32 = arith.constant 5 : i32
    %cst_60 = arith.constant dense<0.000000e+00> : vector<2x256xf32>
    %254 = tpu.matmul %252, %1, %cst_60 {dimension_numbers = #tpu.dot_dimension_numbers<[1], [0], [0], [1], [0, 0, 1, 1], [], []>} : vector<2x32xf32>, vector<32x256xf32>, vector<2x256xf32> -> vector<2x256xf32>
    %cst_61 = arith.constant dense<0.000000e+00> : vector<2x128xf32>
    %255 = tpu.matmul %249, %2, %cst_61 {dimension_numbers = #tpu.dot_dimension_numbers<[1], [0], [0], [1], [0, 0, 1, 1], [], []>} : vector<2x32xf32>, vector<32x128xf32>, vector<2x128xf32> -> vector<2x128xf32>
    %256 = vector.extract_strided_slice %254 {offsets = [0, 0], sizes = [2, 128], strides = [1, 1]} : vector<2x256xf32> to vector<2x128xf32>
    %257 = vector.extract_strided_slice %254 {offsets = [0, 128], sizes = [2, 4], strides = [1, 1]} : vector<2x256xf32> to vector<2x4xf32>
    %258 = vector.extract_strided_slice %255 {offsets = [0, 0], sizes = [2, 4], strides = [1, 1]} : vector<2x128xf32> to vector<2x4xf32>
    %259 = arith.addf %257, %258 : vector<2x4xf32>
    %260 = vector.shape_cast %259 : vector<2x4xf32> to vector<2x1x4xf32>
    %261 = vector.broadcast %260 : vector<2x1x4xf32> to vector<2x4x4xf32>
    %262 = arith.addf %261, %12 : vector<2x4x4xf32>
    %263 = math.tanh %262 : vector<2x4x4xf32>
    %264 = vector.broadcast %8 : vector<1x1x4xf32> to vector<2x4x4xf32>
    %265 = arith.mulf %263, %264 : vector<2x4x4xf32>
    %cst_62 = arith.constant dense<0.000000e+00> : vector<2x4xf32>
    %266 = vector.multi_reduction <add>, %265, %cst_62 [2] : vector<2x4x4xf32> to vector<2x4xf32>
    %cst_63 = arith.constant dense<0xFF800000> : vector<2xf32>
    %267 = vector.multi_reduction <maximumf>, %266, %cst_63 [1] : vector<2x4xf32> to vector<2xf32>
    %268 = vector.shape_cast %267 : vector<2xf32> to vector<2x1xf32>
    %269 = vector.broadcast %268 : vector<2x1xf32> to vector<2x4xf32>
    %270 = arith.subf %266, %269 : vector<2x4xf32>
    %271 = math.exp %270 : vector<2x4xf32>
    %cst_64 = arith.constant dense<0.000000e+00> : vector<2xf32>
    %272 = vector.multi_reduction <add>, %271, %cst_64 [1] : vector<2x4xf32> to vector<2xf32>
    %273 = vector.shape_cast %272 : vector<2xf32> to vector<2x1xf32>
    %274 = tpu.reciprocal %273 : vector<2x1xf32> -> vector<2x1xf32>
    %275 = vector.broadcast %274 : vector<2x1xf32> to vector<2x4xf32>
    %276 = arith.mulf %271, %275 : vector<2x4xf32>
    %277 = arith.index_cast %c5_i32 : i32 to index
    %c0_65 = arith.constant 0 : index
    %c0_66 = arith.constant 0 : index
    %278 = vector.load %arg2[%277, %c0_65, %c0_66] : memref<8x2x4xf32, #tpu.memory_space<vmem>>, vector<1x2x4xf32>
    %279 = vector.shape_cast %278 : vector<1x2x4xf32> to vector<2x4xf32>
    %280 = arith.mulf %276, %279 : vector<2x4xf32>
    %281 = vector.broadcast %5 : vector<1x128xf32> to vector<2x128xf32>
    %282 = arith.addf %256, %281 : vector<2x128xf32>
    %cst_67 = arith.constant dense<0.000000e+00> : vector<2x128xf32>
    %283 = tpu.matmul %280, %4, %cst_67 {dimension_numbers = #tpu.dot_dimension_numbers<[1], [0], [0], [1], [0, 0, 1, 1], [], []>} : vector<2x4xf32>, vector<4x128xf32>, vector<2x128xf32> -> vector<2x128xf32>
    %284 = arith.addf %282, %283 : vector<2x128xf32>
    %285 = vector.extract_strided_slice %284 {offsets = [0, 0], sizes = [2, 96], strides = [1, 1]} : vector<2x128xf32> to vector<2x96xf32>
    %286 = arith.negf %285 : vector<2x96xf32>
    %287 = math.exp %286 : vector<2x96xf32>
    %cst_68 = arith.constant 1.000000e+00 : f32
    %288 = vector.broadcast %cst_68 : f32 to vector<2x96xf32>
    %289 = arith.addf %288, %287 : vector<2x96xf32>
    %290 = arith.divf %288, %289 : vector<2x96xf32>
    %291 = vector.extract_strided_slice %284 {offsets = [0, 96], sizes = [2, 32], strides = [1, 1]} : vector<2x128xf32> to vector<2x32xf32>
    %292 = math.tanh %291 : vector<2x32xf32>
    %293 = vector.extract_strided_slice %290 {offsets = [0, 32], sizes = [2, 32], strides = [1, 1]} : vector<2x96xf32> to vector<2x32xf32>
    %294 = arith.mulf %293, %249 : vector<2x32xf32>
    %295 = vector.extract_strided_slice %290 {offsets = [0, 0], sizes = [2, 32], strides = [1, 1]} : vector<2x96xf32> to vector<2x32xf32>
    %296 = arith.mulf %295, %292 : vector<2x32xf32>
    %297 = arith.addf %294, %296 : vector<2x32xf32>
    %298 = vector.extract_strided_slice %290 {offsets = [0, 64], sizes = [2, 32], strides = [1, 1]} : vector<2x96xf32> to vector<2x32xf32>
    %299 = math.tanh %297 : vector<2x32xf32>
    %300 = arith.mulf %298, %299 : vector<2x32xf32>
    %301 = arith.addf %253, %300 : vector<2x32xf32>
    %c6_i32 = arith.constant 6 : i32
    %cst_69 = arith.constant dense<0.000000e+00> : vector<2x256xf32>
    %302 = tpu.matmul %300, %1, %cst_69 {dimension_numbers = #tpu.dot_dimension_numbers<[1], [0], [0], [1], [0, 0, 1, 1], [], []>} : vector<2x32xf32>, vector<32x256xf32>, vector<2x256xf32> -> vector<2x256xf32>
    %cst_70 = arith.constant dense<0.000000e+00> : vector<2x128xf32>
    %303 = tpu.matmul %297, %2, %cst_70 {dimension_numbers = #tpu.dot_dimension_numbers<[1], [0], [0], [1], [0, 0, 1, 1], [], []>} : vector<2x32xf32>, vector<32x128xf32>, vector<2x128xf32> -> vector<2x128xf32>
    %304 = vector.extract_strided_slice %302 {offsets = [0, 0], sizes = [2, 128], strides = [1, 1]} : vector<2x256xf32> to vector<2x128xf32>
    %305 = vector.extract_strided_slice %302 {offsets = [0, 128], sizes = [2, 4], strides = [1, 1]} : vector<2x256xf32> to vector<2x4xf32>
    %306 = vector.extract_strided_slice %303 {offsets = [0, 0], sizes = [2, 4], strides = [1, 1]} : vector<2x128xf32> to vector<2x4xf32>
    %307 = arith.addf %305, %306 : vector<2x4xf32>
    %308 = vector.shape_cast %307 : vector<2x4xf32> to vector<2x1x4xf32>
    %309 = vector.broadcast %308 : vector<2x1x4xf32> to vector<2x4x4xf32>
    %310 = arith.addf %309, %12 : vector<2x4x4xf32>
    %311 = math.tanh %310 : vector<2x4x4xf32>
    %312 = vector.broadcast %8 : vector<1x1x4xf32> to vector<2x4x4xf32>
    %313 = arith.mulf %311, %312 : vector<2x4x4xf32>
    %cst_71 = arith.constant dense<0.000000e+00> : vector<2x4xf32>
    %314 = vector.multi_reduction <add>, %313, %cst_71 [2] : vector<2x4x4xf32> to vector<2x4xf32>
    %cst_72 = arith.constant dense<0xFF800000> : vector<2xf32>
    %315 = vector.multi_reduction <maximumf>, %314, %cst_72 [1] : vector<2x4xf32> to vector<2xf32>
    %316 = vector.shape_cast %315 : vector<2xf32> to vector<2x1xf32>
    %317 = vector.broadcast %316 : vector<2x1xf32> to vector<2x4xf32>
    %318 = arith.subf %314, %317 : vector<2x4xf32>
    %319 = math.exp %318 : vector<2x4xf32>
    %cst_73 = arith.constant dense<0.000000e+00> : vector<2xf32>
    %320 = vector.multi_reduction <add>, %319, %cst_73 [1] : vector<2x4xf32> to vector<2xf32>
    %321 = vector.shape_cast %320 : vector<2xf32> to vector<2x1xf32>
    %322 = tpu.reciprocal %321 : vector<2x1xf32> -> vector<2x1xf32>
    %323 = vector.broadcast %322 : vector<2x1xf32> to vector<2x4xf32>
    %324 = arith.mulf %319, %323 : vector<2x4xf32>
    %325 = arith.index_cast %c6_i32 : i32 to index
    %c0_74 = arith.constant 0 : index
    %c0_75 = arith.constant 0 : index
    %326 = vector.load %arg2[%325, %c0_74, %c0_75] : memref<8x2x4xf32, #tpu.memory_space<vmem>>, vector<1x2x4xf32>
    %327 = vector.shape_cast %326 : vector<1x2x4xf32> to vector<2x4xf32>
    %328 = arith.mulf %324, %327 : vector<2x4xf32>
    %329 = vector.broadcast %5 : vector<1x128xf32> to vector<2x128xf32>
    %330 = arith.addf %304, %329 : vector<2x128xf32>
    %cst_76 = arith.constant dense<0.000000e+00> : vector<2x128xf32>
    %331 = tpu.matmul %328, %4, %cst_76 {dimension_numbers = #tpu.dot_dimension_numbers<[1], [0], [0], [1], [0, 0, 1, 1], [], []>} : vector<2x4xf32>, vector<4x128xf32>, vector<2x128xf32> -> vector<2x128xf32>
    %332 = arith.addf %330, %331 : vector<2x128xf32>
    %333 = vector.extract_strided_slice %332 {offsets = [0, 0], sizes = [2, 96], strides = [1, 1]} : vector<2x128xf32> to vector<2x96xf32>
    %334 = arith.negf %333 : vector<2x96xf32>
    %335 = math.exp %334 : vector<2x96xf32>
    %cst_77 = arith.constant 1.000000e+00 : f32
    %336 = vector.broadcast %cst_77 : f32 to vector<2x96xf32>
    %337 = arith.addf %336, %335 : vector<2x96xf32>
    %338 = arith.divf %336, %337 : vector<2x96xf32>
    %339 = vector.extract_strided_slice %332 {offsets = [0, 96], sizes = [2, 32], strides = [1, 1]} : vector<2x128xf32> to vector<2x32xf32>
    %340 = math.tanh %339 : vector<2x32xf32>
    %341 = vector.extract_strided_slice %338 {offsets = [0, 32], sizes = [2, 32], strides = [1, 1]} : vector<2x96xf32> to vector<2x32xf32>
    %342 = arith.mulf %341, %297 : vector<2x32xf32>
    %343 = vector.extract_strided_slice %338 {offsets = [0, 0], sizes = [2, 32], strides = [1, 1]} : vector<2x96xf32> to vector<2x32xf32>
    %344 = arith.mulf %343, %340 : vector<2x32xf32>
    %345 = arith.addf %342, %344 : vector<2x32xf32>
    %346 = vector.extract_strided_slice %338 {offsets = [0, 64], sizes = [2, 32], strides = [1, 1]} : vector<2x96xf32> to vector<2x32xf32>
    %347 = math.tanh %345 : vector<2x32xf32>
    %348 = arith.mulf %346, %347 : vector<2x32xf32>
    %349 = arith.addf %301, %348 : vector<2x32xf32>
    %c7_i32 = arith.constant 7 : i32
    %cst_78 = arith.constant dense<0.000000e+00> : vector<2x256xf32>
    %350 = tpu.matmul %348, %1, %cst_78 {dimension_numbers = #tpu.dot_dimension_numbers<[1], [0], [0], [1], [0, 0, 1, 1], [], []>} : vector<2x32xf32>, vector<32x256xf32>, vector<2x256xf32> -> vector<2x256xf32>
    %cst_79 = arith.constant dense<0.000000e+00> : vector<2x128xf32>
    %351 = tpu.matmul %345, %2, %cst_79 {dimension_numbers = #tpu.dot_dimension_numbers<[1], [0], [0], [1], [0, 0, 1, 1], [], []>} : vector<2x32xf32>, vector<32x128xf32>, vector<2x128xf32> -> vector<2x128xf32>
    %352 = vector.extract_strided_slice %350 {offsets = [0, 0], sizes = [2, 128], strides = [1, 1]} : vector<2x256xf32> to vector<2x128xf32>
    %353 = vector.extract_strided_slice %350 {offsets = [0, 128], sizes = [2, 4], strides = [1, 1]} : vector<2x256xf32> to vector<2x4xf32>
    %354 = vector.extract_strided_slice %351 {offsets = [0, 0], sizes = [2, 4], strides = [1, 1]} : vector<2x128xf32> to vector<2x4xf32>
    %355 = arith.addf %353, %354 : vector<2x4xf32>
    %356 = vector.shape_cast %355 : vector<2x4xf32> to vector<2x1x4xf32>
    %357 = vector.broadcast %356 : vector<2x1x4xf32> to vector<2x4x4xf32>
    %358 = arith.addf %357, %12 : vector<2x4x4xf32>
    %359 = math.tanh %358 : vector<2x4x4xf32>
    %360 = vector.broadcast %8 : vector<1x1x4xf32> to vector<2x4x4xf32>
    %361 = arith.mulf %359, %360 : vector<2x4x4xf32>
    %cst_80 = arith.constant dense<0.000000e+00> : vector<2x4xf32>
    %362 = vector.multi_reduction <add>, %361, %cst_80 [2] : vector<2x4x4xf32> to vector<2x4xf32>
    %cst_81 = arith.constant dense<0xFF800000> : vector<2xf32>
    %363 = vector.multi_reduction <maximumf>, %362, %cst_81 [1] : vector<2x4xf32> to vector<2xf32>
    %364 = vector.shape_cast %363 : vector<2xf32> to vector<2x1xf32>
    %365 = vector.broadcast %364 : vector<2x1xf32> to vector<2x4xf32>
    %366 = arith.subf %362, %365 : vector<2x4xf32>
    %367 = math.exp %366 : vector<2x4xf32>
    %cst_82 = arith.constant dense<0.000000e+00> : vector<2xf32>
    %368 = vector.multi_reduction <add>, %367, %cst_82 [1] : vector<2x4xf32> to vector<2xf32>
    %369 = vector.shape_cast %368 : vector<2xf32> to vector<2x1xf32>
    %370 = tpu.reciprocal %369 : vector<2x1xf32> -> vector<2x1xf32>
    %371 = vector.broadcast %370 : vector<2x1xf32> to vector<2x4xf32>
    %372 = arith.mulf %367, %371 : vector<2x4xf32>
    %373 = arith.index_cast %c7_i32 : i32 to index
    %c0_83 = arith.constant 0 : index
    %c0_84 = arith.constant 0 : index
    %374 = vector.load %arg2[%373, %c0_83, %c0_84] : memref<8x2x4xf32, #tpu.memory_space<vmem>>, vector<1x2x4xf32>
    %375 = vector.shape_cast %374 : vector<1x2x4xf32> to vector<2x4xf32>
    %376 = arith.mulf %372, %375 : vector<2x4xf32>
    %377 = vector.broadcast %5 : vector<1x128xf32> to vector<2x128xf32>
    %378 = arith.addf %352, %377 : vector<2x128xf32>
    %cst_85 = arith.constant dense<0.000000e+00> : vector<2x128xf32>
    %379 = tpu.matmul %376, %4, %cst_85 {dimension_numbers = #tpu.dot_dimension_numbers<[1], [0], [0], [1], [0, 0, 1, 1], [], []>} : vector<2x4xf32>, vector<4x128xf32>, vector<2x128xf32> -> vector<2x128xf32>
    %380 = arith.addf %378, %379 : vector<2x128xf32>
    %381 = vector.extract_strided_slice %380 {offsets = [0, 0], sizes = [2, 96], strides = [1, 1]} : vector<2x128xf32> to vector<2x96xf32>
    %382 = arith.negf %381 : vector<2x96xf32>
    %383 = math.exp %382 : vector<2x96xf32>
    %cst_86 = arith.constant 1.000000e+00 : f32
    %384 = vector.broadcast %cst_86 : f32 to vector<2x96xf32>
    %385 = arith.addf %384, %383 : vector<2x96xf32>
    %386 = arith.divf %384, %385 : vector<2x96xf32>
    %387 = vector.extract_strided_slice %380 {offsets = [0, 96], sizes = [2, 32], strides = [1, 1]} : vector<2x128xf32> to vector<2x32xf32>
    %388 = math.tanh %387 : vector<2x32xf32>
    %389 = vector.extract_strided_slice %386 {offsets = [0, 32], sizes = [2, 32], strides = [1, 1]} : vector<2x96xf32> to vector<2x32xf32>
    %390 = arith.mulf %389, %345 : vector<2x32xf32>
    %391 = vector.extract_strided_slice %386 {offsets = [0, 0], sizes = [2, 32], strides = [1, 1]} : vector<2x96xf32> to vector<2x32xf32>
    %392 = arith.mulf %391, %388 : vector<2x32xf32>
    %393 = arith.addf %390, %392 : vector<2x32xf32>
    %394 = vector.extract_strided_slice %386 {offsets = [0, 64], sizes = [2, 32], strides = [1, 1]} : vector<2x96xf32> to vector<2x32xf32>
    %395 = math.tanh %393 : vector<2x32xf32>
    %396 = arith.mulf %394, %395 : vector<2x32xf32>
    %397 = arith.addf %349, %396 : vector<2x32xf32>
    %c8_i32 = arith.constant 8 : i32
    %cst_87 = arith.constant 1.250000e-01 : f32
    %398 = vector.broadcast %cst_87 : f32 to vector<2x32xf32>
    %399 = arith.mulf %397, %398 : vector<2x32xf32>
    %400 = vector.broadcast %9 : vector<1x32xf32> to vector<2x32xf32>
    %401 = arith.mulf %399, %400 : vector<2x32xf32>
    %cst_88 = arith.constant dense<0.000000e+00> : vector<2xf32>
    %402 = vector.multi_reduction <add>, %401, %cst_88 [1] : vector<2x32xf32> to vector<2xf32>
    %403 = vector.shape_cast %402 : vector<2xf32> to vector<2x1xf32>
    %404 = vector.broadcast %403 : vector<2x1xf32> to vector<2x128xf32>
    %405 = vector.broadcast %6 : vector<1x128xf32> to vector<2x128xf32>
    %406 = arith.mulf %404, %405 : vector<2x128xf32>
    %c0_i32_89 = arith.constant 0 : i32
    %407 = arith.index_cast %c0_i32_89 : i32 to index
    %c0_90 = arith.constant 0 : index
    %c0_91 = arith.constant 0 : index
    %408 = vector.load %arg4[%407, %c0_90, %c0_91] : memref<8x2x128xf32, #tpu.memory_space<vmem>>, vector<1x2x128xf32>
    %409 = vector.shape_cast %408 : vector<1x2x128xf32> to vector<2x128xf32>
    %410 = arith.addf %409, %406 : vector<2x128xf32>
    %cst_92 = arith.constant dense<0.000000e+00> : vector<2x128xf32>
    %411 = tpu.matmul %13, %3, %cst_92 {dimension_numbers = #tpu.dot_dimension_numbers<[1], [0], [0], [1], [0, 0, 1, 1], [], []>} : vector<2x32xf32>, vector<32x128xf32>, vector<2x128xf32> -> vector<2x128xf32>
    %412 = arith.addf %410, %411 : vector<2x128xf32>
    %413 = vector.extract_strided_slice %412 {offsets = [0, 0], sizes = [2, 96], strides = [1, 1]} : vector<2x128xf32> to vector<2x96xf32>
    %414 = arith.negf %413 : vector<2x96xf32>
    %415 = math.exp %414 : vector<2x96xf32>
    %cst_93 = arith.constant 1.000000e+00 : f32
    %416 = vector.broadcast %cst_93 : f32 to vector<2x96xf32>
    %417 = arith.addf %416, %415 : vector<2x96xf32>
    %418 = arith.divf %416, %417 : vector<2x96xf32>
    %419 = vector.extract_strided_slice %412 {offsets = [0, 96], sizes = [2, 32], strides = [1, 1]} : vector<2x128xf32> to vector<2x32xf32>
    %420 = math.tanh %419 : vector<2x32xf32>
    %421 = vector.extract_strided_slice %418 {offsets = [0, 32], sizes = [2, 32], strides = [1, 1]} : vector<2x96xf32> to vector<2x32xf32>
    %422 = arith.mulf %421, %13 : vector<2x32xf32>
    %423 = vector.extract_strided_slice %418 {offsets = [0, 0], sizes = [2, 32], strides = [1, 1]} : vector<2x96xf32> to vector<2x32xf32>
    %424 = arith.mulf %423, %420 : vector<2x32xf32>
    %425 = arith.addf %422, %424 : vector<2x32xf32>
    %426 = vector.extract_strided_slice %418 {offsets = [0, 64], sizes = [2, 32], strides = [1, 1]} : vector<2x96xf32> to vector<2x32xf32>
    %427 = math.tanh %425 : vector<2x32xf32>
    %428 = arith.mulf %426, %427 : vector<2x32xf32>
    %c1_i32_94 = arith.constant 1 : i32
    %429 = arith.index_cast %c1_i32_94 : i32 to index
    %c0_95 = arith.constant 0 : index
    %c0_96 = arith.constant 0 : index
    %430 = vector.load %arg4[%429, %c0_95, %c0_96] : memref<8x2x128xf32, #tpu.memory_space<vmem>>, vector<1x2x128xf32>
    %431 = vector.shape_cast %430 : vector<1x2x128xf32> to vector<2x128xf32>
    %432 = arith.addf %431, %406 : vector<2x128xf32>
    %cst_97 = arith.constant dense<0.000000e+00> : vector<2x128xf32>
    %433 = tpu.matmul %428, %3, %cst_97 {dimension_numbers = #tpu.dot_dimension_numbers<[1], [0], [0], [1], [0, 0, 1, 1], [], []>} : vector<2x32xf32>, vector<32x128xf32>, vector<2x128xf32> -> vector<2x128xf32>
    %434 = arith.addf %432, %433 : vector<2x128xf32>
    %435 = vector.extract_strided_slice %434 {offsets = [0, 0], sizes = [2, 96], strides = [1, 1]} : vector<2x128xf32> to vector<2x96xf32>
    %436 = arith.negf %435 : vector<2x96xf32>
    %437 = math.exp %436 : vector<2x96xf32>
    %cst_98 = arith.constant 1.000000e+00 : f32
    %438 = vector.broadcast %cst_98 : f32 to vector<2x96xf32>
    %439 = arith.addf %438, %437 : vector<2x96xf32>
    %440 = arith.divf %438, %439 : vector<2x96xf32>
    %441 = vector.extract_strided_slice %434 {offsets = [0, 96], sizes = [2, 32], strides = [1, 1]} : vector<2x128xf32> to vector<2x32xf32>
    %442 = math.tanh %441 : vector<2x32xf32>
    %443 = vector.extract_strided_slice %440 {offsets = [0, 32], sizes = [2, 32], strides = [1, 1]} : vector<2x96xf32> to vector<2x32xf32>
    %444 = arith.mulf %443, %425 : vector<2x32xf32>
    %445 = vector.extract_strided_slice %440 {offsets = [0, 0], sizes = [2, 32], strides = [1, 1]} : vector<2x96xf32> to vector<2x32xf32>
    %446 = arith.mulf %445, %442 : vector<2x32xf32>
    %447 = arith.addf %444, %446 : vector<2x32xf32>
    %448 = vector.extract_strided_slice %440 {offsets = [0, 64], sizes = [2, 32], strides = [1, 1]} : vector<2x96xf32> to vector<2x32xf32>
    %449 = math.tanh %447 : vector<2x32xf32>
    %450 = arith.mulf %448, %449 : vector<2x32xf32>
    %c2_i32_99 = arith.constant 2 : i32
    %451 = arith.index_cast %c2_i32_99 : i32 to index
    %c0_100 = arith.constant 0 : index
    %c0_101 = arith.constant 0 : index
    %452 = vector.load %arg4[%451, %c0_100, %c0_101] : memref<8x2x128xf32, #tpu.memory_space<vmem>>, vector<1x2x128xf32>
    %453 = vector.shape_cast %452 : vector<1x2x128xf32> to vector<2x128xf32>
    %454 = arith.addf %453, %406 : vector<2x128xf32>
    %cst_102 = arith.constant dense<0.000000e+00> : vector<2x128xf32>
    %455 = tpu.matmul %450, %3, %cst_102 {dimension_numbers = #tpu.dot_dimension_numbers<[1], [0], [0], [1], [0, 0, 1, 1], [], []>} : vector<2x32xf32>, vector<32x128xf32>, vector<2x128xf32> -> vector<2x128xf32>
    %456 = arith.addf %454, %455 : vector<2x128xf32>
    %457 = vector.extract_strided_slice %456 {offsets = [0, 0], sizes = [2, 96], strides = [1, 1]} : vector<2x128xf32> to vector<2x96xf32>
    %458 = arith.negf %457 : vector<2x96xf32>
    %459 = math.exp %458 : vector<2x96xf32>
    %cst_103 = arith.constant 1.000000e+00 : f32
    %460 = vector.broadcast %cst_103 : f32 to vector<2x96xf32>
    %461 = arith.addf %460, %459 : vector<2x96xf32>
    %462 = arith.divf %460, %461 : vector<2x96xf32>
    %463 = vector.extract_strided_slice %456 {offsets = [0, 96], sizes = [2, 32], strides = [1, 1]} : vector<2x128xf32> to vector<2x32xf32>
    %464 = math.tanh %463 : vector<2x32xf32>
    %465 = vector.extract_strided_slice %462 {offsets = [0, 32], sizes = [2, 32], strides = [1, 1]} : vector<2x96xf32> to vector<2x32xf32>
    %466 = arith.mulf %465, %447 : vector<2x32xf32>
    %467 = vector.extract_strided_slice %462 {offsets = [0, 0], sizes = [2, 32], strides = [1, 1]} : vector<2x96xf32> to vector<2x32xf32>
    %468 = arith.mulf %467, %464 : vector<2x32xf32>
    %469 = arith.addf %466, %468 : vector<2x32xf32>
    %470 = vector.extract_strided_slice %462 {offsets = [0, 64], sizes = [2, 32], strides = [1, 1]} : vector<2x96xf32> to vector<2x32xf32>
    %471 = math.tanh %469 : vector<2x32xf32>
    %472 = arith.mulf %470, %471 : vector<2x32xf32>
    %c3_i32_104 = arith.constant 3 : i32
    %473 = arith.index_cast %c3_i32_104 : i32 to index
    %c0_105 = arith.constant 0 : index
    %c0_106 = arith.constant 0 : index
    %474 = vector.load %arg4[%473, %c0_105, %c0_106] : memref<8x2x128xf32, #tpu.memory_space<vmem>>, vector<1x2x128xf32>
    %475 = vector.shape_cast %474 : vector<1x2x128xf32> to vector<2x128xf32>
    %476 = arith.addf %475, %406 : vector<2x128xf32>
    %cst_107 = arith.constant dense<0.000000e+00> : vector<2x128xf32>
    %477 = tpu.matmul %472, %3, %cst_107 {dimension_numbers = #tpu.dot_dimension_numbers<[1], [0], [0], [1], [0, 0, 1, 1], [], []>} : vector<2x32xf32>, vector<32x128xf32>, vector<2x128xf32> -> vector<2x128xf32>
    %478 = arith.addf %476, %477 : vector<2x128xf32>
    %479 = vector.extract_strided_slice %478 {offsets = [0, 0], sizes = [2, 96], strides = [1, 1]} : vector<2x128xf32> to vector<2x96xf32>
    %480 = arith.negf %479 : vector<2x96xf32>
    %481 = math.exp %480 : vector<2x96xf32>
    %cst_108 = arith.constant 1.000000e+00 : f32
    %482 = vector.broadcast %cst_108 : f32 to vector<2x96xf32>
    %483 = arith.addf %482, %481 : vector<2x96xf32>
    %484 = arith.divf %482, %483 : vector<2x96xf32>
    %485 = vector.extract_strided_slice %478 {offsets = [0, 96], sizes = [2, 32], strides = [1, 1]} : vector<2x128xf32> to vector<2x32xf32>
    %486 = math.tanh %485 : vector<2x32xf32>
    %487 = vector.extract_strided_slice %484 {offsets = [0, 32], sizes = [2, 32], strides = [1, 1]} : vector<2x96xf32> to vector<2x32xf32>
    %488 = arith.mulf %487, %469 : vector<2x32xf32>
    %489 = vector.extract_strided_slice %484 {offsets = [0, 0], sizes = [2, 32], strides = [1, 1]} : vector<2x96xf32> to vector<2x32xf32>
    %490 = arith.mulf %489, %486 : vector<2x32xf32>
    %491 = arith.addf %488, %490 : vector<2x32xf32>
    %492 = vector.extract_strided_slice %484 {offsets = [0, 64], sizes = [2, 32], strides = [1, 1]} : vector<2x96xf32> to vector<2x32xf32>
    %493 = math.tanh %491 : vector<2x32xf32>
    %494 = arith.mulf %492, %493 : vector<2x32xf32>
    %c4_i32_109 = arith.constant 4 : i32
    %495 = arith.index_cast %c4_i32_109 : i32 to index
    %c0_110 = arith.constant 0 : index
    %c0_111 = arith.constant 0 : index
    %496 = vector.load %arg4[%495, %c0_110, %c0_111] : memref<8x2x128xf32, #tpu.memory_space<vmem>>, vector<1x2x128xf32>
    %497 = vector.shape_cast %496 : vector<1x2x128xf32> to vector<2x128xf32>
    %498 = arith.addf %497, %406 : vector<2x128xf32>
    %cst_112 = arith.constant dense<0.000000e+00> : vector<2x128xf32>
    %499 = tpu.matmul %494, %3, %cst_112 {dimension_numbers = #tpu.dot_dimension_numbers<[1], [0], [0], [1], [0, 0, 1, 1], [], []>} : vector<2x32xf32>, vector<32x128xf32>, vector<2x128xf32> -> vector<2x128xf32>
    %500 = arith.addf %498, %499 : vector<2x128xf32>
    %501 = vector.extract_strided_slice %500 {offsets = [0, 0], sizes = [2, 96], strides = [1, 1]} : vector<2x128xf32> to vector<2x96xf32>
    %502 = arith.negf %501 : vector<2x96xf32>
    %503 = math.exp %502 : vector<2x96xf32>
    %cst_113 = arith.constant 1.000000e+00 : f32
    %504 = vector.broadcast %cst_113 : f32 to vector<2x96xf32>
    %505 = arith.addf %504, %503 : vector<2x96xf32>
    %506 = arith.divf %504, %505 : vector<2x96xf32>
    %507 = vector.extract_strided_slice %500 {offsets = [0, 96], sizes = [2, 32], strides = [1, 1]} : vector<2x128xf32> to vector<2x32xf32>
    %508 = math.tanh %507 : vector<2x32xf32>
    %509 = vector.extract_strided_slice %506 {offsets = [0, 32], sizes = [2, 32], strides = [1, 1]} : vector<2x96xf32> to vector<2x32xf32>
    %510 = arith.mulf %509, %491 : vector<2x32xf32>
    %511 = vector.extract_strided_slice %506 {offsets = [0, 0], sizes = [2, 32], strides = [1, 1]} : vector<2x96xf32> to vector<2x32xf32>
    %512 = arith.mulf %511, %508 : vector<2x32xf32>
    %513 = arith.addf %510, %512 : vector<2x32xf32>
    %514 = vector.extract_strided_slice %506 {offsets = [0, 64], sizes = [2, 32], strides = [1, 1]} : vector<2x96xf32> to vector<2x32xf32>
    %515 = math.tanh %513 : vector<2x32xf32>
    %516 = arith.mulf %514, %515 : vector<2x32xf32>
    %c5_i32_114 = arith.constant 5 : i32
    %517 = arith.index_cast %c5_i32_114 : i32 to index
    %c0_115 = arith.constant 0 : index
    %c0_116 = arith.constant 0 : index
    %518 = vector.load %arg4[%517, %c0_115, %c0_116] : memref<8x2x128xf32, #tpu.memory_space<vmem>>, vector<1x2x128xf32>
    %519 = vector.shape_cast %518 : vector<1x2x128xf32> to vector<2x128xf32>
    %520 = arith.addf %519, %406 : vector<2x128xf32>
    %cst_117 = arith.constant dense<0.000000e+00> : vector<2x128xf32>
    %521 = tpu.matmul %516, %3, %cst_117 {dimension_numbers = #tpu.dot_dimension_numbers<[1], [0], [0], [1], [0, 0, 1, 1], [], []>} : vector<2x32xf32>, vector<32x128xf32>, vector<2x128xf32> -> vector<2x128xf32>
    %522 = arith.addf %520, %521 : vector<2x128xf32>
    %523 = vector.extract_strided_slice %522 {offsets = [0, 0], sizes = [2, 96], strides = [1, 1]} : vector<2x128xf32> to vector<2x96xf32>
    %524 = arith.negf %523 : vector<2x96xf32>
    %525 = math.exp %524 : vector<2x96xf32>
    %cst_118 = arith.constant 1.000000e+00 : f32
    %526 = vector.broadcast %cst_118 : f32 to vector<2x96xf32>
    %527 = arith.addf %526, %525 : vector<2x96xf32>
    %528 = arith.divf %526, %527 : vector<2x96xf32>
    %529 = vector.extract_strided_slice %522 {offsets = [0, 96], sizes = [2, 32], strides = [1, 1]} : vector<2x128xf32> to vector<2x32xf32>
    %530 = math.tanh %529 : vector<2x32xf32>
    %531 = vector.extract_strided_slice %528 {offsets = [0, 32], sizes = [2, 32], strides = [1, 1]} : vector<2x96xf32> to vector<2x32xf32>
    %532 = arith.mulf %531, %513 : vector<2x32xf32>
    %533 = vector.extract_strided_slice %528 {offsets = [0, 0], sizes = [2, 32], strides = [1, 1]} : vector<2x96xf32> to vector<2x32xf32>
    %534 = arith.mulf %533, %530 : vector<2x32xf32>
    %535 = arith.addf %532, %534 : vector<2x32xf32>
    %536 = vector.extract_strided_slice %528 {offsets = [0, 64], sizes = [2, 32], strides = [1, 1]} : vector<2x96xf32> to vector<2x32xf32>
    %537 = math.tanh %535 : vector<2x32xf32>
    %538 = arith.mulf %536, %537 : vector<2x32xf32>
    %c6_i32_119 = arith.constant 6 : i32
    %539 = arith.index_cast %c6_i32_119 : i32 to index
    %c0_120 = arith.constant 0 : index
    %c0_121 = arith.constant 0 : index
    %540 = vector.load %arg4[%539, %c0_120, %c0_121] : memref<8x2x128xf32, #tpu.memory_space<vmem>>, vector<1x2x128xf32>
    %541 = vector.shape_cast %540 : vector<1x2x128xf32> to vector<2x128xf32>
    %542 = arith.addf %541, %406 : vector<2x128xf32>
    %cst_122 = arith.constant dense<0.000000e+00> : vector<2x128xf32>
    %543 = tpu.matmul %538, %3, %cst_122 {dimension_numbers = #tpu.dot_dimension_numbers<[1], [0], [0], [1], [0, 0, 1, 1], [], []>} : vector<2x32xf32>, vector<32x128xf32>, vector<2x128xf32> -> vector<2x128xf32>
    %544 = arith.addf %542, %543 : vector<2x128xf32>
    %545 = vector.extract_strided_slice %544 {offsets = [0, 0], sizes = [2, 96], strides = [1, 1]} : vector<2x128xf32> to vector<2x96xf32>
    %546 = arith.negf %545 : vector<2x96xf32>
    %547 = math.exp %546 : vector<2x96xf32>
    %cst_123 = arith.constant 1.000000e+00 : f32
    %548 = vector.broadcast %cst_123 : f32 to vector<2x96xf32>
    %549 = arith.addf %548, %547 : vector<2x96xf32>
    %550 = arith.divf %548, %549 : vector<2x96xf32>
    %551 = vector.extract_strided_slice %544 {offsets = [0, 96], sizes = [2, 32], strides = [1, 1]} : vector<2x128xf32> to vector<2x32xf32>
    %552 = math.tanh %551 : vector<2x32xf32>
    %553 = vector.extract_strided_slice %550 {offsets = [0, 32], sizes = [2, 32], strides = [1, 1]} : vector<2x96xf32> to vector<2x32xf32>
    %554 = arith.mulf %553, %535 : vector<2x32xf32>
    %555 = vector.extract_strided_slice %550 {offsets = [0, 0], sizes = [2, 32], strides = [1, 1]} : vector<2x96xf32> to vector<2x32xf32>
    %556 = arith.mulf %555, %552 : vector<2x32xf32>
    %557 = arith.addf %554, %556 : vector<2x32xf32>
    %558 = vector.extract_strided_slice %550 {offsets = [0, 64], sizes = [2, 32], strides = [1, 1]} : vector<2x96xf32> to vector<2x32xf32>
    %559 = math.tanh %557 : vector<2x32xf32>
    %560 = arith.mulf %558, %559 : vector<2x32xf32>
    %c7_i32_124 = arith.constant 7 : i32
    %561 = arith.index_cast %c7_i32_124 : i32 to index
    %c0_125 = arith.constant 0 : index
    %c0_126 = arith.constant 0 : index
    %562 = vector.load %arg4[%561, %c0_125, %c0_126] : memref<8x2x128xf32, #tpu.memory_space<vmem>>, vector<1x2x128xf32>
    %563 = vector.shape_cast %562 : vector<1x2x128xf32> to vector<2x128xf32>
    %564 = arith.addf %563, %406 : vector<2x128xf32>
    %cst_127 = arith.constant dense<0.000000e+00> : vector<2x128xf32>
    %565 = tpu.matmul %560, %3, %cst_127 {dimension_numbers = #tpu.dot_dimension_numbers<[1], [0], [0], [1], [0, 0, 1, 1], [], []>} : vector<2x32xf32>, vector<32x128xf32>, vector<2x128xf32> -> vector<2x128xf32>
    %566 = arith.addf %564, %565 : vector<2x128xf32>
    %567 = vector.extract_strided_slice %566 {offsets = [0, 0], sizes = [2, 96], strides = [1, 1]} : vector<2x128xf32> to vector<2x96xf32>
    %568 = arith.negf %567 : vector<2x96xf32>
    %569 = math.exp %568 : vector<2x96xf32>
    %cst_128 = arith.constant 1.000000e+00 : f32
    %570 = vector.broadcast %cst_128 : f32 to vector<2x96xf32>
    %571 = arith.addf %570, %569 : vector<2x96xf32>
    %572 = arith.divf %570, %571 : vector<2x96xf32>
    %573 = vector.extract_strided_slice %566 {offsets = [0, 96], sizes = [2, 32], strides = [1, 1]} : vector<2x128xf32> to vector<2x32xf32>
    %574 = math.tanh %573 : vector<2x32xf32>
    %575 = vector.extract_strided_slice %572 {offsets = [0, 32], sizes = [2, 32], strides = [1, 1]} : vector<2x96xf32> to vector<2x32xf32>
    %576 = arith.mulf %575, %557 : vector<2x32xf32>
    %577 = vector.extract_strided_slice %572 {offsets = [0, 0], sizes = [2, 32], strides = [1, 1]} : vector<2x96xf32> to vector<2x32xf32>
    %578 = arith.mulf %577, %574 : vector<2x32xf32>
    %579 = arith.addf %576, %578 : vector<2x32xf32>
    %580 = vector.extract_strided_slice %572 {offsets = [0, 64], sizes = [2, 32], strides = [1, 1]} : vector<2x96xf32> to vector<2x32xf32>
    %581 = math.tanh %579 : vector<2x32xf32>
    %582 = arith.mulf %580, %581 : vector<2x32xf32>
    %c8_i32_129 = arith.constant 8 : i32
    %583 = vector.broadcast %10 : vector<1x32xf32> to vector<2x32xf32>
    %584 = arith.mulf %582, %583 : vector<2x32xf32>
    %cst_130 = arith.constant dense<0.000000e+00> : vector<2xf32>
    %585 = vector.multi_reduction <add>, %584, %cst_130 [1] : vector<2x32xf32> to vector<2xf32>
    %586 = vector.shape_cast %585 : vector<2xf32> to vector<2x1xf32>
    %587 = vector.broadcast %11 : vector<1x32xf32> to vector<2x32xf32>
    %588 = arith.mulf %399, %587 : vector<2x32xf32>
    %cst_131 = arith.constant dense<0.000000e+00> : vector<2xf32>
    %589 = vector.multi_reduction <add>, %588, %cst_131 [1] : vector<2x32xf32> to vector<2xf32>
    %590 = vector.shape_cast %589 : vector<2xf32> to vector<2x1xf32>
    %591 = arith.addf %586, %590 : vector<2x1xf32>
    %592 = vector.broadcast %0 : f32 to vector<2x1xf32>
    %593 = arith.addf %591, %592 : vector<2x1xf32>
    %594 = vector.shape_cast %593 : vector<2x1xf32> to vector<2x1xf32>
    %595 = vector.broadcast %594 : vector<2x1xf32> to vector<2x128xf32>
    %c0_132 = arith.constant 0 : index
    %c0_133 = arith.constant 0 : index
    %596 = vector.load %arg7[%c0_132, %c0_133] : memref<2x128xf32, #tpu.memory_space<vmem>>, vector<2x128xf32>
    tpu.vector_store %arg7[%c0_132, %c0_133], %595 {strides = array<i32>} : memref<2x128xf32, #tpu.memory_space<vmem>>, vector<2x128xf32>,
    return
  }
  func.func @transform_0(%arg0: i32) -> i32 {
    %c0_i32 = arith.constant 0 : i32
    %c0_i32_0 = arith.constant 0 : i32
    return %c0_i32 : i32
  }
  func.func @transform_1(%arg0: i32) -> (i32, i32, i32) {
    %c0_i32 = arith.constant 0 : i32
    %c0_i32_0 = arith.constant 0 : i32
    %c0_i32_1 = arith.constant 0 : i32
    return %c0_i32, %arg0, %c0_i32_0 : i32, i32, i32
  }
  func.func @transform_2(%arg0: i32) -> (i32, i32, i32) {
    %c0_i32 = arith.constant 0 : i32
    %c0_i32_0 = arith.constant 0 : i32
    %c0_i32_1 = arith.constant 0 : i32
    return %arg0, %c0_i32, %c0_i32_0 : i32, i32, i32
  }
  func.func @transform_3(%arg0: i32) -> (i32, i32, i32) {
    %c0_i32 = arith.constant 0 : i32
    %c0_i32_0 = arith.constant 0 : i32
    %c0_i32_1 = arith.constant 0 : i32
    return %c0_i32, %arg0, %c0_i32_0 : i32, i32, i32
  }
  func.func @transform_4(%arg0: i32) -> (i32, i32) {
    %c0_i32 = arith.constant 0 : i32
    %c0_i32_0 = arith.constant 0 : i32
    %c0_i32_1 = arith.constant 0 : i32
    return %c0_i32, %c0_i32_0 : i32, i32
  }
  func.func @transform_5(%arg0: i32) -> (i32, i32) {
    %c0_i32 = arith.constant 0 : i32
    %c0_i32_0 = arith.constant 0 : i32
    %c0_i32_1 = arith.constant 0 : i32
    return %c0_i32, %c0_i32_0 : i32, i32
  }
  func.func @transform_6(%arg0: i32) -> (i32, i32) {
    %c0_i32 = arith.constant 0 : i32
    %c0_i32_0 = arith.constant 0 : i32
    return %arg0, %c0_i32 : i32, i32
  }
}

</mosaic_0001>

<llo_original>
// kernel: rnn_da_att2_forward.1
$region0: #{rnn_da_att2_forward.1}
  #allocation0 [shape = 'u32[]', space=smem, size = 0x4, offset = 0x4, fixed_abs, tag = 'smem constant byte address 0x4 - core index']
  #allocation1 [shape = 'u32[72,128]{1,0:T(1,128)}', space=vmem, size = 0x9000, scoped, tag = 'internal scratch']
  #allocation2 [shape = 'f32[1]{0:T(128)S(6)}', space=smem, size = 0x200, scoped, tag = 'scoped memory for rnn_da_att2_forward.1']
  %s0 = inlined_call_operand.<no memory space> [shape: f32[1], index: 0, kind: input, shape index: {}]
  %s1 = inlined_call_operand.vmem [shape: f32[8,2,4], index: 1, kind: input, shape index: {}]
  %s2 = inlined_call_operand.vmem [shape: f32[2,4,4], index: 2, kind: input, shape index: {}]
  %s3 = inlined_call_operand.vmem [shape: f32[8,2,128], index: 3, kind: input, shape index: {}]
  %s4 = inlined_call_operand.vmem [shape: f32[100,256], index: 4, kind: input, shape index: {}]
  %s5 = inlined_call_operand.vmem [shape: f32[6,128], index: 5, kind: input, shape index: {}]
  %s6 = inlined_call_operand.vmem [shape: f32[2,128], index: 6, kind: output, shape index: {}]
  %s7 = sld [smem:[#allocation0]]
  $region34: #{rnn_da_att2_forward.1} parent=0
    _
  %s9 = ssub.s32 1, %s7
  %s10 = scalar_select 0, %s9, %s7
  %11 = sst [smem:[#allocation2]] %s0
  // Predicated region
  $region2: #{rnn_da_att2_forward.1} parent=0 // pred_check
    _
  $region3: #{rnn_da_att2_forward.1} parent=0 // pred_check_branch
    %13 = sbr.rel (0) target = $region5
  $region4: #{rnn_da_att2_forward.1} parent=0 // pred_region
    _
  $region5: #{rnn_da_att2_forward.1} parent=0 // pred_fallthru
    _
  // Predicated region
  $region6: #{rnn_da_att2_forward.1} parent=0 // pred_check
    _
  $region7: #{rnn_da_att2_forward.1} parent=0 // pred_check_branch
    %15 = sbr.rel (0) target = $region9
  $region8: #{rnn_da_att2_forward.1} parent=0 // pred_region
    _
  $region9: #{rnn_da_att2_forward.1} parent=0 // pred_fallthru
    _
  // Predicated region
  $region10: #{rnn_da_att2_forward.1} parent=0 // pred_check
    _
  $region11: #{rnn_da_att2_forward.1} parent=0 // pred_check_branch
    %17 = sbr.rel (0) target = $region13
  $region12: #{rnn_da_att2_forward.1} parent=0 // pred_region
    _
  $region13: #{rnn_da_att2_forward.1} parent=0 // pred_fallthru
    _
  // Predicated region
  $region14: #{rnn_da_att2_forward.1} parent=0 // pred_check
    _
  $region15: #{rnn_da_att2_forward.1} parent=0 // pred_check_branch
    %19 = sbr.rel (0) target = $region17
  $region16: #{rnn_da_att2_forward.1} parent=0 // pred_region
    _
  $region17: #{rnn_da_att2_forward.1} parent=0 // pred_fallthru
    _
  // Predicated region
  $region18: #{rnn_da_att2_forward.1} parent=0 // pred_check
    _
  $region19: #{rnn_da_att2_forward.1} parent=0 // pred_check_branch
    %21 = sbr.rel (0) target = $region21
  $region20: #{rnn_da_att2_forward.1} parent=0 // pred_region
    _
  $region21: #{rnn_da_att2_forward.1} parent=0 // pred_fallthru
    _
  // Predicated region
  $region22: #{rnn_da_att2_forward.1} parent=0 // pred_check
    _
  $region23: #{rnn_da_att2_forward.1} parent=0 // pred_check_branch
    %23 = sbr.rel (0) target = $region25
  $region24: #{rnn_da_att2_forward.1} parent=0 // pred_region
    _
  $region25: #{rnn_da_att2_forward.1} parent=0 // pred_fallthru
    _
  %s24 = sld [smem:[#allocation2]]
  %v25 = vld [vmem:[%s4] sm:$0xff]
  %v26 = vld [vmem:[%s4 + $0x8] sm:$0xff]
  %v27 = vld [vmem:[%s4 + $0x10] sm:$0xff]
  %v28 = vld [vmem:[%s4 + $0x18] sm:$0xff]
  %v29 = vld [vmem:[%s4 + $0x20] sm:$0xff]
  %v30 = vld [vmem:[%s4 + $0x28] sm:$0xff]
  %v31 = vld [vmem:[%s4 + $0x30] sm:$0xff]
  %v32 = vld [vmem:[%s4 + $0x38] sm:$0xff]
  %v33 = vld [vmem:[%s4 + $0x40] sm:$0xff]
  %v34 = vld [vmem:[%s4 + $0x50] sm:$0xff]
  %v35 = vld [vmem:[%s4 + $0x60] sm:$0xff]
  %v36 = vld [vmem:[%s4 + $0x70] sm:$0xff]
  %v37 = vld [vmem:[%s4 + $0x80] sm:$0xff]
  %v38 = vld [vmem:[%s4 + $0x90] sm:$0xff]
  %v39 = vld [vmem:[%s4 + $0xa0] sm:$0xff]
  %v40 = vld [vmem:[%s4 + $0xb0] sm:$0xff]
  %v41 = vld [vmem:[%s4 + $0xc0] sm:$0xf]
  %v42 = vld [vmem:[%s5] sm:$0x1]
  %v43 = vld [vmem:[%s5 + $0x1] sm:$0x1]
  %v44 = vld [vmem:[%s5 + $0x2] sm:$0x1]
  %v45 = vld [vmem:[%s5 + $0x3] sm:$0x1]
  %v46 = vld [vmem:[%s5 + $0x4] sm:$0x1]
  %v47 = vld [vmem:[%s5 + $0x5] sm:$0x1]
  %v48 = vld [vmem:[%s2] sm:$0xf]
  %v49 = vld [vmem:[%s2 + $0x4] sm:$0xf]
  %vm50 = vcmask 261120
  %v52 = vsel %vm50, 0.0, 0
  %54 = vmatpush.msra.mxu0 0.0
  %55 = vmatpush.msra.mxu0 0.0
  %56 = vmatpush.msra.mxu0 0.0
  %57 = vmatpush.msra.mxu0 0.0
  %58 = vmatpush.msra.mxu0 0.0
  %59 = vmatpush.msra.mxu0 0.0
  %60 = vmatpush.msra.mxu0 0.0
  %61 = vmatpush.msra.mxu0 0.0
  %62 = vmatpush.msra.mxu0 0.0
  %63 = vmatpush.msra.mxu0 0.0
  %64 = vmatpush.msra.mxu0 0.0
  %65 = vmatpush.msra.mxu0 0.0
  %66 = vmatpush.msra.mxu0 %v31
  %67 = vmatpush.msra.mxu0 %v29
  %68 = vmatpush.msra.mxu0 %v27
  %69 = vmatpush.msra.mxu0 %v25
  %70 = vmatmul.f32.gmra.mxu0 %v52
  %v71 = vpop.f32.mrf.mxu0
  %v72 = vadd.f32 0.0, %v71
  %73 = vdwg.mxu0
  %74 = vmatpush.msra.mxu0 0.0
  %75 = vmatpush.msra.mxu0 0.0
  %76 = vmatpush.msra.mxu0 0.0
  %77 = vmatpush.msra.mxu0 0.0
  %78 = vmatpush.msra.mxu0 0.0
  %79 = vmatpush.msra.mxu0 0.0
  %80 = vmatpush.msra.mxu0 0.0
  %81 = vmatpush.msra.mxu0 0.0
  %82 = vmatpush.msra.mxu0 0.0
  %83 = vmatpush.msra.mxu0 0.0
  %84 = vmatpush.msra.mxu0 0.0
  %85 = vmatpush.msra.mxu0 0.0
  %86 = vmatpush.msra.mxu0 %v32
  %87 = vmatpush.msra.mxu0 %v30
  %88 = vmatpush.msra.mxu0 %v28
  %89 = vmatpush.msra.mxu0 %v26
  %90 = vmatmul.f32.gmra.mxu0 %v52
  %v91 = vpop.f32.mrf.mxu0
  %v92 = vadd.f32 0.0, %v91
  %93 = vdwg.mxu0
  %94 = vmatpush.msra.mxu0 0.0
  %95 = vmatpush.msra.mxu0 0.0
  %96 = vmatpush.msra.mxu0 0.0
  %97 = vmatpush.msra.mxu0 0.0
  %98 = vmatpush.msra.mxu0 0.0
  %99 = vmatpush.msra.mxu0 0.0
  %100 = vmatpush.msra.mxu0 0.0
  %101 = vmatpush.msra.mxu0 0.0
  %102 = vmatpush.msra.mxu0 0.0
  %103 = vmatpush.msra.mxu0 0.0
  %104 = vmatpush.msra.mxu0 0.0
  %105 = vmatpush.msra.mxu0 0.0
  %106 = vmatpush.msra.mxu0 %v36
  %107 = vmatpush.msra.mxu0 %v35
  %108 = vmatpush.msra.mxu0 %v34
  %109 = vmatpush.msra.mxu0 %v33
  %110 = vmatmul.f32.gmra.mxu0 %v52
  %v111 = vpop.f32.mrf.mxu0
  %v112 = vadd.f32 0.0, %v111
  %113 = vdwg.mxu0
  %v114 = vadd.f32 %v92, %v112
  %v116 = vrot.slane %v114, 1
  %v117 = vperm.slane %v114, 0
  %v118 = vperm.slane %v116, 0
  %v121 = vadd.f32 %v117, %v48
  %v122 = vadd.f32 %v118, %v49
  %v123 = vtanh.pop %v121
  %v124 = vtanh.pop %v122
  %v125 = vperm.slane %v44, 0
  %v126 = vmul.f32 %v123, %v125
  %v127 = vmul.f32 %v124, %v125
  %vm128 = vcmask 27648
  %v129 = vsel %vm128, %v126, 0.0
  %130 = vadd.xlane.f32.xlu0 %v129
  %v131 = vpop.xlane.xlu0 %130
  %v132 = vsel %vm128, %v127, 0.0
  %133 = vadd.xlane.f32.xlu0 %v132
  %v134 = vpop.xlane.xlu0 %133
  %v137 = vlaneseq
  %v138 = vand.u32 %v137, 127
  %v139 = vperm.slane %v131, %v138
  %v140 = vperm.slane %v134, %v138
  %vm141 = vcmask 1041409
  %v142 = vsel %vm141, %v140, %v139
  %vm144 = vcmask 25600
  %v145 = vsel %vm144, %v142, -inf
  %146 = vmax.xlane.f32.xlu0 %v145
  %v147 = vpop.xlane.xlu0 %146
  %v149 = vperm.slane %v147, 0
  %v150 = vperm.slane %v147, 1
  %v153 = vsub.f32 %v131, %v149
  %v154 = vsub.f32 %v134, %v150
  %v155 = vmul.f32 %v153, 1.442695
  %v156 = vpow.pop %v155
  %v157 = vmul.f32 %v154, 1.442695
  %v158 = vpow.pop %v157
  %161 = vset.pattern.permute.xlu0 0
  %162 = vperm.xlu0 %161, %v156
  %v163 = vpop.permute.xlu0 %162
  %164 = vset.pattern.permute.xlu0 0
  %165 = vperm.xlu0 %164, %v158
  %v166 = vpop.permute.xlu0 %165
  %v167 = vperm.slane %v163, %v138
  %v168 = vperm.slane %v166, %v138
  %v169 = vsel %vm141, %v168, %v167
  %v171 = vsel %vm144, %v169, 0.0
  %172 = vadd.xlane.f32.xlu0 %v171
  %v173 = vpop.xlane.xlu0 %172
  %v174 = vrcp.pop %v173
  %v175 = vmul.f32 %v173, %v174
  %v176 = vsub.f32 1.0, %v175
  %v177 = vmul.f32 %v174, %v176
  %v178 = vadd.f32 %v174, %v177
  %vm179 = vweird.f32 %v173
  %vm180 = vweird.f32 %v174
  %vm181 = vmor %vm179, %vm180
  %v182 = vsel %vm181, %v174, %v178
  %v183 = vand.u32 2147483647, %v173
  %vm184 = vcmp.eq.f32.partialorder %v183, 8.507059e+37
  %v185 = vand.u32 %v173, 2147483648
  %v186 = vor.u32 1.1754944e-38, %v185
  %v187 = vsel %vm184, %v186, %v182
  %v189 = vperm.slane %v187, 0
  %v190 = vperm.slane %v187, 1
  %v193 = vmul.f32 %v156, %v189
  %v194 = vmul.f32 %v158, %v190
  %v195 = vld [vmem:[%s1] sm:$0x3]
  %v197 = vperm.slane %v195, 0
  %v198 = vlaneseq
  %v199 = vshrl.u32 %v198, 7
  %201 = vset.pattern.permute.xlu0 %v199
  %202 = vperm.xlu0 %201, %v197
  %v203 = vpop.permute.xlu0 %202
  %v204 = vperm.slane %v195, 1
  %v205 = vlaneseq
  %v206 = vshrl.u32 %v205, 7
  %208 = vset.pattern.permute.xlu0 %v206
  %209 = vperm.xlu0 %208, %v204
  %v210 = vpop.permute.xlu0 %209
  %v213 = vmul.f32 %v193, %v203
  %v214 = vmul.f32 %v194, %v210
  %v215 = vperm.slane %v42, 0
  %v216 = vadd.f32 %v72, %v215
  %219 = vset.pattern.permute.xlu0 0
  %220 = vperm.xlu0 %219, %v213
  %v221 = vpop.permute.xlu0 %220
  %222 = vset.pattern.permute.xlu0 0
  %223 = vperm.xlu0 %222, %v214
  %v224 = vpop.permute.xlu0 %223
  %v225 = vperm.slane %v221, %v138
  %v226 = vperm.slane %v224, %v138
  %v227 = vsel %vm141, %v226, %v225
  %vm228 = vcmask 31744
  %v229 = vsel %vm228, %v227, 0
  %vm231 = vcmask 1043456
  %v233 = vsel %vm231, %v41, 0
  %235 = vmatpush.msra.mxu0 0.0
  %236 = vmatpush.msra.mxu0 0.0
  %237 = vmatpush.msra.mxu0 0.0
  %238 = vmatpush.msra.mxu0 0.0
  %239 = vmatpush.msra.mxu0 0.0
  %240 = vmatpush.msra.mxu0 0.0
  %241 = vmatpush.msra.mxu0 0.0
  %242 = vmatpush.msra.mxu0 0.0
  %243 = vmatpush.msra.mxu0 0.0
  %244 = vmatpush.msra.mxu0 0.0
  %245 = vmatpush.msra.mxu0 0.0
  %246 = vmatpush.msra.mxu0 0.0
  %247 = vmatpush.msra.mxu0 0.0
  %248 = vmatpush.msra.mxu0 0.0
  %249 = vmatpush.msra.mxu0 0.0
  %250 = vmatpush.msra.mxu0 %v233
  %251 = vmatmul.f32.gmra.mxu0 %v229
  %v252 = vpop.f32.mrf.mxu0
  %v253 = vadd.f32 0.0, %v252
  %254 = vdwg.mxu0
  %v255 = vadd.f32 %v216, %v253
  %v256 = vxor.u32 %v255, 2147483648
  %v257 = vmul.f32 %v256, 1.442695
  %v258 = vpow.pop %v257
  %v259 = vadd.f32 %v258, 1.0
  %v260 = vrcp.pop %v259
  %v261 = vmul.f32 %v259, %v260
  %v262 = vsub.f32 1.0, %v261
  %v263 = vmul.f32 %v260, %v262
  %v264 = vadd.f32 %v260, %v263
  %vm265 = vweird.f32 %v259
  %vm266 = vweird.f32 %v260
  %vm267 = vmor %vm265, %vm266
  %v268 = vsel %vm267, %v260, %v264
  %v269 = vand.u32 2147483647, %v259
  %vm270 = vcmp.eq.f32.partialorder %v269, 8.507059e+37
  %v271 = vand.u32 %v259, 2147483648
  %v272 = vor.u32 1.1754944e-38, %v271
  %v273 = vsel %vm270, %v272, %v268
  %v274 = vmul.f32 1.0, %v273
  %v275 = vtanh.pop %v255
  %v276 = vmul.f32 %v274, 0.0
  %278 = vrot.lane.b32.xlu0 %v275, 32
  %v279 = vpop.permute.xlu0 %278
  %v281 = vmul.f32 %v274, %v279
  %283 = vrot.lane.b32.xlu0 %v281, 32
  %v284 = vpop.permute.xlu0 %283
  %v286 = vadd.f32 %v276, %v284
  %v287 = vtanh.pop %v286
  %289 = vrot.lane.b32.xlu0 %v287, 32
  %v290 = vpop.permute.xlu0 %289
  %v292 = vmul.f32 %v274, %v290
  %v293 = vadd.f32 %v292, 0.0
  %295 = vrot.lane.b32.xlu0 %v292, 64
  %v296 = vpop.permute.xlu0 %295
  %v297 = vsel %vm50, %v296, 0
  %299 = vmatpush.msra.mxu0 0.0
  %300 = vmatpush.msra.mxu0 0.0
  %301 = vmatpush.msra.mxu0 0.0
  %302 = vmatpush.msra.mxu0 0.0
  %303 = vmatpush.msra.mxu0 0.0
  %304 = vmatpush.msra.mxu0 0.0
  %305 = vmatpush.msra.mxu0 0.0
  %306 = vmatpush.msra.mxu0 0.0
  %307 = vmatpush.msra.mxu0 0.0
  %308 = vmatpush.msra.mxu0 0.0
  %309 = vmatpush.msra.mxu0 0.0
  %310 = vmatpush.msra.mxu0 0.0
  %311 = vmatpush.msra.mxu0 %v31
  %312 = vmatpush.msra.mxu0 %v29
  %313 = vmatpush.msra.mxu0 %v27
  %314 = vmatpush.msra.mxu0 %v25
  %315 = vmatmul.f32.gmra.mxu0 %v297
  %v316 = vpop.f32.mrf.mxu0
  %v317 = vadd.f32 0.0, %v316
  %318 = vdwg.mxu0
  %319 = vmatpush.msra.mxu0 0.0
  %320 = vmatpush.msra.mxu0 0.0
  %321 = vmatpush.msra.mxu0 0.0
  %322 = vmatpush.msra.mxu0 0.0
  %323 = vmatpush.msra.mxu0 0.0
  %324 = vmatpush.msra.mxu0 0.0
  %325 = vmatpush.msra.mxu0 0.0
  %326 = vmatpush.msra.mxu0 0.0
  %327 = vmatpush.msra.mxu0 0.0
  %328 = vmatpush.msra.mxu0 0.0
  %329 = vmatpush.msra.mxu0 0.0
  %330 = vmatpush.msra.mxu0 0.0
  %331 = vmatpush.msra.mxu0 %v32
  %332 = vmatpush.msra.mxu0 %v30
  %333 = vmatpush.msra.mxu0 %v28
  %334 = vmatpush.msra.mxu0 %v26
  %335 = vmatmul.f32.gmra.mxu0 %v297
  %v336 = vpop.f32.mrf.mxu0
  %v337 = vadd.f32 0.0, %v336
  %338 = vdwg.mxu0
  %340 = vrot.lane.b32.xlu0 %v286, 96
  %v341 = vpop.permute.xlu0 %340
  %v342 = vsel %vm50, %v341, 0
  %344 = vmatpush.msra.mxu0 0.0
  %345 = vmatpush.msra.mxu0 0.0
  %346 = vmatpush.msra.mxu0 0.0
  %347 = vmatpush.msra.mxu0 0.0
  %348 = vmatpush.msra.mxu0 0.0
  %349 = vmatpush.msra.mxu0 0.0
  %350 = vmatpush.msra.mxu0 0.0
  %351 = vmatpush.msra.mxu0 0.0
  %352 = vmatpush.msra.mxu0 0.0
  %353 = vmatpush.msra.mxu0 0.0
  %354 = vmatpush.msra.mxu0 0.0
  %355 = vmatpush.msra.mxu0 0.0
  %356 = vmatpush.msra.mxu0 %v36
  %357 = vmatpush.msra.mxu0 %v35
  %358 = vmatpush.msra.mxu0 %v34
  %359 = vmatpush.msra.mxu0 %v33
  %360 = vmatmul.f32.gmra.mxu0 %v342
  %v361 = vpop.f32.mrf.mxu0
  %v362 = vadd.f32 0.0, %v361
  %363 = vdwg.mxu0
  %v364 = vadd.f32 %v337, %v362
  %v366 = vrot.slane %v364, 1
  %v367 = vperm.slane %v364, 0
  %v368 = vperm.slane %v366, 0
  %v371 = vadd.f32 %v367, %v48
  %v372 = vadd.f32 %v368, %v49
  %v373 = vtanh.pop %v371
  %v374 = vtanh.pop %v372
  %v375 = vmul.f32 %v373, %v125
  %v376 = vmul.f32 %v374, %v125
  %v377 = vsel %vm128, %v375, 0.0
  %378 = vadd.xlane.f32.xlu0 %v377
  %v379 = vpop.xlane.xlu0 %378
  %v380 = vsel %vm128, %v376, 0.0
  %381 = vadd.xlane.f32.xlu0 %v380
  %v382 = vpop.xlane.xlu0 %381
  %v385 = vperm.slane %v379, %v138
  %v386 = vperm.slane %v382, %v138
  %v387 = vsel %vm141, %v386, %v385
  %v389 = vsel %vm144, %v387, -inf
  %390 = vmax.xlane.f32.xlu0 %v389
  %v391 = vpop.xlane.xlu0 %390
  %v393 = vperm.slane %v391, 0
  %v394 = vperm.slane %v391, 1
  %v397 = vsub.f32 %v379, %v393
  %v398 = vsub.f32 %v382, %v394
  %v399 = vmul.f32 %v397, 1.442695
  %v400 = vpow.pop %v399
  %v401 = vmul.f32 %v398, 1.442695
  %v402 = vpow.pop %v401
  %405 = vset.pattern.permute.xlu0 0
  %406 = vperm.xlu0 %405, %v400
  %v407 = vpop.permute.xlu0 %406
  %408 = vset.pattern.permute.xlu0 0
  %409 = vperm.xlu0 %408, %v402
  %v410 = vpop.permute.xlu0 %409
  %v411 = vperm.slane %v407, %v138
  %v412 = vperm.slane %v410, %v138
  %v413 = vsel %vm141, %v412, %v411
  %v415 = vsel %vm144, %v413, 0.0
  %416 = vadd.xlane.f32.xlu0 %v415
  %v417 = vpop.xlane.xlu0 %416
  %v418 = vrcp.pop %v417
  %v419 = vmul.f32 %v417, %v418
  %v420 = vsub.f32 1.0, %v419
  %v421 = vmul.f32 %v418, %v420
  %v422 = vadd.f32 %v418, %v421
  %vm423 = vweird.f32 %v417
  %vm424 = vweird.f32 %v418
  %vm425 = vmor %vm423, %vm424
  %v426 = vsel %vm425, %v418, %v422
  %v427 = vand.u32 2147483647, %v417
  %vm428 = vcmp.eq.f32.partialorder %v427, 8.507059e+37
  %v429 = vand.u32 %v417, 2147483648
  %v430 = vor.u32 1.1754944e-38, %v429
  %v431 = vsel %vm428, %v430, %v426
  %v433 = vperm.slane %v431, 0
  %v434 = vperm.slane %v431, 1
  %v437 = vmul.f32 %v400, %v433
  %v438 = vmul.f32 %v402, %v434
  %s439 = scalar_lea.vmem %s1, 2
  %v440 = vld [vmem:[%s439] sm:$0x3]
  %v442 = vperm.slane %v440, 0
  %v443 = vlaneseq
  %v444 = vshrl.u32 %v443, 7
  %446 = vset.pattern.permute.xlu0 %v444
  %447 = vperm.xlu0 %446, %v442
  %v448 = vpop.permute.xlu0 %447
  %v449 = vperm.slane %v440, 1
  %v450 = vlaneseq
  %v451 = vshrl.u32 %v450, 7
  %453 = vset.pattern.permute.xlu0 %v451
  %454 = vperm.xlu0 %453, %v449
  %v455 = vpop.permute.xlu0 %454
  %v458 = vmul.f32 %v437, %v448
  %v459 = vmul.f32 %v438, %v455
  %v460 = vadd.f32 %v317, %v215
  %463 = vset.pattern.permute.xlu0 0
  %464 = vperm.xlu0 %463, %v458
  %v465 = vpop.permute.xlu0 %464
  %466 = vset.pattern.permute.xlu0 0
  %467 = vperm.xlu0 %466, %v459
  %v468 = vpop.permute.xlu0 %467
  %v469 = vperm.slane %v465, %v138
  %v470 = vperm.slane %v468, %v138
  %v471 = vsel %vm141, %v470, %v469
  %v472 = vsel %vm228, %v471, 0
  %474 = vmatpush.msra.mxu0 0.0
  %475 = vmatpush.msra.mxu0 0.0
  %476 = vmatpush.msra.mxu0 0.0
  %477 = vmatpush.msra.mxu0 0.0
  %478 = vmatpush.msra.mxu0 0.0
  %479 = vmatpush.msra.mxu0 0.0
  %480 = vmatpush.msra.mxu0 0.0
  %481 = vmatpush.msra.mxu0 0.0
  %482 = vmatpush.msra.mxu0 0.0
  %483 = vmatpush.msra.mxu0 0.0
  %484 = vmatpush.msra.mxu0 0.0
  %485 = vmatpush.msra.mxu0 0.0
  %486 = vmatpush.msra.mxu0 0.0
  %487 = vmatpush.msra.mxu0 0.0
  %488 = vmatpush.msra.mxu0 0.0
  %489 = vmatpush.msra.mxu0 %v233
  %490 = vmatmul.f32.gmra.mxu0 %v472
  %v491 = vpop.f32.mrf.mxu0
  %v492 = vadd.f32 0.0, %v491
  %493 = vdwg.mxu0
  %v494 = vadd.f32 %v460, %v492
  %v495 = vxor.u32 %v494, 2147483648
  %v496 = vmul.f32 %v495, 1.442695
  %v497 = vpow.pop %v496
  %v498 = vadd.f32 %v497, 1.0
  %v499 = vrcp.pop %v498
  %v500 = vmul.f32 %v498, %v499
  %v501 = vsub.f32 1.0, %v500
  %v502 = vmul.f32 %v499, %v501
  %v503 = vadd.f32 %v499, %v502
  %vm504 = vweird.f32 %v498
  %vm505 = vweird.f32 %v499
  %vm506 = vmor %vm504, %vm505
  %v507 = vsel %vm506, %v499, %v503
  %v508 = vand.u32 2147483647, %v498
  %vm509 = vcmp.eq.f32.partialorder %v508, 8.507059e+37
  %v510 = vand.u32 %v498, 2147483648
  %v511 = vor.u32 1.1754944e-38, %v510
  %v512 = vsel %vm509, %v511, %v507
  %v513 = vmul.f32 1.0, %v512
  %v514 = vtanh.pop %v494
  %v515 = vmul.f32 %v513, %v286
  %517 = vrot.lane.b32.xlu0 %v514, 32
  %v518 = vpop.permute.xlu0 %517
  %v520 = vmul.f32 %v513, %v518
  %522 = vrot.lane.b32.xlu0 %v520, 32
  %v523 = vpop.permute.xlu0 %522
  %v525 = vadd.f32 %v515, %v523
  %v526 = vtanh.pop %v525
  %528 = vrot.lane.b32.xlu0 %v526, 32
  %v529 = vpop.permute.xlu0 %528
  %v531 = vmul.f32 %v513, %v529
  %v532 = vadd.f32 %v293, %v531
  %534 = vrot.lane.b32.xlu0 %v531, 64
  %v535 = vpop.permute.xlu0 %534
  %v536 = vsel %vm50, %v535, 0
  %538 = vmatpush.msra.mxu0 0.0
  %539 = vmatpush.msra.mxu0 0.0
  %540 = vmatpush.msra.mxu0 0.0
  %541 = vmatpush.msra.mxu0 0.0
  %542 = vmatpush.msra.mxu0 0.0
  %543 = vmatpush.msra.mxu0 0.0
  %544 = vmatpush.msra.mxu0 0.0
  %545 = vmatpush.msra.mxu0 0.0
  %546 = vmatpush.msra.mxu0 0.0
  %547 = vmatpush.msra.mxu0 0.0
  %548 = vmatpush.msra.mxu0 0.0
  %549 = vmatpush.msra.mxu0 0.0
  %550 = vmatpush.msra.mxu0 %v31
  %551 = vmatpush.msra.mxu0 %v29
  %552 = vmatpush.msra.mxu0 %v27
  %553 = vmatpush.msra.mxu0 %v25
  %554 = vmatmul.f32.gmra.mxu0 %v536
  %v555 = vpop.f32.mrf.mxu0
  %v556 = vadd.f32 0.0, %v555
  %557 = vdwg.mxu0
  %558 = vmatpush.msra.mxu0 0.0
  %559 = vmatpush.msra.mxu0 0.0
  %560 = vmatpush.msra.mxu0 0.0
  %561 = vmatpush.msra.mxu0 0.0
  %562 = vmatpush.msra.mxu0 0.0
  %563 = vmatpush.msra.mxu0 0.0
  %564 = vmatpush.msra.mxu0 0.0
  %565 = vmatpush.msra.mxu0 0.0
  %566 = vmatpush.msra.mxu0 0.0
  %567 = vmatpush.msra.mxu0 0.0
  %568 = vmatpush.msra.mxu0 0.0
  %569 = vmatpush.msra.mxu0 0.0
  %570 = vmatpush.msra.mxu0 %v32
  %571 = vmatpush.msra.mxu0 %v30
  %572 = vmatpush.msra.mxu0 %v28
  %573 = vmatpush.msra.mxu0 %v26
  %574 = vmatmul.f32.gmra.mxu0 %v536
  %v575 = vpop.f32.mrf.mxu0
  %v576 = vadd.f32 0.0, %v575
  %577 = vdwg.mxu0
  %579 = vrot.lane.b32.xlu0 %v525, 96
  %v580 = vpop.permute.xlu0 %579
  %v581 = vsel %vm50, %v580, 0
  %583 = vmatpush.msra.mxu0 0.0
  %584 = vmatpush.msra.mxu0 0.0
  %585 = vmatpush.msra.mxu0 0.0
  %586 = vmatpush.msra.mxu0 0.0
  %587 = vmatpush.msra.mxu0 0.0
  %588 = vmatpush.msra.mxu0 0.0
  %589 = vmatpush.msra.mxu0 0.0
  %590 = vmatpush.msra.mxu0 0.0
  %591 = vmatpush.msra.mxu0 0.0
  %592 = vmatpush.msra.mxu0 0.0
  %593 = vmatpush.msra.mxu0 0.0
  %594 = vmatpush.msra.mxu0 0.0
  %595 = vmatpush.msra.mxu0 %v36
  %596 = vmatpush.msra.mxu0 %v35
  %597 = vmatpush.msra.mxu0 %v34
  %598 = vmatpush.msra.mxu0 %v33
  %599 = vmatmul.f32.gmra.mxu0 %v581
  %v600 = vpop.f32.mrf.mxu0
  %v601 = vadd.f32 0.0, %v600
  %602 = vdwg.mxu0
  %v603 = vadd.f32 %v576, %v601
  %v605 = vrot.slane %v603, 1
  %v606 = vperm.slane %v603, 0
  %v607 = vperm.slane %v605, 0
  %v610 = vadd.f32 %v606, %v48
  %v611 = vadd.f32 %v607, %v49
  %v612 = vtanh.pop %v610
  %v613 = vtanh.pop %v611
  %v614 = vmul.f32 %v612, %v125
  %v615 = vmul.f32 %v613, %v125
  %v616 = vsel %vm128, %v614, 0.0
  %617 = vadd.xlane.f32.xlu0 %v616
  %v618 = vpop.xlane.xlu0 %617
  %v619 = vsel %vm128, %v615, 0.0
  %620 = vadd.xlane.f32.xlu0 %v619
  %v621 = vpop.xlane.xlu0 %620
  %v624 = vperm.slane %v618, %v138
  %v625 = vperm.slane %v621, %v138
  %v626 = vsel %vm141, %v625, %v624
  %v628 = vsel %vm144, %v626, -inf
  %629 = vmax.xlane.f32.xlu0 %v628
  %v630 = vpop.xlane.xlu0 %629
  %v632 = vperm.slane %v630, 0
  %v633 = vperm.slane %v630, 1
  %v636 = vsub.f32 %v618, %v632
  %v637 = vsub.f32 %v621, %v633
  %v638 = vmul.f32 %v636, 1.442695
  %v639 = vpow.pop %v638
  %v640 = vmul.f32 %v637, 1.442695
  %v641 = vpow.pop %v640
  %644 = vset.pattern.permute.xlu0 0
  %645 = vperm.xlu0 %644, %v639
  %v646 = vpop.permute.xlu0 %645
  %647 = vset.pattern.permute.xlu0 0
  %648 = vperm.xlu0 %647, %v641
  %v649 = vpop.permute.xlu0 %648
  %v650 = vperm.slane %v646, %v138
  %v651 = vperm.slane %v649, %v138
  %v652 = vsel %vm141, %v651, %v650
  %v654 = vsel %vm144, %v652, 0.0
  %655 = vadd.xlane.f32.xlu0 %v654
  %v656 = vpop.xlane.xlu0 %655
  %v657 = vrcp.pop %v656
  %v658 = vmul.f32 %v656, %v657
  %v659 = vsub.f32 1.0, %v658
  %v660 = vmul.f32 %v657, %v659
  %v661 = vadd.f32 %v657, %v660
  %vm662 = vweird.f32 %v656
  %vm663 = vweird.f32 %v657
  %vm664 = vmor %vm662, %vm663
  %v665 = vsel %vm664, %v657, %v661
  %v666 = vand.u32 2147483647, %v656
  %vm667 = vcmp.eq.f32.partialorder %v666, 8.507059e+37
  %v668 = vand.u32 %v656, 2147483648
  %v669 = vor.u32 1.1754944e-38, %v668
  %v670 = vsel %vm667, %v669, %v665
  %v672 = vperm.slane %v670, 0
  %v673 = vperm.slane %v670, 1
  %v676 = vmul.f32 %v639, %v672
  %v677 = vmul.f32 %v641, %v673
  %s678 = scalar_lea.vmem %s1, 4
  %v679 = vld [vmem:[%s678] sm:$0x3]
  %v681 = vperm.slane %v679, 0
  %v682 = vlaneseq
  %v683 = vshrl.u32 %v682, 7
  %685 = vset.pattern.permute.xlu0 %v683
  %686 = vperm.xlu0 %685, %v681
  %v687 = vpop.permute.xlu0 %686
  %v688 = vperm.slane %v679, 1
  %v689 = vlaneseq
  %v690 = vshrl.u32 %v689, 7
  %692 = vset.pattern.permute.xlu0 %v690
  %693 = vperm.xlu0 %692, %v688
  %v694 = vpop.permute.xlu0 %693
  %v697 = vmul.f32 %v676, %v687
  %v698 = vmul.f32 %v677, %v694
  %v699 = vadd.f32 %v556, %v215
  %702 = vset.pattern.permute.xlu0 0
  %703 = vperm.xlu0 %702, %v697
  %v704 = vpop.permute.xlu0 %703
  %705 = vset.pattern.permute.xlu0 0
  %706 = vperm.xlu0 %705, %v698
  %v707 = vpop.permute.xlu0 %706
  %v708 = vperm.slane %v704, %v138
  %v709 = vperm.slane %v707, %v138
  %v710 = vsel %vm141, %v709, %v708
  %v711 = vsel %vm228, %v710, 0
  %713 = vmatpush.msra.mxu0 0.0
  %714 = vmatpush.msra.mxu0 0.0
  %715 = vmatpush.msra.mxu0 0.0
  %716 = vmatpush.msra.mxu0 0.0
  %717 = vmatpush.msra.mxu0 0.0
  %718 = vmatpush.msra.mxu0 0.0
  %719 = vmatpush.msra.mxu0 0.0
  %720 = vmatpush.msra.mxu0 0.0
  %721 = vmatpush.msra.mxu0 0.0
  %722 = vmatpush.msra.mxu0 0.0
  %723 = vmatpush.msra.mxu0 0.0
  %724 = vmatpush.msra.mxu0 0.0
  %725 = vmatpush.msra.mxu0 0.0
  %726 = vmatpush.msra.mxu0 0.0
  %727 = vmatpush.msra.mxu0 0.0
  %728 = vmatpush.msra.mxu0 %v233
  %729 = vmatmul.f32.gmra.mxu0 %v711
  %v730 = vpop.f32.mrf.mxu0
  %v731 = vadd.f32 0.0, %v730
  %732 = vdwg.mxu0
  %v733 = vadd.f32 %v699, %v731
  %v734 = vxor.u32 %v733, 2147483648
  %v735 = vmul.f32 %v734, 1.442695
  %v736 = vpow.pop %v735
  %v737 = vadd.f32 %v736, 1.0
  %v738 = vrcp.pop %v737
  %v739 = vmul.f32 %v737, %v738
  %v740 = vsub.f32 1.0, %v739
  %v741 = vmul.f32 %v738, %v740
  %v742 = vadd.f32 %v738, %v741
  %vm743 = vweird.f32 %v737
  %vm744 = vweird.f32 %v738
  %vm745 = vmor %vm743, %vm744
  %v746 = vsel %vm745, %v738, %v742
  %v747 = vand.u32 2147483647, %v737
  %vm748 = vcmp.eq.f32.partialorder %v747, 8.507059e+37
  %v749 = vand.u32 %v737, 2147483648
  %v750 = vor.u32 1.1754944e-38, %v749
  %v751 = vsel %vm748, %v750, %v746
  %v752 = vmul.f32 1.0, %v751
  %v753 = vtanh.pop %v733
  %v754 = vmul.f32 %v752, %v525
  %756 = vrot.lane.b32.xlu0 %v753, 32
  %v757 = vpop.permute.xlu0 %756
  %v759 = vmul.f32 %v752, %v757
  %761 = vrot.lane.b32.xlu0 %v759, 32
  %v762 = vpop.permute.xlu0 %761
  %v764 = vadd.f32 %v754, %v762
  %v765 = vtanh.pop %v764
  %767 = vrot.lane.b32.xlu0 %v765, 32
  %v768 = vpop.permute.xlu0 %767
  %v770 = vmul.f32 %v752, %v768
  %v771 = vadd.f32 %v532, %v770
  %773 = vrot.lane.b32.xlu0 %v770, 64
  %v774 = vpop.permute.xlu0 %773
  %v775 = vsel %vm50, %v774, 0
  %777 = vmatpush.msra.mxu0 0.0
  %778 = vmatpush.msra.mxu0 0.0
  %779 = vmatpush.msra.mxu0 0.0
  %780 = vmatpush.msra.mxu0 0.0
  %781 = vmatpush.msra.mxu0 0.0
  %782 = vmatpush.msra.mxu0 0.0
  %783 = vmatpush.msra.mxu0 0.0
  %784 = vmatpush.msra.mxu0 0.0
  %785 = vmatpush.msra.mxu0 0.0
  %786 = vmatpush.msra.mxu0 0.0
  %787 = vmatpush.msra.mxu0 0.0
  %788 = vmatpush.msra.mxu0 0.0
  %789 = vmatpush.msra.mxu0 %v31
  %790 = vmatpush.msra.mxu0 %v29
  %791 = vmatpush.msra.mxu0 %v27
  %792 = vmatpush.msra.mxu0 %v25
  %793 = vmatmul.f32.gmra.mxu0 %v775
  %v794 = vpop.f32.mrf.mxu0
  %v795 = vadd.f32 0.0, %v794
  %796 = vdwg.mxu0
  %797 = vmatpush.msra.mxu0 0.0
  %798 = vmatpush.msra.mxu0 0.0
  %799 = vmatpush.msra.mxu0 0.0
  %800 = vmatpush.msra.mxu0 0.0
  %801 = vmatpush.msra.mxu0 0.0
  %802 = vmatpush.msra.mxu0 0.0
  %803 = vmatpush.msra.mxu0 0.0
  %804 = vmatpush.msra.mxu0 0.0
  %805 = vmatpush.msra.mxu0 0.0
  %806 = vmatpush.msra.mxu0 0.0
  %807 = vmatpush.msra.mxu0 0.0
  %808 = vmatpush.msra.mxu0 0.0
  %809 = vmatpush.msra.mxu0 %v32
  %810 = vmatpush.msra.mxu0 %v30
  %811 = vmatpush.msra.mxu0 %v28
  %812 = vmatpush.msra.mxu0 %v26
  %813 = vmatmul.f32.gmra.mxu0 %v775
  %v814 = vpop.f32.mrf.mxu0
  %v815 = vadd.f32 0.0, %v814
  %816 = vdwg.mxu0
  %818 = vrot.lane.b32.xlu0 %v764, 96
  %v819 = vpop.permute.xlu0 %818
  %v820 = vsel %vm50, %v819, 0
  %822 = vmatpush.msra.mxu0 0.0
  %823 = vmatpush.msra.mxu0 0.0
  %824 = vmatpush.msra.mxu0 0.0
  %825 = vmatpush.msra.mxu0 0.0
  %826 = vmatpush.msra.mxu0 0.0
  %827 = vmatpush.msra.mxu0 0.0
  %828 = vmatpush.msra.mxu0 0.0
  %829 = vmatpush.msra.mxu0 0.0
  %830 = vmatpush.msra.mxu0 0.0
  %831 = vmatpush.msra.mxu0 0.0
  %832 = vmatpush.msra.mxu0 0.0
  %833 = vmatpush.msra.mxu0 0.0
  %834 = vmatpush.msra.mxu0 %v36
  %835 = vmatpush.msra.mxu0 %v35
  %836 = vmatpush.msra.mxu0 %v34
  %837 = vmatpush.msra.mxu0 %v33
  %838 = vmatmul.f32.gmra.mxu0 %v820
  %v839 = vpop.f32.mrf.mxu0
  %v840 = vadd.f32 0.0, %v839
  %841 = vdwg.mxu0
  %v842 = vadd.f32 %v815, %v840
  %v844 = vrot.slane %v842, 1
  %v845 = vperm.slane %v842, 0
  %v846 = vperm.slane %v844, 0
  %v849 = vadd.f32 %v845, %v48
  %v850 = vadd.f32 %v846, %v49
  %v851 = vtanh.pop %v849
  %v852 = vtanh.pop %v850
  %v853 = vmul.f32 %v851, %v125
  %v854 = vmul.f32 %v852, %v125
  %v855 = vsel %vm128, %v853, 0.0
  %856 = vadd.xlane.f32.xlu0 %v855
  %v857 = vpop.xlane.xlu0 %856
  %v858 = vsel %vm128, %v854, 0.0
  %859 = vadd.xlane.f32.xlu0 %v858
  %v860 = vpop.xlane.xlu0 %859
  %v863 = vperm.slane %v857, %v138
  %v864 = vperm.slane %v860, %v138
  %v865 = vsel %vm141, %v864, %v863
  %v867 = vsel %vm144, %v865, -inf
  %868 = vmax.xlane.f32.xlu0 %v867
  %v869 = vpop.xlane.xlu0 %868
  %v871 = vperm.slane %v869, 0
  %v872 = vperm.slane %v869, 1
  %v875 = vsub.f32 %v857, %v871
  %v876 = vsub.f32 %v860, %v872
  %v877 = vmul.f32 %v875, 1.442695
  %v878 = vpow.pop %v877
  %v879 = vmul.f32 %v876, 1.442695
  %v880 = vpow.pop %v879
  %883 = vset.pattern.permute.xlu0 0
  %884 = vperm.xlu0 %883, %v878
  %v885 = vpop.permute.xlu0 %884
  %886 = vset.pattern.permute.xlu0 0
  %887 = vperm.xlu0 %886, %v880
  %v888 = vpop.permute.xlu0 %887
  %v889 = vperm.slane %v885, %v138
  %v890 = vperm.slane %v888, %v138
  %v891 = vsel %vm141, %v890, %v889
  %v893 = vsel %vm144, %v891, 0.0
  %894 = vadd.xlane.f32.xlu0 %v893
  %v895 = vpop.xlane.xlu0 %894
  %v896 = vrcp.pop %v895
  %v897 = vmul.f32 %v895, %v896
  %v898 = vsub.f32 1.0, %v897
  %v899 = vmul.f32 %v896, %v898
  %v900 = vadd.f32 %v896, %v899
  %vm901 = vweird.f32 %v895
  %vm902 = vweird.f32 %v896
  %vm903 = vmor %vm901, %vm902
  %v904 = vsel %vm903, %v896, %v900
  %v905 = vand.u32 2147483647, %v895
  %vm906 = vcmp.eq.f32.partialorder %v905, 8.507059e+37
  %v907 = vand.u32 %v895, 2147483648
  %v908 = vor.u32 1.1754944e-38, %v907
  %v909 = vsel %vm906, %v908, %v904
  %v911 = vperm.slane %v909, 0
  %v912 = vperm.slane %v909, 1
  %v915 = vmul.f32 %v878, %v911
  %v916 = vmul.f32 %v880, %v912
  %s917 = scalar_lea.vmem %s1, 6
  %v918 = vld [vmem:[%s917] sm:$0x3]
  %v920 = vperm.slane %v918, 0
  %v921 = vlaneseq
  %v922 = vshrl.u32 %v921, 7
  %924 = vset.pattern.permute.xlu0 %v922
  %925 = vperm.xlu0 %924, %v920
  %v926 = vpop.permute.xlu0 %925
  %v927 = vperm.slane %v918, 1
  %v928 = vlaneseq
  %v929 = vshrl.u32 %v928, 7
  %931 = vset.pattern.permute.xlu0 %v929
  %932 = vperm.xlu0 %931, %v927
  %v933 = vpop.permute.xlu0 %932
  %v936 = vmul.f32 %v915, %v926
  %v937 = vmul.f32 %v916, %v933
  %v938 = vadd.f32 %v795, %v215
  %941 = vset.pattern.permute.xlu0 0
  %942 = vperm.xlu0 %941, %v936
  %v943 = vpop.permute.xlu0 %942
  %944 = vset.pattern.permute.xlu0 0
  %945 = vperm.xlu0 %944, %v937
  %v946 = vpop.permute.xlu0 %945
  %v947 = vperm.slane %v943, %v138
  %v948 = vperm.slane %v946, %v138
  %v949 = vsel %vm141, %v948, %v947
  %v950 = vsel %vm228, %v949, 0
  %952 = vmatpush.msra.mxu0 0.0
  %953 = vmatpush.msra.mxu0 0.0
  %954 = vmatpush.msra.mxu0 0.0
  %955 = vmatpush.msra.mxu0 0.0
  %956 = vmatpush.msra.mxu0 0.0
  %957 = vmatpush.msra.mxu0 0.0
  %958 = vmatpush.msra.mxu0 0.0
  %959 = vmatpush.msra.mxu0 0.0
  %960 = vmatpush.msra.mxu0 0.0
  %961 = vmatpush.msra.mxu0 0.0
  %962 = vmatpush.msra.mxu0 0.0
  %963 = vmatpush.msra.mxu0 0.0
  %964 = vmatpush.msra.mxu0 0.0
  %965 = vmatpush.msra.mxu0 0.0
  %966 = vmatpush.msra.mxu0 0.0
  %967 = vmatpush.msra.mxu0 %v233
  %968 = vmatmul.f32.gmra.mxu0 %v950
  %v969 = vpop.f32.mrf.mxu0
  %v970 = vadd.f32 0.0, %v969
  %971 = vdwg.mxu0
  %v972 = vadd.f32 %v938, %v970
  %v973 = vxor.u32 %v972, 2147483648
  %v974 = vmul.f32 %v973, 1.442695
  %v975 = vpow.pop %v974
  %v976 = vadd.f32 %v975, 1.0
  %v977 = vrcp.pop %v976
  %v978 = vmul.f32 %v976, %v977
  %v979 = vsub.f32 1.0, %v978
  %v980 = vmul.f32 %v977, %v979
  %v981 = vadd.f32 %v977, %v980
  %vm982 = vweird.f32 %v976
  %vm983 = vweird.f32 %v977
  %vm984 = vmor %vm982, %vm983
  %v985 = vsel %vm984, %v977, %v981
  %v986 = vand.u32 2147483647, %v976
  %vm987 = vcmp.eq.f32.partialorder %v986, 8.507059e+37
  %v988 = vand.u32 %v976, 2147483648
  %v989 = vor.u32 1.1754944e-38, %v988
  %v990 = vsel %vm987, %v989, %v985
  %v991 = vmul.f32 1.0, %v990
  %v992 = vtanh.pop %v972
  %v993 = vmul.f32 %v991, %v764
  %995 = vrot.lane.b32.xlu0 %v992, 32
  %v996 = vpop.permute.xlu0 %995
  %v998 = vmul.f32 %v991, %v996
  %1000 = vrot.lane.b32.xlu0 %v998, 32
  %v1001 = vpop.permute.xlu0 %1000
  %v1003 = vadd.f32 %v993, %v1001
  %v1004 = vtanh.pop %v1003
  %1006 = vrot.lane.b32.xlu0 %v1004, 32
  %v1007 = vpop.permute.xlu0 %1006
  %v1009 = vmul.f32 %v991, %v1007
  %v1010 = vadd.f32 %v771, %v1009
  %1012 = vrot.lane.b32.xlu0 %v1009, 64
  %v1013 = vpop.permute.xlu0 %1012
  %v1014 = vsel %vm50, %v1013, 0
  %1016 = vmatpush.msra.mxu0 0.0
  %1017 = vmatpush.msra.mxu0 0.0
  %1018 = vmatpush.msra.mxu0 0.0
  %1019 = vmatpush.msra.mxu0 0.0
  %1020 = vmatpush.msra.mxu0 0.0
  %1021 = vmatpush.msra.mxu0 0.0
  %1022 = vmatpush.msra.mxu0 0.0
  %1023 = vmatpush.msra.mxu0 0.0
  %1024 = vmatpush.msra.mxu0 0.0
  %1025 = vmatpush.msra.mxu0 0.0
  %1026 = vmatpush.msra.mxu0 0.0
  %1027 = vmatpush.msra.mxu0 0.0
  %1028 = vmatpush.msra.mxu0 %v31
  %1029 = vmatpush.msra.mxu0 %v29
  %1030 = vmatpush.msra.mxu0 %v27
  %1031 = vmatpush.msra.mxu0 %v25
  %1032 = vmatmul.f32.gmra.mxu0 %v1014
  %v1033 = vpop.f32.mrf.mxu0
  %v1034 = vadd.f32 0.0, %v1033
  %1035 = vdwg.mxu0
  %1036 = vmatpush.msra.mxu0 0.0
  %1037 = vmatpush.msra.mxu0 0.0
  %1038 = vmatpush.msra.mxu0 0.0
  %1039 = vmatpush.msra.mxu0 0.0
  %1040 = vmatpush.msra.mxu0 0.0
  %1041 = vmatpush.msra.mxu0 0.0
  %1042 = vmatpush.msra.mxu0 0.0
  %1043 = vmatpush.msra.mxu0 0.0
  %1044 = vmatpush.msra.mxu0 0.0
  %1045 = vmatpush.msra.mxu0 0.0
  %1046 = vmatpush.msra.mxu0 0.0
  %1047 = vmatpush.msra.mxu0 0.0
  %1048 = vmatpush.msra.mxu0 %v32
  %1049 = vmatpush.msra.mxu0 %v30
  %1050 = vmatpush.msra.mxu0 %v28
  %1051 = vmatpush.msra.mxu0 %v26
  %1052 = vmatmul.f32.gmra.mxu0 %v1014
  %v1053 = vpop.f32.mrf.mxu0
  %v1054 = vadd.f32 0.0, %v1053
  %1055 = vdwg.mxu0
  %1057 = vrot.lane.b32.xlu0 %v1003, 96
  %v1058 = vpop.permute.xlu0 %1057
  %v1059 = vsel %vm50, %v1058, 0
  %1061 = vmatpush.msra.mxu0 0.0
  %1062 = vmatpush.msra.mxu0 0.0
  %1063 = vmatpush.msra.mxu0 0.0
  %1064 = vmatpush.msra.mxu0 0.0
  %1065 = vmatpush.msra.mxu0 0.0
  %1066 = vmatpush.msra.mxu0 0.0
  %1067 = vmatpush.msra.mxu0 0.0
  %1068 = vmatpush.msra.mxu0 0.0
  %1069 = vmatpush.msra.mxu0 0.0
  %1070 = vmatpush.msra.mxu0 0.0
  %1071 = vmatpush.msra.mxu0 0.0
  %1072 = vmatpush.msra.mxu0 0.0
  %1073 = vmatpush.msra.mxu0 %v36
  %1074 = vmatpush.msra.mxu0 %v35
  %1075 = vmatpush.msra.mxu0 %v34
  %1076 = vmatpush.msra.mxu0 %v33
  %1077 = vmatmul.f32.gmra.mxu0 %v1059
  %v1078 = vpop.f32.mrf.mxu0
  %v1079 = vadd.f32 0.0, %v1078
  %1080 = vdwg.mxu0
  %v1081 = vadd.f32 %v1054, %v1079
  %v1083 = vrot.slane %v1081, 1
  %v1084 = vperm.slane %v1081, 0
  %v1085 = vperm.slane %v1083, 0
  %v1088 = vadd.f32 %v1084, %v48
  %v1089 = vadd.f32 %v1085, %v49
  %v1090 = vtanh.pop %v1088
  %v1091 = vtanh.pop %v1089
  %v1092 = vmul.f32 %v1090, %v125
  %v1093 = vmul.f32 %v1091, %v125
  %v1094 = vsel %vm128, %v1092, 0.0
  %1095 = vadd.xlane.f32.xlu0 %v1094
  %v1096 = vpop.xlane.xlu0 %1095
  %v1097 = vsel %vm128, %v1093, 0.0
  %1098 = vadd.xlane.f32.xlu0 %v1097
  %v1099 = vpop.xlane.xlu0 %1098
  %v1102 = vperm.slane %v1096, %v138
  %v1103 = vperm.slane %v1099, %v138
  %v1104 = vsel %vm141, %v1103, %v1102
  %v1106 = vsel %vm144, %v1104, -inf
  %1107 = vmax.xlane.f32.xlu0 %v1106
  %v1108 = vpop.xlane.xlu0 %1107
  %v1110 = vperm.slane %v1108, 0
  %v1111 = vperm.slane %v1108, 1
  %v1114 = vsub.f32 %v1096, %v1110
  %v1115 = vsub.f32 %v1099, %v1111
  %v1116 = vmul.f32 %v1114, 1.442695
  %v1117 = vpow.pop %v1116
  %v1118 = vmul.f32 %v1115, 1.442695
  %v1119 = vpow.pop %v1118
  %1122 = vset.pattern.permute.xlu0 0
  %1123 = vperm.xlu0 %1122, %v1117
  %v1124 = vpop.permute.xlu0 %1123
  %1125 = vset.pattern.permute.xlu0 0
  %1126 = vperm.xlu0 %1125, %v1119
  %v1127 = vpop.permute.xlu0 %1126
  %v1128 = vperm.slane %v1124, %v138
  %v1129 = vperm.slane %v1127, %v138
  %v1130 = vsel %vm141, %v1129, %v1128
  %v1132 = vsel %vm144, %v1130, 0.0
  %1133 = vadd.xlane.f32.xlu0 %v1132
  %v1134 = vpop.xlane.xlu0 %1133
  %v1135 = vrcp.pop %v1134
  %v1136 = vmul.f32 %v1134, %v1135
  %v1137 = vsub.f32 1.0, %v1136
  %v1138 = vmul.f32 %v1135, %v1137
  %v1139 = vadd.f32 %v1135, %v1138
  %vm1140 = vweird.f32 %v1134
  %vm1141 = vweird.f32 %v1135
  %vm1142 = vmor %vm1140, %vm1141
  %v1143 = vsel %vm1142, %v1135, %v1139
  %v1144 = vand.u32 2147483647, %v1134
  %vm1145 = vcmp.eq.f32.partialorder %v1144, 8.507059e+37
  %v1146 = vand.u32 %v1134, 2147483648
  %v1147 = vor.u32 1.1754944e-38, %v1146
  %v1148 = vsel %vm1145, %v1147, %v1143
  %v1150 = vperm.slane %v1148, 0
  %v1151 = vperm.slane %v1148, 1
  %v1154 = vmul.f32 %v1117, %v1150
  %v1155 = vmul.f32 %v1119, %v1151
  %s1156 = scalar_lea.vmem %s1, 8
  %v1157 = vld [vmem:[%s1156] sm:$0x3]
  %v1159 = vperm.slane %v1157, 0
  %v1160 = vlaneseq
  %v1161 = vshrl.u32 %v1160, 7
  %1163 = vset.pattern.permute.xlu0 %v1161
  %1164 = vperm.xlu0 %1163, %v1159
  %v1165 = vpop.permute.xlu0 %1164
  %v1166 = vperm.slane %v1157, 1
  %v1167 = vlaneseq
  %v1168 = vshrl.u32 %v1167, 7
  %1170 = vset.pattern.permute.xlu0 %v1168
  %1171 = vperm.xlu0 %1170, %v1166
  %v1172 = vpop.permute.xlu0 %1171
  %v1175 = vmul.f32 %v1154, %v1165
  %v1176 = vmul.f32 %v1155, %v1172
  %v1177 = vadd.f32 %v1034, %v215
  %1180 = vset.pattern.permute.xlu0 0
  %1181 = vperm.xlu0 %1180, %v1175
  %v1182 = vpop.permute.xlu0 %1181
  %1183 = vset.pattern.permute.xlu0 0
  %1184 = vperm.xlu0 %1183, %v1176
  %v1185 = vpop.permute.xlu0 %1184
  %v1186 = vperm.slane %v1182, %v138
  %v1187 = vperm.slane %v1185, %v138
  %v1188 = vsel %vm141, %v1187, %v1186
  %v1189 = vsel %vm228, %v1188, 0
  %1191 = vmatpush.msra.mxu0 0.0
  %1192 = vmatpush.msra.mxu0 0.0
  %1193 = vmatpush.msra.mxu0 0.0
  %1194 = vmatpush.msra.mxu0 0.0
  %1195 = vmatpush.msra.mxu0 0.0
  %1196 = vmatpush.msra.mxu0 0.0
  %1197 = vmatpush.msra.mxu0 0.0
  %1198 = vmatpush.msra.mxu0 0.0
  %1199 = vmatpush.msra.mxu0 0.0
  %1200 = vmatpush.msra.mxu0 0.0
  %1201 = vmatpush.msra.mxu0 0.0
  %1202 = vmatpush.msra.mxu0 0.0
  %1203 = vmatpush.msra.mxu0 0.0
  %1204 = vmatpush.msra.mxu0 0.0
  %1205 = vmatpush.msra.mxu0 0.0
  %1206 = vmatpush.msra.mxu0 %v233
  %1207 = vmatmul.f32.gmra.mxu0 %v1189
  %v1208 = vpop.f32.mrf.mxu0
  %v1209 = vadd.f32 0.0, %v1208
  %1210 = vdwg.mxu0
  %v1211 = vadd.f32 %v1177, %v1209
  %v1212 = vxor.u32 %v1211, 2147483648
  %v1213 = vmul.f32 %v1212, 1.442695
  %v1214 = vpow.pop %v1213
  %v1215 = vadd.f32 %v1214, 1.0
  %v1216 = vrcp.pop %v1215
  %v1217 = vmul.f32 %v1215, %v1216
  %v1218 = vsub.f32 1.0, %v1217
  %v1219 = vmul.f32 %v1216, %v1218
  %v1220 = vadd.f32 %v1216, %v1219
  %vm1221 = vweird.f32 %v1215
  %vm1222 = vweird.f32 %v1216
  %vm1223 = vmor %vm1221, %vm1222
  %v1224 = vsel %vm1223, %v1216, %v1220
  %v1225 = vand.u32 2147483647, %v1215
  %vm1226 = vcmp.eq.f32.partialorder %v1225, 8.507059e+37
  %v1227 = vand.u32 %v1215, 2147483648
  %v1228 = vor.u32 1.1754944e-38, %v1227
  %v1229 = vsel %vm1226, %v1228, %v1224
  %v1230 = vmul.f32 1.0, %v1229
  %v1231 = vtanh.pop %v1211
  %v1232 = vmul.f32 %v1230, %v1003
  %1234 = vrot.lane.b32.xlu0 %v1231, 32
  %v1235 = vpop.permute.xlu0 %1234
  %v1237 = vmul.f32 %v1230, %v1235
  %1239 = vrot.lane.b32.xlu0 %v1237, 32
  %v1240 = vpop.permute.xlu0 %1239
  %v1242 = vadd.f32 %v1232, %v1240
  %v1243 = vtanh.pop %v1242
  %1245 = vrot.lane.b32.xlu0 %v1243, 32
  %v1246 = vpop.permute.xlu0 %1245
  %v1248 = vmul.f32 %v1230, %v1246
  %v1249 = vadd.f32 %v1010, %v1248
  %1251 = vrot.lane.b32.xlu0 %v1248, 64
  %v1252 = vpop.permute.xlu0 %1251
  %v1253 = vsel %vm50, %v1252, 0
  %1255 = vmatpush.msra.mxu0 0.0
  %1256 = vmatpush.msra.mxu0 0.0
  %1257 = vmatpush.msra.mxu0 0.0
  %1258 = vmatpush.msra.mxu0 0.0
  %1259 = vmatpush.msra.mxu0 0.0
  %1260 = vmatpush.msra.mxu0 0.0
  %1261 = vmatpush.msra.mxu0 0.0
  %1262 = vmatpush.msra.mxu0 0.0
  %1263 = vmatpush.msra.mxu0 0.0
  %1264 = vmatpush.msra.mxu0 0.0
  %1265 = vmatpush.msra.mxu0 0.0
  %1266 = vmatpush.msra.mxu0 0.0
  %1267 = vmatpush.msra.mxu0 %v31
  %1268 = vmatpush.msra.mxu0 %v29
  %1269 = vmatpush.msra.mxu0 %v27
  %1270 = vmatpush.msra.mxu0 %v25
  %1271 = vmatmul.f32.gmra.mxu0 %v1253
  %v1272 = vpop.f32.mrf.mxu0
  %v1273 = vadd.f32 0.0, %v1272
  %1274 = vdwg.mxu0
  %1275 = vmatpush.msra.mxu0 0.0
  %1276 = vmatpush.msra.mxu0 0.0
  %1277 = vmatpush.msra.mxu0 0.0
  %1278 = vmatpush.msra.mxu0 0.0
  %1279 = vmatpush.msra.mxu0 0.0
  %1280 = vmatpush.msra.mxu0 0.0
  %1281 = vmatpush.msra.mxu0 0.0
  %1282 = vmatpush.msra.mxu0 0.0
  %1283 = vmatpush.msra.mxu0 0.0
  %1284 = vmatpush.msra.mxu0 0.0
  %1285 = vmatpush.msra.mxu0 0.0
  %1286 = vmatpush.msra.mxu0 0.0
  %1287 = vmatpush.msra.mxu0 %v32
  %1288 = vmatpush.msra.mxu0 %v30
  %1289 = vmatpush.msra.mxu0 %v28
  %1290 = vmatpush.msra.mxu0 %v26
  %1291 = vmatmul.f32.gmra.mxu0 %v1253
  %v1292 = vpop.f32.mrf.mxu0
  %v1293 = vadd.f32 0.0, %v1292
  %1294 = vdwg.mxu0
  %1296 = vrot.lane.b32.xlu0 %v1242, 96
  %v1297 = vpop.permute.xlu0 %1296
  %v1298 = vsel %vm50, %v1297, 0
  %1300 = vmatpush.msra.mxu0 0.0
  %1301 = vmatpush.msra.mxu0 0.0
  %1302 = vmatpush.msra.mxu0 0.0
  %1303 = vmatpush.msra.mxu0 0.0
  %1304 = vmatpush.msra.mxu0 0.0
  %1305 = vmatpush.msra.mxu0 0.0
  %1306 = vmatpush.msra.mxu0 0.0
  %1307 = vmatpush.msra.mxu0 0.0
  %1308 = vmatpush.msra.mxu0 0.0
  %1309 = vmatpush.msra.mxu0 0.0
  %1310 = vmatpush.msra.mxu0 0.0
  %1311 = vmatpush.msra.mxu0 0.0
  %1312 = vmatpush.msra.mxu0 %v36
  %1313 = vmatpush.msra.mxu0 %v35
  %1314 = vmatpush.msra.mxu0 %v34
  %1315 = vmatpush.msra.mxu0 %v33
  %1316 = vmatmul.f32.gmra.mxu0 %v1298
  %v1317 = vpop.f32.mrf.mxu0
  %v1318 = vadd.f32 0.0, %v1317
  %1319 = vdwg.mxu0
  %v1320 = vadd.f32 %v1293, %v1318
  %v1322 = vrot.slane %v1320, 1
  %v1323 = vperm.slane %v1320, 0
  %v1324 = vperm.slane %v1322, 0
  %v1327 = vadd.f32 %v1323, %v48
  %v1328 = vadd.f32 %v1324, %v49
  %v1329 = vtanh.pop %v1327
  %v1330 = vtanh.pop %v1328
  %v1331 = vmul.f32 %v1329, %v125
  %v1332 = vmul.f32 %v1330, %v125
  %v1333 = vsel %vm128, %v1331, 0.0
  %1334 = vadd.xlane.f32.xlu0 %v1333
  %v1335 = vpop.xlane.xlu0 %1334
  %v1336 = vsel %vm128, %v1332, 0.0
  %1337 = vadd.xlane.f32.xlu0 %v1336
  %v1338 = vpop.xlane.xlu0 %1337
  %v1341 = vperm.slane %v1335, %v138
  %v1342 = vperm.slane %v1338, %v138
  %v1343 = vsel %vm141, %v1342, %v1341
  %v1345 = vsel %vm144, %v1343, -inf
  %1346 = vmax.xlane.f32.xlu0 %v1345
  %v1347 = vpop.xlane.xlu0 %1346
  %v1349 = vperm.slane %v1347, 0
  %v1350 = vperm.slane %v1347, 1
  %v1353 = vsub.f32 %v1335, %v1349
  %v1354 = vsub.f32 %v1338, %v1350
  %v1355 = vmul.f32 %v1353, 1.442695
  %v1356 = vpow.pop %v1355
  %v1357 = vmul.f32 %v1354, 1.442695
  %v1358 = vpow.pop %v1357
  %1361 = vset.pattern.permute.xlu0 0
  %1362 = vperm.xlu0 %1361, %v1356
  %v1363 = vpop.permute.xlu0 %1362
  %1364 = vset.pattern.permute.xlu0 0
  %1365 = vperm.xlu0 %1364, %v1358
  %v1366 = vpop.permute.xlu0 %1365
  %v1367 = vperm.slane %v1363, %v138
  %v1368 = vperm.slane %v1366, %v138
  %v1369 = vsel %vm141, %v1368, %v1367
  %v1371 = vsel %vm144, %v1369, 0.0
  %1372 = vadd.xlane.f32.xlu0 %v1371
  %v1373 = vpop.xlane.xlu0 %1372
  %v1374 = vrcp.pop %v1373
  %v1375 = vmul.f32 %v1373, %v1374
  %v1376 = vsub.f32 1.0, %v1375
  %v1377 = vmul.f32 %v1374, %v1376
  %v1378 = vadd.f32 %v1374, %v1377
  %vm1379 = vweird.f32 %v1373
  %vm1380 = vweird.f32 %v1374
  %vm1381 = vmor %vm1379, %vm1380
  %v1382 = vsel %vm1381, %v1374, %v1378
  %v1383 = vand.u32 2147483647, %v1373
  %vm1384 = vcmp.eq.f32.partialorder %v1383, 8.507059e+37
  %v1385 = vand.u32 %v1373, 2147483648
  %v1386 = vor.u32 1.1754944e-38, %v1385
  %v1387 = vsel %vm1384, %v1386, %v1382
  %v1389 = vperm.slane %v1387, 0
  %v1390 = vperm.slane %v1387, 1
  %v1393 = vmul.f32 %v1356, %v1389
  %v1394 = vmul.f32 %v1358, %v1390
  %s1395 = scalar_lea.vmem %s1, 10
  %v1396 = vld [vmem:[%s1395] sm:$0x3]
  %v1398 = vperm.slane %v1396, 0
  %v1399 = vlaneseq
  %v1400 = vshrl.u32 %v1399, 7
  %1402 = vset.pattern.permute.xlu0 %v1400
  %1403 = vperm.xlu0 %1402, %v1398
  %v1404 = vpop.permute.xlu0 %1403
  %v1405 = vperm.slane %v1396, 1
  %v1406 = vlaneseq
  %v1407 = vshrl.u32 %v1406, 7
  %1409 = vset.pattern.permute.xlu0 %v1407
  %1410 = vperm.xlu0 %1409, %v1405
  %v1411 = vpop.permute.xlu0 %1410
  %v1414 = vmul.f32 %v1393, %v1404
  %v1415 = vmul.f32 %v1394, %v1411
  %v1416 = vadd.f32 %v1273, %v215
  %1419 = vset.pattern.permute.xlu0 0
  %1420 = vperm.xlu0 %1419, %v1414
  %v1421 = vpop.permute.xlu0 %1420
  %1422 = vset.pattern.permute.xlu0 0
  %1423 = vperm.xlu0 %1422, %v1415
  %v1424 = vpop.permute.xlu0 %1423
  %v1425 = vperm.slane %v1421, %v138
  %v1426 = vperm.slane %v1424, %v138
  %v1427 = vsel %vm141, %v1426, %v1425
  %v1428 = vsel %vm228, %v1427, 0
  %1430 = vmatpush.msra.mxu0 0.0
  %1431 = vmatpush.msra.mxu0 0.0
  %1432 = vmatpush.msra.mxu0 0.0
  %1433 = vmatpush.msra.mxu0 0.0
  %1434 = vmatpush.msra.mxu0 0.0
  %1435 = vmatpush.msra.mxu0 0.0
  %1436 = vmatpush.msra.mxu0 0.0
  %1437 = vmatpush.msra.mxu0 0.0
  %1438 = vmatpush.msra.mxu0 0.0
  %1439 = vmatpush.msra.mxu0 0.0
  %1440 = vmatpush.msra.mxu0 0.0
  %1441 = vmatpush.msra.mxu0 0.0
  %1442 = vmatpush.msra.mxu0 0.0
  %1443 = vmatpush.msra.mxu0 0.0
  %1444 = vmatpush.msra.mxu0 0.0
  %1445 = vmatpush.msra.mxu0 %v233
  %1446 = vmatmul.f32.gmra.mxu0 %v1428
  %v1447 = vpop.f32.mrf.mxu0
  %v1448 = vadd.f32 0.0, %v1447
  %1449 = vdwg.mxu0
  %v1450 = vadd.f32 %v1416, %v1448
  %v1451 = vxor.u32 %v1450, 2147483648
  %v1452 = vmul.f32 %v1451, 1.442695
  %v1453 = vpow.pop %v1452
  %v1454 = vadd.f32 %v1453, 1.0
  %v1455 = vrcp.pop %v1454
  %v1456 = vmul.f32 %v1454, %v1455
  %v1457 = vsub.f32 1.0, %v1456
  %v1458 = vmul.f32 %v1455, %v1457
  %v1459 = vadd.f32 %v1455, %v1458
  %vm1460 = vweird.f32 %v1454
  %vm1461 = vweird.f32 %v1455
  %vm1462 = vmor %vm1460, %vm1461
  %v1463 = vsel %vm1462, %v1455, %v1459
  %v1464 = vand.u32 2147483647, %v1454
  %vm1465 = vcmp.eq.f32.partialorder %v1464, 8.507059e+37
  %v1466 = vand.u32 %v1454, 2147483648
  %v1467 = vor.u32 1.1754944e-38, %v1466
  %v1468 = vsel %vm1465, %v1467, %v1463
  %v1469 = vmul.f32 1.0, %v1468
  %v1470 = vtanh.pop %v1450
  %v1471 = vmul.f32 %v1469, %v1242
  %1473 = vrot.lane.b32.xlu0 %v1470, 32
  %v1474 = vpop.permute.xlu0 %1473
  %v1476 = vmul.f32 %v1469, %v1474
  %1478 = vrot.lane.b32.xlu0 %v1476, 32
  %v1479 = vpop.permute.xlu0 %1478
  %v1481 = vadd.f32 %v1471, %v1479
  %v1482 = vtanh.pop %v1481
  %1484 = vrot.lane.b32.xlu0 %v1482, 32
  %v1485 = vpop.permute.xlu0 %1484
  %v1487 = vmul.f32 %v1469, %v1485
  %v1488 = vadd.f32 %v1249, %v1487
  %1490 = vrot.lane.b32.xlu0 %v1487, 64
  %v1491 = vpop.permute.xlu0 %1490
  %v1492 = vsel %vm50, %v1491, 0
  %1494 = vmatpush.msra.mxu0 0.0
  %1495 = vmatpush.msra.mxu0 0.0
  %1496 = vmatpush.msra.mxu0 0.0
  %1497 = vmatpush.msra.mxu0 0.0
  %1498 = vmatpush.msra.mxu0 0.0
  %1499 = vmatpush.msra.mxu0 0.0
  %1500 = vmatpush.msra.mxu0 0.0
  %1501 = vmatpush.msra.mxu0 0.0
  %1502 = vmatpush.msra.mxu0 0.0
  %1503 = vmatpush.msra.mxu0 0.0
  %1504 = vmatpush.msra.mxu0 0.0
  %1505 = vmatpush.msra.mxu0 0.0
  %1506 = vmatpush.msra.mxu0 %v31
  %1507 = vmatpush.msra.mxu0 %v29
  %1508 = vmatpush.msra.mxu0 %v27
  %1509 = vmatpush.msra.mxu0 %v25
  %1510 = vmatmul.f32.gmra.mxu0 %v1492
  %v1511 = vpop.f32.mrf.mxu0
  %v1512 = vadd.f32 0.0, %v1511
  %1513 = vdwg.mxu0
  %1514 = vmatpush.msra.mxu0 0.0
  %1515 = vmatpush.msra.mxu0 0.0
  %1516 = vmatpush.msra.mxu0 0.0
  %1517 = vmatpush.msra.mxu0 0.0
  %1518 = vmatpush.msra.mxu0 0.0
  %1519 = vmatpush.msra.mxu0 0.0
  %1520 = vmatpush.msra.mxu0 0.0
  %1521 = vmatpush.msra.mxu0 0.0
  %1522 = vmatpush.msra.mxu0 0.0
  %1523 = vmatpush.msra.mxu0 0.0
  %1524 = vmatpush.msra.mxu0 0.0
  %1525 = vmatpush.msra.mxu0 0.0
  %1526 = vmatpush.msra.mxu0 %v32
  %1527 = vmatpush.msra.mxu0 %v30
  %1528 = vmatpush.msra.mxu0 %v28
  %1529 = vmatpush.msra.mxu0 %v26
  %1530 = vmatmul.f32.gmra.mxu0 %v1492
  %v1531 = vpop.f32.mrf.mxu0
  %v1532 = vadd.f32 0.0, %v1531
  %1533 = vdwg.mxu0
  %1535 = vrot.lane.b32.xlu0 %v1481, 96
  %v1536 = vpop.permute.xlu0 %1535
  %v1537 = vsel %vm50, %v1536, 0
  %1539 = vmatpush.msra.mxu0 0.0
  %1540 = vmatpush.msra.mxu0 0.0
  %1541 = vmatpush.msra.mxu0 0.0
  %1542 = vmatpush.msra.mxu0 0.0
  %1543 = vmatpush.msra.mxu0 0.0
  %1544 = vmatpush.msra.mxu0 0.0
  %1545 = vmatpush.msra.mxu0 0.0
  %1546 = vmatpush.msra.mxu0 0.0
  %1547 = vmatpush.msra.mxu0 0.0
  %1548 = vmatpush.msra.mxu0 0.0
  %1549 = vmatpush.msra.mxu0 0.0
  %1550 = vmatpush.msra.mxu0 0.0
  %1551 = vmatpush.msra.mxu0 %v36
  %1552 = vmatpush.msra.mxu0 %v35
  %1553 = vmatpush.msra.mxu0 %v34
  %1554 = vmatpush.msra.mxu0 %v33
  %1555 = vmatmul.f32.gmra.mxu0 %v1537
  %v1556 = vpop.f32.mrf.mxu0
  %v1557 = vadd.f32 0.0, %v1556
  %1558 = vdwg.mxu0
  %v1559 = vadd.f32 %v1532, %v1557
  %v1561 = vrot.slane %v1559, 1
  %v1562 = vperm.slane %v1559, 0
  %v1563 = vperm.slane %v1561, 0
  %v1566 = vadd.f32 %v1562, %v48
  %v1567 = vadd.f32 %v1563, %v49
  %v1568 = vtanh.pop %v1566
  %v1569 = vtanh.pop %v1567
  %v1570 = vmul.f32 %v1568, %v125
  %v1571 = vmul.f32 %v1569, %v125
  %v1572 = vsel %vm128, %v1570, 0.0
  %1573 = vadd.xlane.f32.xlu0 %v1572
  %v1574 = vpop.xlane.xlu0 %1573
  %v1575 = vsel %vm128, %v1571, 0.0
  %1576 = vadd.xlane.f32.xlu0 %v1575
  %v1577 = vpop.xlane.xlu0 %1576
  %v1580 = vperm.slane %v1574, %v138
  %v1581 = vperm.slane %v1577, %v138
  %v1582 = vsel %vm141, %v1581, %v1580
  %v1584 = vsel %vm144, %v1582, -inf
  %1585 = vmax.xlane.f32.xlu0 %v1584
  %v1586 = vpop.xlane.xlu0 %1585
  %v1588 = vperm.slane %v1586, 0
  %v1589 = vperm.slane %v1586, 1
  %v1592 = vsub.f32 %v1574, %v1588
  %v1593 = vsub.f32 %v1577, %v1589
  %v1594 = vmul.f32 %v1592, 1.442695
  %v1595 = vpow.pop %v1594
  %v1596 = vmul.f32 %v1593, 1.442695
  %v1597 = vpow.pop %v1596
  %1600 = vset.pattern.permute.xlu0 0
  %1601 = vperm.xlu0 %1600, %v1595
  %v1602 = vpop.permute.xlu0 %1601
  %1603 = vset.pattern.permute.xlu0 0
  %1604 = vperm.xlu0 %1603, %v1597
  %v1605 = vpop.permute.xlu0 %1604
  %v1606 = vperm.slane %v1602, %v138
  %v1607 = vperm.slane %v1605, %v138
  %v1608 = vsel %vm141, %v1607, %v1606
  %v1610 = vsel %vm144, %v1608, 0.0
  %1611 = vadd.xlane.f32.xlu0 %v1610
  %v1612 = vpop.xlane.xlu0 %1611
  %v1613 = vrcp.pop %v1612
  %v1614 = vmul.f32 %v1612, %v1613
  %v1615 = vsub.f32 1.0, %v1614
  %v1616 = vmul.f32 %v1613, %v1615
  %v1617 = vadd.f32 %v1613, %v1616
  %vm1618 = vweird.f32 %v1612
  %vm1619 = vweird.f32 %v1613
  %vm1620 = vmor %vm1618, %vm1619
  %v1621 = vsel %vm1620, %v1613, %v1617
  %v1622 = vand.u32 2147483647, %v1612
  %vm1623 = vcmp.eq.f32.partialorder %v1622, 8.507059e+37
  %v1624 = vand.u32 %v1612, 2147483648
  %v1625 = vor.u32 1.1754944e-38, %v1624
  %v1626 = vsel %vm1623, %v1625, %v1621
  %v1628 = vperm.slane %v1626, 0
  %v1629 = vperm.slane %v1626, 1
  %v1632 = vmul.f32 %v1595, %v1628
  %v1633 = vmul.f32 %v1597, %v1629
  %s1634 = scalar_lea.vmem %s1, 12
  %v1635 = vld [vmem:[%s1634] sm:$0x3]
  %v1637 = vperm.slane %v1635, 0
  %v1638 = vlaneseq
  %v1639 = vshrl.u32 %v1638, 7
  %1641 = vset.pattern.permute.xlu0 %v1639
  %1642 = vperm.xlu0 %1641, %v1637
  %v1643 = vpop.permute.xlu0 %1642
  %v1644 = vperm.slane %v1635, 1
  %v1645 = vlaneseq
  %v1646 = vshrl.u32 %v1645, 7
  %1648 = vset.pattern.permute.xlu0 %v1646
  %1649 = vperm.xlu0 %1648, %v1644
  %v1650 = vpop.permute.xlu0 %1649
  %v1653 = vmul.f32 %v1632, %v1643
  %v1654 = vmul.f32 %v1633, %v1650
  %v1655 = vadd.f32 %v1512, %v215
  %1658 = vset.pattern.permute.xlu0 0
  %1659 = vperm.xlu0 %1658, %v1653
  %v1660 = vpop.permute.xlu0 %1659
  %1661 = vset.pattern.permute.xlu0 0
  %1662 = vperm.xlu0 %1661, %v1654
  %v1663 = vpop.permute.xlu0 %1662
  %v1664 = vperm.slane %v1660, %v138
  %v1665 = vperm.slane %v1663, %v138
  %v1666 = vsel %vm141, %v1665, %v1664
  %v1667 = vsel %vm228, %v1666, 0
  %1669 = vmatpush.msra.mxu0 0.0
  %1670 = vmatpush.msra.mxu0 0.0
  %1671 = vmatpush.msra.mxu0 0.0
  %1672 = vmatpush.msra.mxu0 0.0
  %1673 = vmatpush.msra.mxu0 0.0
  %1674 = vmatpush.msra.mxu0 0.0
  %1675 = vmatpush.msra.mxu0 0.0
  %1676 = vmatpush.msra.mxu0 0.0
  %1677 = vmatpush.msra.mxu0 0.0
  %1678 = vmatpush.msra.mxu0 0.0
  %1679 = vmatpush.msra.mxu0 0.0
  %1680 = vmatpush.msra.mxu0 0.0
  %1681 = vmatpush.msra.mxu0 0.0
  %1682 = vmatpush.msra.mxu0 0.0
  %1683 = vmatpush.msra.mxu0 0.0
  %1684 = vmatpush.msra.mxu0 %v233
  %1685 = vmatmul.f32.gmra.mxu0 %v1667
  %v1686 = vpop.f32.mrf.mxu0
  %v1687 = vadd.f32 0.0, %v1686
  %1688 = vdwg.mxu0
  %v1689 = vadd.f32 %v1655, %v1687
  %v1690 = vxor.u32 %v1689, 2147483648
  %v1691 = vmul.f32 %v1690, 1.442695
  %v1692 = vpow.pop %v1691
  %v1693 = vadd.f32 %v1692, 1.0
  %v1694 = vrcp.pop %v1693
  %v1695 = vmul.f32 %v1693, %v1694
  %v1696 = vsub.f32 1.0, %v1695
  %v1697 = vmul.f32 %v1694, %v1696
  %v1698 = vadd.f32 %v1694, %v1697
  %vm1699 = vweird.f32 %v1693
  %vm1700 = vweird.f32 %v1694
  %vm1701 = vmor %vm1699, %vm1700
  %v1702 = vsel %vm1701, %v1694, %v1698
  %v1703 = vand.u32 2147483647, %v1693
  %vm1704 = vcmp.eq.f32.partialorder %v1703, 8.507059e+37
  %v1705 = vand.u32 %v1693, 2147483648
  %v1706 = vor.u32 1.1754944e-38, %v1705
  %v1707 = vsel %vm1704, %v1706, %v1702
  %v1708 = vmul.f32 1.0, %v1707
  %v1709 = vtanh.pop %v1689
  %v1710 = vmul.f32 %v1708, %v1481
  %1712 = vrot.lane.b32.xlu0 %v1709, 32
  %v1713 = vpop.permute.xlu0 %1712
  %v1715 = vmul.f32 %v1708, %v1713
  %1717 = vrot.lane.b32.xlu0 %v1715, 32
  %v1718 = vpop.permute.xlu0 %1717
  %v1720 = vadd.f32 %v1710, %v1718
  %v1721 = vtanh.pop %v1720
  %1723 = vrot.lane.b32.xlu0 %v1721, 32
  %v1724 = vpop.permute.xlu0 %1723
  %v1726 = vmul.f32 %v1708, %v1724
  %v1727 = vadd.f32 %v1488, %v1726
  %1729 = vrot.lane.b32.xlu0 %v1726, 64
  %v1730 = vpop.permute.xlu0 %1729
  %v1731 = vsel %vm50, %v1730, 0
  %1733 = vmatpush.msra.mxu0 0.0
  %1734 = vmatpush.msra.mxu0 0.0
  %1735 = vmatpush.msra.mxu0 0.0
  %1736 = vmatpush.msra.mxu0 0.0
  %1737 = vmatpush.msra.mxu0 0.0
  %1738 = vmatpush.msra.mxu0 0.0
  %1739 = vmatpush.msra.mxu0 0.0
  %1740 = vmatpush.msra.mxu0 0.0
  %1741 = vmatpush.msra.mxu0 0.0
  %1742 = vmatpush.msra.mxu0 0.0
  %1743 = vmatpush.msra.mxu0 0.0
  %1744 = vmatpush.msra.mxu0 0.0
  %1745 = vmatpush.msra.mxu0 %v31
  %1746 = vmatpush.msra.mxu0 %v29
  %1747 = vmatpush.msra.mxu0 %v27
  %1748 = vmatpush.msra.mxu0 %v25
  %1749 = vmatmul.f32.gmra.mxu0 %v1731
  %v1750 = vpop.f32.mrf.mxu0
  %v1751 = vadd.f32 0.0, %v1750
  %1752 = vdwg.mxu0
  %1753 = vmatpush.msra.mxu0 0.0
  %1754 = vmatpush.msra.mxu0 0.0
  %1755 = vmatpush.msra.mxu0 0.0
  %1756 = vmatpush.msra.mxu0 0.0
  %1757 = vmatpush.msra.mxu0 0.0
  %1758 = vmatpush.msra.mxu0 0.0
  %1759 = vmatpush.msra.mxu0 0.0
  %1760 = vmatpush.msra.mxu0 0.0
  %1761 = vmatpush.msra.mxu0 0.0
  %1762 = vmatpush.msra.mxu0 0.0
  %1763 = vmatpush.msra.mxu0 0.0
  %1764 = vmatpush.msra.mxu0 0.0
  %1765 = vmatpush.msra.mxu0 %v32
  %1766 = vmatpush.msra.mxu0 %v30
  %1767 = vmatpush.msra.mxu0 %v28
  %1768 = vmatpush.msra.mxu0 %v26
  %1769 = vmatmul.f32.gmra.mxu0 %v1731
  %v1770 = vpop.f32.mrf.mxu0
  %v1771 = vadd.f32 0.0, %v1770
  %1772 = vdwg.mxu0
  %1774 = vrot.lane.b32.xlu0 %v1720, 96
  %v1775 = vpop.permute.xlu0 %1774
  %v1776 = vsel %vm50, %v1775, 0
  %1778 = vmatpush.msra.mxu0 0.0
  %1779 = vmatpush.msra.mxu0 0.0
  %1780 = vmatpush.msra.mxu0 0.0
  %1781 = vmatpush.msra.mxu0 0.0
  %1782 = vmatpush.msra.mxu0 0.0
  %1783 = vmatpush.msra.mxu0 0.0
  %1784 = vmatpush.msra.mxu0 0.0
  %1785 = vmatpush.msra.mxu0 0.0
  %1786 = vmatpush.msra.mxu0 0.0
  %1787 = vmatpush.msra.mxu0 0.0
  %1788 = vmatpush.msra.mxu0 0.0
  %1789 = vmatpush.msra.mxu0 0.0
  %1790 = vmatpush.msra.mxu0 %v36
  %1791 = vmatpush.msra.mxu0 %v35
  %1792 = vmatpush.msra.mxu0 %v34
  %1793 = vmatpush.msra.mxu0 %v33
  %1794 = vmatmul.f32.gmra.mxu0 %v1776
  %v1795 = vpop.f32.mrf.mxu0
  %v1796 = vadd.f32 0.0, %v1795
  %1797 = vdwg.mxu0
  %v1798 = vadd.f32 %v1771, %v1796
  %v1800 = vrot.slane %v1798, 1
  %v1801 = vperm.slane %v1798, 0
  %v1802 = vperm.slane %v1800, 0
  %v1805 = vadd.f32 %v1801, %v48
  %v1806 = vadd.f32 %v1802, %v49
  %v1807 = vtanh.pop %v1805
  %v1808 = vtanh.pop %v1806
  %v1809 = vmul.f32 %v1807, %v125
  %v1810 = vmul.f32 %v1808, %v125
  %v1811 = vsel %vm128, %v1809, 0.0
  %1812 = vadd.xlane.f32.xlu0 %v1811
  %v1813 = vpop.xlane.xlu0 %1812
  %v1814 = vsel %vm128, %v1810, 0.0
  %1815 = vadd.xlane.f32.xlu0 %v1814
  %v1816 = vpop.xlane.xlu0 %1815
  %v1819 = vperm.slane %v1813, %v138
  %v1820 = vperm.slane %v1816, %v138
  %v1821 = vsel %vm141, %v1820, %v1819
  %v1823 = vsel %vm144, %v1821, -inf
  %1824 = vmax.xlane.f32.xlu0 %v1823
  %v1825 = vpop.xlane.xlu0 %1824
  %v1827 = vperm.slane %v1825, 0
  %v1828 = vperm.slane %v1825, 1
  %v1831 = vsub.f32 %v1813, %v1827
  %v1832 = vsub.f32 %v1816, %v1828
  %v1833 = vmul.f32 %v1831, 1.442695
  %v1834 = vpow.pop %v1833
  %v1835 = vmul.f32 %v1832, 1.442695
  %v1836 = vpow.pop %v1835
  %1839 = vset.pattern.permute.xlu0 0
  %1840 = vperm.xlu0 %1839, %v1834
  %v1841 = vpop.permute.xlu0 %1840
  %1842 = vset.pattern.permute.xlu0 0
  %1843 = vperm.xlu0 %1842, %v1836
  %v1844 = vpop.permute.xlu0 %1843
  %v1845 = vperm.slane %v1841, %v138
  %v1846 = vperm.slane %v1844, %v138
  %v1847 = vsel %vm141, %v1846, %v1845
  %v1849 = vsel %vm144, %v1847, 0.0
  %1850 = vadd.xlane.f32.xlu0 %v1849
  %v1851 = vpop.xlane.xlu0 %1850
  %v1852 = vrcp.pop %v1851
  %v1853 = vmul.f32 %v1851, %v1852
  %v1854 = vsub.f32 1.0, %v1853
  %v1855 = vmul.f32 %v1852, %v1854
  %v1856 = vadd.f32 %v1852, %v1855
  %vm1857 = vweird.f32 %v1851
  %vm1858 = vweird.f32 %v1852
  %vm1859 = vmor %vm1857, %vm1858
  %v1860 = vsel %vm1859, %v1852, %v1856
  %v1861 = vand.u32 2147483647, %v1851
  %vm1862 = vcmp.eq.f32.partialorder %v1861, 8.507059e+37
  %v1863 = vand.u32 %v1851, 2147483648
  %v1864 = vor.u32 1.1754944e-38, %v1863
  %v1865 = vsel %vm1862, %v1864, %v1860
  %v1867 = vperm.slane %v1865, 0
  %v1868 = vperm.slane %v1865, 1
  %v1871 = vmul.f32 %v1834, %v1867
  %v1872 = vmul.f32 %v1836, %v1868
  %s1873 = scalar_lea.vmem %s1, 14
  %v1874 = vld [vmem:[%s1873] sm:$0x3]
  %v1876 = vperm.slane %v1874, 0
  %v1877 = vlaneseq
  %v1878 = vshrl.u32 %v1877, 7
  %1880 = vset.pattern.permute.xlu0 %v1878
  %1881 = vperm.xlu0 %1880, %v1876
  %v1882 = vpop.permute.xlu0 %1881
  %v1883 = vperm.slane %v1874, 1
  %v1884 = vlaneseq
  %v1885 = vshrl.u32 %v1884, 7
  %1887 = vset.pattern.permute.xlu0 %v1885
  %1888 = vperm.xlu0 %1887, %v1883
  %v1889 = vpop.permute.xlu0 %1888
  %v1892 = vmul.f32 %v1871, %v1882
  %v1893 = vmul.f32 %v1872, %v1889
  %v1894 = vadd.f32 %v1751, %v215
  %1897 = vset.pattern.permute.xlu0 0
  %1898 = vperm.xlu0 %1897, %v1892
  %v1899 = vpop.permute.xlu0 %1898
  %1900 = vset.pattern.permute.xlu0 0
  %1901 = vperm.xlu0 %1900, %v1893
  %v1902 = vpop.permute.xlu0 %1901
  %v1903 = vperm.slane %v1899, %v138
  %v1904 = vperm.slane %v1902, %v138
  %v1905 = vsel %vm141, %v1904, %v1903
  %v1906 = vsel %vm228, %v1905, 0
  %1908 = vmatpush.msra.mxu0 0.0
  %1909 = vmatpush.msra.mxu0 0.0
  %1910 = vmatpush.msra.mxu0 0.0
  %1911 = vmatpush.msra.mxu0 0.0
  %1912 = vmatpush.msra.mxu0 0.0
  %1913 = vmatpush.msra.mxu0 0.0
  %1914 = vmatpush.msra.mxu0 0.0
  %1915 = vmatpush.msra.mxu0 0.0
  %1916 = vmatpush.msra.mxu0 0.0
  %1917 = vmatpush.msra.mxu0 0.0
  %1918 = vmatpush.msra.mxu0 0.0
  %1919 = vmatpush.msra.mxu0 0.0
  %1920 = vmatpush.msra.mxu0 0.0
  %1921 = vmatpush.msra.mxu0 0.0
  %1922 = vmatpush.msra.mxu0 0.0
  %1923 = vmatpush.msra.mxu0 %v233
  %1924 = vmatmul.f32.gmra.mxu0 %v1906
  %v1925 = vpop.f32.mrf.mxu0
  %v1926 = vadd.f32 0.0, %v1925
  %1927 = vdwg.mxu0
  %v1928 = vadd.f32 %v1894, %v1926
  %v1929 = vxor.u32 %v1928, 2147483648
  %v1930 = vmul.f32 %v1929, 1.442695
  %v1931 = vpow.pop %v1930
  %v1932 = vadd.f32 %v1931, 1.0
  %v1933 = vrcp.pop %v1932
  %v1934 = vmul.f32 %v1932, %v1933
  %v1935 = vsub.f32 1.0, %v1934
  %v1936 = vmul.f32 %v1933, %v1935
  %v1937 = vadd.f32 %v1933, %v1936
  %vm1938 = vweird.f32 %v1932
  %vm1939 = vweird.f32 %v1933
  %vm1940 = vmor %vm1938, %vm1939
  %v1941 = vsel %vm1940, %v1933, %v1937
  %v1942 = vand.u32 2147483647, %v1932
  %vm1943 = vcmp.eq.f32.partialorder %v1942, 8.507059e+37
  %v1944 = vand.u32 %v1932, 2147483648
  %v1945 = vor.u32 1.1754944e-38, %v1944
  %v1946 = vsel %vm1943, %v1945, %v1941
  %v1947 = vmul.f32 1.0, %v1946
  %v1948 = vtanh.pop %v1928
  %v1949 = vmul.f32 %v1947, %v1720
  %1951 = vrot.lane.b32.xlu0 %v1948, 32
  %v1952 = vpop.permute.xlu0 %1951
  %v1954 = vmul.f32 %v1947, %v1952
  %1956 = vrot.lane.b32.xlu0 %v1954, 32
  %v1957 = vpop.permute.xlu0 %1956
  %v1959 = vadd.f32 %v1949, %v1957
  %v1960 = vtanh.pop %v1959
  %1962 = vrot.lane.b32.xlu0 %v1960, 32
  %v1963 = vpop.permute.xlu0 %1962
  %v1965 = vmul.f32 %v1947, %v1963
  %v1966 = vadd.f32 %v1727, %v1965
  %v1967 = vmul.f32 %v1966, 0.125
  %v1968 = vperm.slane %v45, 0
  %1970 = vrot.lane.b32.xlu0 %v1968, 64
  %v1971 = vpop.permute.xlu0 %1970
  %v1973 = vmul.f32 %v1967, %v1971
  %1975 = vrot.lane.b32.xlu0 %v1973, 64
  %v1976 = vpop.permute.xlu0 %1975
  %vm1978 = vcmask 254976
  %v1979 = vsel %vm1978, %v1976, 0.0
  %1980 = vadd.xlane.f32.xlu0 %v1979
  %v1981 = vpop.xlane.xlu0 %1980
  %v1982 = vperm.slane %v43, 0
  %v1983 = vmul.f32 %v1981, %v1982
  %v1984 = vld [vmem:[%s3] sm:$0x3]
  %v1985 = vadd.f32 %v1984, %v1983
  %1986 = vmatpush.msra.mxu0 0.0
  %1987 = vmatpush.msra.mxu0 0.0
  %1988 = vmatpush.msra.mxu0 0.0
  %1989 = vmatpush.msra.mxu0 0.0
  %1990 = vmatpush.msra.mxu0 0.0
  %1991 = vmatpush.msra.mxu0 0.0
  %1992 = vmatpush.msra.mxu0 0.0
  %1993 = vmatpush.msra.mxu0 0.0
  %1994 = vmatpush.msra.mxu0 0.0
  %1995 = vmatpush.msra.mxu0 0.0
  %1996 = vmatpush.msra.mxu0 0.0
  %1997 = vmatpush.msra.mxu0 0.0
  %1998 = vmatpush.msra.mxu0 %v40
  %1999 = vmatpush.msra.mxu0 %v39
  %2000 = vmatpush.msra.mxu0 %v38
  %2001 = vmatpush.msra.mxu0 %v37
  %2002 = vmatmul.f32.gmra.mxu0 %v52
  %v2003 = vpop.f32.mrf.mxu0
  %v2004 = vadd.f32 0.0, %v2003
  %2005 = vdwg.mxu0
  %v2006 = vadd.f32 %v1985, %v2004
  %v2007 = vxor.u32 %v2006, 2147483648
  %v2008 = vmul.f32 %v2007, 1.442695
  %v2009 = vpow.pop %v2008
  %v2010 = vadd.f32 %v2009, 1.0
  %v2011 = vrcp.pop %v2010
  %v2012 = vmul.f32 %v2010, %v2011
  %v2013 = vsub.f32 1.0, %v2012
  %v2014 = vmul.f32 %v2011, %v2013
  %v2015 = vadd.f32 %v2011, %v2014
  %vm2016 = vweird.f32 %v2010
  %vm2017 = vweird.f32 %v2011
  %vm2018 = vmor %vm2016, %vm2017
  %v2019 = vsel %vm2018, %v2011, %v2015
  %v2020 = vand.u32 2147483647, %v2010
  %vm2021 = vcmp.eq.f32.partialorder %v2020, 8.507059e+37
  %v2022 = vand.u32 %v2010, 2147483648
  %v2023 = vor.u32 1.1754944e-38, %v2022
  %v2024 = vsel %vm2021, %v2023, %v2019
  %v2025 = vmul.f32 1.0, %v2024
  %v2026 = vtanh.pop %v2006
  %v2027 = vmul.f32 %v2025, 0.0
  %2029 = vrot.lane.b32.xlu0 %v2026, 32
  %v2030 = vpop.permute.xlu0 %2029
  %v2032 = vmul.f32 %v2025, %v2030
  %2034 = vrot.lane.b32.xlu0 %v2032, 32
  %v2035 = vpop.permute.xlu0 %2034
  %v2037 = vadd.f32 %v2027, %v2035
  %v2038 = vtanh.pop %v2037
  %2040 = vrot.lane.b32.xlu0 %v2038, 32
  %v2041 = vpop.permute.xlu0 %2040
  %v2043 = vmul.f32 %v2025, %v2041
  %s2044 = scalar_lea.vmem %s3, 2
  %v2045 = vld [vmem:[%s2044] sm:$0x3]
  %v2046 = vadd.f32 %v2045, %v1983
  %2048 = vrot.lane.b32.xlu0 %v2043, 64
  %v2049 = vpop.permute.xlu0 %2048
  %v2050 = vsel %vm50, %v2049, 0
  %2052 = vmatpush.msra.mxu0 0.0
  %2053 = vmatpush.msra.mxu0 0.0
  %2054 = vmatpush.msra.mxu0 0.0
  %2055 = vmatpush.msra.mxu0 0.0
  %2056 = vmatpush.msra.mxu0 0.0
  %2057 = vmatpush.msra.mxu0 0.0
  %2058 = vmatpush.msra.mxu0 0.0
  %2059 = vmatpush.msra.mxu0 0.0
  %2060 = vmatpush.msra.mxu0 0.0
  %2061 = vmatpush.msra.mxu0 0.0
  %2062 = vmatpush.msra.mxu0 0.0
  %2063 = vmatpush.msra.mxu0 0.0
  %2064 = vmatpush.msra.mxu0 %v40
  %2065 = vmatpush.msra.mxu0 %v39
  %2066 = vmatpush.msra.mxu0 %v38
  %2067 = vmatpush.msra.mxu0 %v37
  %2068 = vmatmul.f32.gmra.mxu0 %v2050
  %v2069 = vpop.f32.mrf.mxu0
  %v2070 = vadd.f32 0.0, %v2069
  %2071 = vdwg.mxu0
  %v2072 = vadd.f32 %v2046, %v2070
  %v2073 = vxor.u32 %v2072, 2147483648
  %v2074 = vmul.f32 %v2073, 1.442695
  %v2075 = vpow.pop %v2074
  %v2076 = vadd.f32 %v2075, 1.0
  %v2077 = vrcp.pop %v2076
  %v2078 = vmul.f32 %v2076, %v2077
  %v2079 = vsub.f32 1.0, %v2078
  %v2080 = vmul.f32 %v2077, %v2079
  %v2081 = vadd.f32 %v2077, %v2080
  %vm2082 = vweird.f32 %v2076
  %vm2083 = vweird.f32 %v2077
  %vm2084 = vmor %vm2082, %vm2083
  %v2085 = vsel %vm2084, %v2077, %v2081
  %v2086 = vand.u32 2147483647, %v2076
  %vm2087 = vcmp.eq.f32.partialorder %v2086, 8.507059e+37
  %v2088 = vand.u32 %v2076, 2147483648
  %v2089 = vor.u32 1.1754944e-38, %v2088
  %v2090 = vsel %vm2087, %v2089, %v2085
  %v2091 = vmul.f32 1.0, %v2090
  %v2092 = vtanh.pop %v2072
  %v2093 = vmul.f32 %v2091, %v2037
  %2095 = vrot.lane.b32.xlu0 %v2092, 32
  %v2096 = vpop.permute.xlu0 %2095
  %v2098 = vmul.f32 %v2091, %v2096
  %2100 = vrot.lane.b32.xlu0 %v2098, 32
  %v2101 = vpop.permute.xlu0 %2100
  %v2103 = vadd.f32 %v2093, %v2101
  %v2104 = vtanh.pop %v2103
  %2106 = vrot.lane.b32.xlu0 %v2104, 32
  %v2107 = vpop.permute.xlu0 %2106
  %v2109 = vmul.f32 %v2091, %v2107
  %s2110 = scalar_lea.vmem %s3, 4
  %v2111 = vld [vmem:[%s2110] sm:$0x3]
  %v2112 = vadd.f32 %v2111, %v1983
  %2114 = vrot.lane.b32.xlu0 %v2109, 64
  %v2115 = vpop.permute.xlu0 %2114
  %v2116 = vsel %vm50, %v2115, 0
  %2118 = vmatpush.msra.mxu0 0.0
  %2119 = vmatpush.msra.mxu0 0.0
  %2120 = vmatpush.msra.mxu0 0.0
  %2121 = vmatpush.msra.mxu0 0.0
  %2122 = vmatpush.msra.mxu0 0.0
  %2123 = vmatpush.msra.mxu0 0.0
  %2124 = vmatpush.msra.mxu0 0.0
  %2125 = vmatpush.msra.mxu0 0.0
  %2126 = vmatpush.msra.mxu0 0.0
  %2127 = vmatpush.msra.mxu0 0.0
  %2128 = vmatpush.msra.mxu0 0.0
  %2129 = vmatpush.msra.mxu0 0.0
  %2130 = vmatpush.msra.mxu0 %v40
  %2131 = vmatpush.msra.mxu0 %v39
  %2132 = vmatpush.msra.mxu0 %v38
  %2133 = vmatpush.msra.mxu0 %v37
  %2134 = vmatmul.f32.gmra.mxu0 %v2116
  %v2135 = vpop.f32.mrf.mxu0
  %v2136 = vadd.f32 0.0, %v2135
  %2137 = vdwg.mxu0
  %v2138 = vadd.f32 %v2112, %v2136
  %v2139 = vxor.u32 %v2138, 2147483648
  %v2140 = vmul.f32 %v2139, 1.442695
  %v2141 = vpow.pop %v2140
  %v2142 = vadd.f32 %v2141, 1.0
  %v2143 = vrcp.pop %v2142
  %v2144 = vmul.f32 %v2142, %v2143
  %v2145 = vsub.f32 1.0, %v2144
  %v2146 = vmul.f32 %v2143, %v2145
  %v2147 = vadd.f32 %v2143, %v2146
  %vm2148 = vweird.f32 %v2142
  %vm2149 = vweird.f32 %v2143
  %vm2150 = vmor %vm2148, %vm2149
  %v2151 = vsel %vm2150, %v2143, %v2147
  %v2152 = vand.u32 2147483647, %v2142
  %vm2153 = vcmp.eq.f32.partialorder %v2152, 8.507059e+37
  %v2154 = vand.u32 %v2142, 2147483648
  %v2155 = vor.u32 1.1754944e-38, %v2154
  %v2156 = vsel %vm2153, %v2155, %v2151
  %v2157 = vmul.f32 1.0, %v2156
  %v2158 = vtanh.pop %v2138
  %v2159 = vmul.f32 %v2157, %v2103
  %2161 = vrot.lane.b32.xlu0 %v2158, 32
  %v2162 = vpop.permute.xlu0 %2161
  %v2164 = vmul.f32 %v2157, %v2162
  %2166 = vrot.lane.b32.xlu0 %v2164, 32
  %v2167 = vpop.permute.xlu0 %2166
  %v2169 = vadd.f32 %v2159, %v2167
  %v2170 = vtanh.pop %v2169
  %2172 = vrot.lane.b32.xlu0 %v2170, 32
  %v2173 = vpop.permute.xlu0 %2172
  %v2175 = vmul.f32 %v2157, %v2173
  %s2176 = scalar_lea.vmem %s3, 6
  %v2177 = vld [vmem:[%s2176] sm:$0x3]
  %v2178 = vadd.f32 %v2177, %v1983
  %2180 = vrot.lane.b32.xlu0 %v2175, 64
  %v2181 = vpop.permute.xlu0 %2180
  %v2182 = vsel %vm50, %v2181, 0
  %2184 = vmatpush.msra.mxu0 0.0
  %2185 = vmatpush.msra.mxu0 0.0
  %2186 = vmatpush.msra.mxu0 0.0
  %2187 = vmatpush.msra.mxu0 0.0
  %2188 = vmatpush.msra.mxu0 0.0
  %2189 = vmatpush.msra.mxu0 0.0
  %2190 = vmatpush.msra.mxu0 0.0
  %2191 = vmatpush.msra.mxu0 0.0
  %2192 = vmatpush.msra.mxu0 0.0
  %2193 = vmatpush.msra.mxu0 0.0
  %2194 = vmatpush.msra.mxu0 0.0
  %2195 = vmatpush.msra.mxu0 0.0
  %2196 = vmatpush.msra.mxu0 %v40
  %2197 = vmatpush.msra.mxu0 %v39
  %2198 = vmatpush.msra.mxu0 %v38
  %2199 = vmatpush.msra.mxu0 %v37
  %2200 = vmatmul.f32.gmra.mxu0 %v2182
  %v2201 = vpop.f32.mrf.mxu0
  %v2202 = vadd.f32 0.0, %v2201
  %2203 = vdwg.mxu0
  %v2204 = vadd.f32 %v2178, %v2202
  %v2205 = vxor.u32 %v2204, 2147483648
  %v2206 = vmul.f32 %v2205, 1.442695
  %v2207 = vpow.pop %v2206
  %v2208 = vadd.f32 %v2207, 1.0
  %v2209 = vrcp.pop %v2208
  %v2210 = vmul.f32 %v2208, %v2209
  %v2211 = vsub.f32 1.0, %v2210
  %v2212 = vmul.f32 %v2209, %v2211
  %v2213 = vadd.f32 %v2209, %v2212
  %vm2214 = vweird.f32 %v2208
  %vm2215 = vweird.f32 %v2209
  %vm2216 = vmor %vm2214, %vm2215
  %v2217 = vsel %vm2216, %v2209, %v2213
  %v2218 = vand.u32 2147483647, %v2208
  %vm2219 = vcmp.eq.f32.partialorder %v2218, 8.507059e+37
  %v2220 = vand.u32 %v2208, 2147483648
  %v2221 = vor.u32 1.1754944e-38, %v2220
  %v2222 = vsel %vm2219, %v2221, %v2217
  %v2223 = vmul.f32 1.0, %v2222
  %v2224 = vtanh.pop %v2204
  %v2225 = vmul.f32 %v2223, %v2169
  %2227 = vrot.lane.b32.xlu0 %v2224, 32
  %v2228 = vpop.permute.xlu0 %2227
  %v2230 = vmul.f32 %v2223, %v2228
  %2232 = vrot.lane.b32.xlu0 %v2230, 32
  %v2233 = vpop.permute.xlu0 %2232
  %v2235 = vadd.f32 %v2225, %v2233
  %v2236 = vtanh.pop %v2235
  %2238 = vrot.lane.b32.xlu0 %v2236, 32
  %v2239 = vpop.permute.xlu0 %2238
  %v2241 = vmul.f32 %v2223, %v2239
  %s2242 = scalar_lea.vmem %s3, 8
  %v2243 = vld [vmem:[%s2242] sm:$0x3]
  %v2244 = vadd.f32 %v2243, %v1983
  %2246 = vrot.lane.b32.xlu0 %v2241, 64
  %v2247 = vpop.permute.xlu0 %2246
  %v2248 = vsel %vm50, %v2247, 0
  %2250 = vmatpush.msra.mxu0 0.0
  %2251 = vmatpush.msra.mxu0 0.0
  %2252 = vmatpush.msra.mxu0 0.0
  %2253 = vmatpush.msra.mxu0 0.0
  %2254 = vmatpush.msra.mxu0 0.0
  %2255 = vmatpush.msra.mxu0 0.0
  %2256 = vmatpush.msra.mxu0 0.0
  %2257 = vmatpush.msra.mxu0 0.0
  %2258 = vmatpush.msra.mxu0 0.0
  %2259 = vmatpush.msra.mxu0 0.0
  %2260 = vmatpush.msra.mxu0 0.0
  %2261 = vmatpush.msra.mxu0 0.0
  %2262 = vmatpush.msra.mxu0 %v40
  %2263 = vmatpush.msra.mxu0 %v39
  %2264 = vmatpush.msra.mxu0 %v38
  %2265 = vmatpush.msra.mxu0 %v37
  %2266 = vmatmul.f32.gmra.mxu0 %v2248
  %v2267 = vpop.f32.mrf.mxu0
  %v2268 = vadd.f32 0.0, %v2267
  %2269 = vdwg.mxu0
  %v2270 = vadd.f32 %v2244, %v2268
  %v2271 = vxor.u32 %v2270, 2147483648
  %v2272 = vmul.f32 %v2271, 1.442695
  %v2273 = vpow.pop %v2272
  %v2274 = vadd.f32 %v2273, 1.0
  %v2275 = vrcp.pop %v2274
  %v2276 = vmul.f32 %v2274, %v2275
  %v2277 = vsub.f32 1.0, %v2276
  %v2278 = vmul.f32 %v2275, %v2277
  %v2279 = vadd.f32 %v2275, %v2278
  %vm2280 = vweird.f32 %v2274
  %vm2281 = vweird.f32 %v2275
  %vm2282 = vmor %vm2280, %vm2281
  %v2283 = vsel %vm2282, %v2275, %v2279
  %v2284 = vand.u32 2147483647, %v2274
  %vm2285 = vcmp.eq.f32.partialorder %v2284, 8.507059e+37
  %v2286 = vand.u32 %v2274, 2147483648
  %v2287 = vor.u32 1.1754944e-38, %v2286
  %v2288 = vsel %vm2285, %v2287, %v2283
  %v2289 = vmul.f32 1.0, %v2288
  %v2290 = vtanh.pop %v2270
  %v2291 = vmul.f32 %v2289, %v2235
  %2293 = vrot.lane.b32.xlu0 %v2290, 32
  %v2294 = vpop.permute.xlu0 %2293
  %v2296 = vmul.f32 %v2289, %v2294
  %2298 = vrot.lane.b32.xlu0 %v2296, 32
  %v2299 = vpop.permute.xlu0 %2298
  %v2301 = vadd.f32 %v2291, %v2299
  %v2302 = vtanh.pop %v2301
  %2304 = vrot.lane.b32.xlu0 %v2302, 32
  %v2305 = vpop.permute.xlu0 %2304
  %v2307 = vmul.f32 %v2289, %v2305
  %s2308 = scalar_lea.vmem %s3, 10
  %v2309 = vld [vmem:[%s2308] sm:$0x3]
  %v2310 = vadd.f32 %v2309, %v1983
  %2312 = vrot.lane.b32.xlu0 %v2307, 64
  %v2313 = vpop.permute.xlu0 %2312
  %v2314 = vsel %vm50, %v2313, 0
  %2316 = vmatpush.msra.mxu0 0.0
  %2317 = vmatpush.msra.mxu0 0.0
  %2318 = vmatpush.msra.mxu0 0.0
  %2319 = vmatpush.msra.mxu0 0.0
  %2320 = vmatpush.msra.mxu0 0.0
  %2321 = vmatpush.msra.mxu0 0.0
  %2322 = vmatpush.msra.mxu0 0.0
  %2323 = vmatpush.msra.mxu0 0.0
  %2324 = vmatpush.msra.mxu0 0.0
  %2325 = vmatpush.msra.mxu0 0.0
  %2326 = vmatpush.msra.mxu0 0.0
  %2327 = vmatpush.msra.mxu0 0.0
  %2328 = vmatpush.msra.mxu0 %v40
  %2329 = vmatpush.msra.mxu0 %v39
  %2330 = vmatpush.msra.mxu0 %v38
  %2331 = vmatpush.msra.mxu0 %v37
  %2332 = vmatmul.f32.gmra.mxu0 %v2314
  %v2333 = vpop.f32.mrf.mxu0
  %v2334 = vadd.f32 0.0, %v2333
  %2335 = vdwg.mxu0
  %v2336 = vadd.f32 %v2310, %v2334
  %v2337 = vxor.u32 %v2336, 2147483648
  %v2338 = vmul.f32 %v2337, 1.442695
  %v2339 = vpow.pop %v2338
  %v2340 = vadd.f32 %v2339, 1.0
  %v2341 = vrcp.pop %v2340
  %v2342 = vmul.f32 %v2340, %v2341
  %v2343 = vsub.f32 1.0, %v2342
  %v2344 = vmul.f32 %v2341, %v2343
  %v2345 = vadd.f32 %v2341, %v2344
  %vm2346 = vweird.f32 %v2340
  %vm2347 = vweird.f32 %v2341
  %vm2348 = vmor %vm2346, %vm2347
  %v2349 = vsel %vm2348, %v2341, %v2345
  %v2350 = vand.u32 2147483647, %v2340
  %vm2351 = vcmp.eq.f32.partialorder %v2350, 8.507059e+37
  %v2352 = vand.u32 %v2340, 2147483648
  %v2353 = vor.u32 1.1754944e-38, %v2352
  %v2354 = vsel %vm2351, %v2353, %v2349
  %v2355 = vmul.f32 1.0, %v2354
  %v2356 = vtanh.pop %v2336
  %v2357 = vmul.f32 %v2355, %v2301
  %2359 = vrot.lane.b32.xlu0 %v2356, 32
  %v2360 = vpop.permute.xlu0 %2359
  %v2362 = vmul.f32 %v2355, %v2360
  %2364 = vrot.lane.b32.xlu0 %v2362, 32
  %v2365 = vpop.permute.xlu0 %2364
  %v2367 = vadd.f32 %v2357, %v2365
  %v2368 = vtanh.pop %v2367
  %2370 = vrot.lane.b32.xlu0 %v2368, 32
  %v2371 = vpop.permute.xlu0 %2370
  %v2373 = vmul.f32 %v2355, %v2371
  %s2374 = scalar_lea.vmem %s3, 12
  %v2375 = vld [vmem:[%s2374] sm:$0x3]
  %v2376 = vadd.f32 %v2375, %v1983
  %2378 = vrot.lane.b32.xlu0 %v2373, 64
  %v2379 = vpop.permute.xlu0 %2378
  %v2380 = vsel %vm50, %v2379, 0
  %2382 = vmatpush.msra.mxu0 0.0
  %2383 = vmatpush.msra.mxu0 0.0
  %2384 = vmatpush.msra.mxu0 0.0
  %2385 = vmatpush.msra.mxu0 0.0
  %2386 = vmatpush.msra.mxu0 0.0
  %2387 = vmatpush.msra.mxu0 0.0
  %2388 = vmatpush.msra.mxu0 0.0
  %2389 = vmatpush.msra.mxu0 0.0
  %2390 = vmatpush.msra.mxu0 0.0
  %2391 = vmatpush.msra.mxu0 0.0
  %2392 = vmatpush.msra.mxu0 0.0
  %2393 = vmatpush.msra.mxu0 0.0
  %2394 = vmatpush.msra.mxu0 %v40
  %2395 = vmatpush.msra.mxu0 %v39
  %2396 = vmatpush.msra.mxu0 %v38
  %2397 = vmatpush.msra.mxu0 %v37
  %2398 = vmatmul.f32.gmra.mxu0 %v2380
  %v2399 = vpop.f32.mrf.mxu0
  %v2400 = vadd.f32 0.0, %v2399
  %2401 = vdwg.mxu0
  %v2402 = vadd.f32 %v2376, %v2400
  %v2403 = vxor.u32 %v2402, 2147483648
  %v2404 = vmul.f32 %v2403, 1.442695
  %v2405 = vpow.pop %v2404
  %v2406 = vadd.f32 %v2405, 1.0
  %v2407 = vrcp.pop %v2406
  %v2408 = vmul.f32 %v2406, %v2407
  %v2409 = vsub.f32 1.0, %v2408
  %v2410 = vmul.f32 %v2407, %v2409
  %v2411 = vadd.f32 %v2407, %v2410
  %vm2412 = vweird.f32 %v2406
  %vm2413 = vweird.f32 %v2407
  %vm2414 = vmor %vm2412, %vm2413
  %v2415 = vsel %vm2414, %v2407, %v2411
  %v2416 = vand.u32 2147483647, %v2406
  %vm2417 = vcmp.eq.f32.partialorder %v2416, 8.507059e+37
  %v2418 = vand.u32 %v2406, 2147483648
  %v2419 = vor.u32 1.1754944e-38, %v2418
  %v2420 = vsel %vm2417, %v2419, %v2415
  %v2421 = vmul.f32 1.0, %v2420
  %v2422 = vtanh.pop %v2402
  %v2423 = vmul.f32 %v2421, %v2367
  %2425 = vrot.lane.b32.xlu0 %v2422, 32
  %v2426 = vpop.permute.xlu0 %2425
  %v2428 = vmul.f32 %v2421, %v2426
  %2430 = vrot.lane.b32.xlu0 %v2428, 32
  %v2431 = vpop.permute.xlu0 %2430
  %v2433 = vadd.f32 %v2423, %v2431
  %v2434 = vtanh.pop %v2433
  %2436 = vrot.lane.b32.xlu0 %v2434, 32
  %v2437 = vpop.permute.xlu0 %2436
  %v2439 = vmul.f32 %v2421, %v2437
  %s2440 = scalar_lea.vmem %s3, 14
  %v2441 = vld [vmem:[%s2440] sm:$0x3]
  %v2442 = vadd.f32 %v2441, %v1983
  %2444 = vrot.lane.b32.xlu0 %v2439, 64
  %v2445 = vpop.permute.xlu0 %2444
  %v2446 = vsel %vm50, %v2445, 0
  %2448 = vmatpush.msra.mxu0 0.0
  %2449 = vmatpush.msra.mxu0 0.0
  %2450 = vmatpush.msra.mxu0 0.0
  %2451 = vmatpush.msra.mxu0 0.0
  %2452 = vmatpush.msra.mxu0 0.0
  %2453 = vmatpush.msra.mxu0 0.0
  %2454 = vmatpush.msra.mxu0 0.0
  %2455 = vmatpush.msra.mxu0 0.0
  %2456 = vmatpush.msra.mxu0 0.0
  %2457 = vmatpush.msra.mxu0 0.0
  %2458 = vmatpush.msra.mxu0 0.0
  %2459 = vmatpush.msra.mxu0 0.0
  %2460 = vmatpush.msra.mxu0 %v40
  %2461 = vmatpush.msra.mxu0 %v39
  %2462 = vmatpush.msra.mxu0 %v38
  %2463 = vmatpush.msra.mxu0 %v37
  %2464 = vmatmul.f32.gmra.mxu0 %v2446
  %v2465 = vpop.f32.mrf.mxu0
  %v2466 = vadd.f32 0.0, %v2465
  %2467 = vdwg.mxu0
  %v2468 = vadd.f32 %v2442, %v2466
  %v2469 = vxor.u32 %v2468, 2147483648
  %v2470 = vmul.f32 %v2469, 1.442695
  %v2471 = vpow.pop %v2470
  %v2472 = vadd.f32 %v2471, 1.0
  %v2473 = vrcp.pop %v2472
  %v2474 = vmul.f32 %v2472, %v2473
  %v2475 = vsub.f32 1.0, %v2474
  %v2476 = vmul.f32 %v2473, %v2475
  %v2477 = vadd.f32 %v2473, %v2476
  %vm2478 = vweird.f32 %v2472
  %vm2479 = vweird.f32 %v2473
  %vm2480 = vmor %vm2478, %vm2479
  %v2481 = vsel %vm2480, %v2473, %v2477
  %v2482 = vand.u32 2147483647, %v2472
  %vm2483 = vcmp.eq.f32.partialorder %v2482, 8.507059e+37
  %v2484 = vand.u32 %v2472, 2147483648
  %v2485 = vor.u32 1.1754944e-38, %v2484
  %v2486 = vsel %vm2483, %v2485, %v2481
  %v2487 = vmul.f32 1.0, %v2486
  %v2488 = vtanh.pop %v2468
  %v2489 = vmul.f32 %v2487, %v2433
  %2491 = vrot.lane.b32.xlu0 %v2488, 32
  %v2492 = vpop.permute.xlu0 %2491
  %v2494 = vmul.f32 %v2487, %v2492
  %2496 = vrot.lane.b32.xlu0 %v2494, 32
  %v2497 = vpop.permute.xlu0 %2496
  %v2499 = vadd.f32 %v2489, %v2497
  %v2500 = vtanh.pop %v2499
  %2502 = vrot.lane.b32.xlu0 %v2500, 32
  %v2503 = vpop.permute.xlu0 %2502
  %v2505 = vmul.f32 %v2487, %v2503
  %v2506 = vperm.slane %v46, 0
  %2508 = vrot.lane.b32.xlu0 %v2506, 64
  %v2509 = vpop.permute.xlu0 %2508
  %v2511 = vmul.f32 %v2505, %v2509
  %2513 = vrot.lane.b32.xlu0 %v2511, 64
  %v2514 = vpop.permute.xlu0 %2513
  %v2516 = vsel %vm1978, %v2514, 0.0
  %2517 = vadd.xlane.f32.xlu0 %v2516
  %v2518 = vpop.xlane.xlu0 %2517
  %v2519 = vperm.slane %v47, 0
  %2521 = vrot.lane.b32.xlu0 %v2519, 64
  %v2522 = vpop.permute.xlu0 %2521
  %v2524 = vmul.f32 %v1967, %v2522
  %2526 = vrot.lane.b32.xlu0 %v2524, 64
  %v2527 = vpop.permute.xlu0 %2526
  %v2529 = vsel %vm1978, %v2527, 0.0
  %2530 = vadd.xlane.f32.xlu0 %v2529
  %v2531 = vpop.xlane.xlu0 %2530
  %v2532 = vadd.f32 %v2518, %v2531
  %v2533 = vstv %s24
  %v2534 = vadd.f32 %v2532, %v2533
  %2535 = vst [vmem:[%s6] sm:$0x3] %v2534
  // Predicated region
  $region26: #{rnn_da_att2_forward.1} parent=0 // pred_check
    _
  $region27: #{rnn_da_att2_forward.1} parent=0 // pred_check_branch
    %2537 = sbr.rel (0) target = $region29
  $region28: #{rnn_da_att2_forward.1} parent=0 // pred_region
    _
  $region29: #{rnn_da_att2_forward.1} parent=0 // pred_fallthru
    _
  // Predicated region
  $region30: #{rnn_da_att2_forward.1} parent=0 // pred_check
    _
  $region31: #{rnn_da_att2_forward.1} parent=0 // pred_check_branch
    %2539 = sbr.rel (0) target = $region33
  $region32: #{rnn_da_att2_forward.1} parent=0 // pred_region
    _
  $region33: #{rnn_da_att2_forward.1} parent=0 // pred_fallthru
    _

</llo_original>
